<compile_context>
chip_gen: v5e
topology: v5e:2x2
jax: 0.10.0
libtpu: 0.0.40
codegen_flags: <defaults>
</compile_context>

<pallas_src>
import functools

import jax
import jax.numpy as jnp
import numpy as np
from jax.experimental import pallas as pl
from jax.experimental.pallas import tpu as pltpu

EPS = 1e-5
LANE = 128
LEFT = 8          # aligned left halo inside the conv2 scratch


def _round_up(n, m):
    return ((n + m - 1) // m) * m


def _pad_axis(a, target, axis):
    pad = target - a.shape[axis]
    if pad == 0:
        return a
    widths = [(0, 0)] * a.ndim
    widths[axis] = (0, pad)
    return jnp.pad(a, widths)


# ----------------------------------------------------------------------------
# Fused kernel: one batch image per grid step.
# ----------------------------------------------------------------------------
def _make_block_kernel(H, W, Hout, Wout, stride, needs_proj,
                       cin_p, cmid_p, cout_p, compute_dtype):
    W_pad = W + 2 * LEFT
    HW = H * W

    def _mm(a, b):
        if compute_dtype != jnp.float32:
            a = a.astype(compute_dtype)
        return jnp.dot(a, b, preferred_element_type=jnp.float32)

    def kernel(x_ref, s1_ref, b1_ref, w1_ref, b2_ref, w2_ref, b3_ref, w3_ref,
               *rest):
        if needs_proj:
            w4_ref, o_ref, tpad_ref = rest
        else:
            o_ref, tpad_ref = rest

        x = x_ref[0].reshape(HW, cin_p)                      # (H*W, Cin_p)

        # BN1 + ReLU (pre-activation); also feeds the projection residual.
        out1 = jnp.maximum(x * s1_ref[...] + b1_ref[...], 0.0)

        # conv1 (1x1); BN2 scale folded into w1 -> only shift + ReLU here.
        t = jnp.maximum(_mm(out1, w1_ref[...]) + b2_ref[...], 0.0)

        # Place t inside a zero halo so the nine shifted windows see conv2's
        # zero padding for free (replaces the host-side im2col entirely).
        tpad_ref[...] = jnp.zeros((H + 2, W_pad, cmid_p), jnp.float32)
        tpad_ref[pl.ds(1, H), pl.ds(LEFT, W), :] = t.reshape(H, W, cmid_p)

        # conv2 (3x3, pad=1) as 9 shifted matmuls; BN3 scale folded into w2.
        acc = jnp.zeros((HW, cmid_p), jnp.float32)
        for kh in range(3):
            slab = tpad_ref[pl.ds(kh, H), :, :]              # (H, W_pad, Cmid)
            for kw in range(3):
                win = slab[:, LEFT - 1 + kw:LEFT - 1 + kw + W, :]
                acc = acc + _mm(win.reshape(HW, cmid_p), w2_ref[kh * 3 + kw])
        u = jnp.maximum(acc + b3_ref[...], 0.0)

        # conv3 (1x1).
        y = _mm(u, w3_ref[...])                              # (H*W, Cout_p)
        if stride != 1:
            # TODO(synk): stride>1 computes conv2/conv3 at full resolution and
            # subsamples; a halo-tiled variant would avoid the extra work.
            y = y.reshape(H, W, cout_p)[::stride, ::stride, :]
            y = y.reshape(Hout * Wout, cout_p)

        # Residual branch.
        if needs_proj:
            r_in = out1
            if stride != 1:
                r_in = out1.reshape(H, W, cin_p)[::stride, ::stride, :]
                r_in = r_in.reshape(Hout * Wout, cin_p)
            res = _mm(r_in, w4_ref[...])                     # conv4 projection
        else:
            res = x                                          # identity residual

        o_ref[0] = (y + res).reshape(Hout, Wout, cout_p).astype(o_ref.dtype)

    return kernel


# ----------------------------------------------------------------------------
# Wrapper (layout glue + weight/BN folding in plain JAX)
# ----------------------------------------------------------------------------
def _bn_scale_shift(gamma, beta, mean, var):
    scale = gamma / jnp.sqrt(var + EPS)
    shift = beta - mean * scale
    return scale, shift


@functools.partial(jax.jit, static_argnames=("stride", "compute_dtype"))
def residual_bottleneck_block_nhwc(x_nhwc, params, stride=1,
                                   compute_dtype=jnp.float32):
    N, H, W, cin = x_nhwc.shape
    cout = params["conv3_w"].shape[0]
    cmid = params["conv1_w"].shape[0]
    needs_proj = (cin != cout) or (stride != 1)

    Hout = (H + 2 - 3) // stride + 1
    Wout = (W + 2 - 3) // stride + 1

    cin_p = _round_up(cin, LANE)
    cmid_p = _round_up(cmid, LANE)
    cout_p = _round_up(cout, LANE)

    # Lane-dense activations (zero-padded channels).
    x = _pad_axis(x_nhwc.astype(jnp.float32), cin_p, axis=3)

    # BN as (1, C) scale/shift rows; zeros in padded channels keep them inert.
    s1, b1 = _bn_scale_shift(params["bn1_gamma"], params["bn1_beta"],
                             params["bn1_mean"], params["bn1_var"])
    s2, b2 = _bn_scale_shift(params["bn2_gamma"], params["bn2_beta"],
                             params["bn2_mean"], params["bn2_var"])
    s3, b3 = _bn_scale_shift(params["bn3_gamma"], params["bn3_beta"],
                             params["bn3_mean"], params["bn3_var"])
    s1p = _pad_axis(s1[None, :], cin_p, 1)
    b1p = _pad_axis(b1[None, :], cin_p, 1)
    b2p = _pad_axis(b2[None, :], cmid_p, 1)
    b3p = _pad_axis(b3[None, :], cmid_p, 1)

    # Fold BN2 into conv1 weights and BN3 into conv2 weights.
    w1 = params["conv1_w"][:, :, 0, 0].T * s2[None, :]              # (Cin, Cmid)
    w1p = _pad_axis(_pad_axis(w1, cin_p, 0), cmid_p, 1).astype(compute_dtype)

    w2_taps = []
    for kh in range(3):
        for kw in range(3):
            w2_taps.append(params["conv2_w"][:, :, kh, kw].T * s3[None, :])
    w2 = jnp.stack(w2_taps, axis=0)                                 # (9,Cmid,Cmid)
    w2p = _pad_axis(_pad_axis(w2, cmid_p, 1), cmid_p, 2).astype(compute_dtype)

    w3 = params["conv3_w"][:, :, 0, 0].T                            # (Cmid, Cout)
    w3p = _pad_axis(_pad_axis(w3, cmid_p, 0), cout_p, 1).astype(compute_dtype)

    inputs = [x, s1p, b1p, w1p, b2p, w2p, b3p, w3p]
    in_specs = [
        pl.BlockSpec((1, H, W, cin_p), lambda n: (n, 0, 0, 0)),
        pl.BlockSpec((1, cin_p), lambda n: (0, 0)),
        pl.BlockSpec((1, cin_p), lambda n: (0, 0)),
        pl.BlockSpec((cin_p, cmid_p), lambda n: (0, 0)),
        pl.BlockSpec((1, cmid_p), lambda n: (0, 0)),
        pl.BlockSpec((9, cmid_p, cmid_p), lambda n: (0, 0, 0)),
        pl.BlockSpec((1, cmid_p), lambda n: (0, 0)),
        pl.BlockSpec((cmid_p, cout_p), lambda n: (0, 0)),
    ]
    if needs_proj:
        w4 = params["conv4_w"][:, :, 0, 0].T                        # (Cin, Cout)
        w4p = _pad_axis(_pad_axis(w4, cin_p, 0), cout_p, 1).astype(compute_dtype)
        inputs.append(w4p)
        in_specs.append(pl.BlockSpec((cin_p, cout_p), lambda n: (0, 0)))

    kernel = _make_block_kernel(H, W, Hout, Wout, stride, needs_proj,
                                cin_p, cmid_p, cout_p, compute_dtype)

    out = pl.pallas_call(
        kernel,
        out_shape=jax.ShapeDtypeStruct((N, Hout, Wout, cout_p), jnp.float32),
        grid=(N,),
        in_specs=in_specs,
        out_specs=pl.BlockSpec((1, Hout, Wout, cout_p), lambda n: (n, 0, 0, 0)),
        scratch_shapes=[pltpu.VMEM((H + 2, W + 2 * LEFT, cmid_p), jnp.float32)],
        compiler_params=pltpu.CompilerParams(
            dimension_semantics=("parallel",),
            vmem_limit_bytes=48 * 1024 * 1024),
    )(*inputs)

    return out[:, :, :, :cout]


def residual_bottleneck_block(x_nchw, params, stride=1,
                              compute_dtype=jnp.float32):
    # NCHW -> NHWC glue.  In a full ResNet keep activations NHWC end-to-end
    # and call residual_bottleneck_block_nhwc directly (hoists these passes).
    x = jnp.transpose(x_nchw, (0, 2, 3, 1))
    out = residual_bottleneck_block_nhwc(x, params, stride=stride,
                                         compute_dtype=compute_dtype)
    return jnp.transpose(out, (0, 3, 1, 2))


# ----------------------------------------------------------------------------
# Deterministic parameter init + pure-JAX reference
# ----------------------------------------------------------------------------
def init_params(key, cin, cout):
    cmid = cout // 4
    ks = jax.random.split(key, 16)

    def bn(k, c):
        k1, k2, k3, k4 = jax.random.split(k, 4)
        return (1.0 + 0.1 * jax.random.normal(k1, (c,), jnp.float32),
                0.1 * jax.random.normal(k2, (c,), jnp.float32),
                0.1 * jax.random.normal(k3, (c,), jnp.float32),
                0.5 + jnp.abs(jax.random.normal(k4, (c,), jnp.float32)))

    g1, b1, m1, v1 = bn(ks[0], cin)
    g2, b2, m2, v2 = bn(ks[1], cmid)
    g3, b3, m3, v3 = bn(ks[2], cmid)
    return {
        "bn1_gamma": g1, "bn1_beta": b1, "bn1_mean": m1, "bn1_var": v1,
        "bn2_gamma": g2, "bn2_beta": b2, "bn2_mean": m2, "bn2_var": v2,
        "bn3_gamma": g3, "bn3_beta": b3, "bn3_mean": m3, "bn3_var": v3,
        "conv1_w": 0.2 * jax.random.normal(ks[3], (cmid, cin, 1, 1), jnp.float32),
        "conv2_w": 0.2 * jax.random.normal(ks[4], (cmid, cmid, 3, 3), jnp.float32),
        "conv3_w": 0.2 * jax.random.normal(ks[5], (cout, cmid, 1, 1), jnp.float32),
        "conv4_w": 0.2 * jax.random.normal(ks[6], (cout, cin, 1, 1), jnp.float32),
    }


def ref_forward(x, p, stride=1):
    cin = x.shape[1]
    cout = p["conv3_w"].shape[0]

    def bn(x, g, b, m, v):
        return ((x - m[None, :, None, None])
                / jnp.sqrt(v[None, :, None, None] + EPS)
                * g[None, :, None, None] + b[None, :, None, None])

    def conv(x, w, s=1, pad=0):
        return jax.lax.conv_general_dilated(
            x, w, (s, s), [(pad, pad), (pad, pad)],
            dimension_numbers=("NCHW", "OIHW", "NCHW"))

    residual = x
    out = bn(x, p["bn1_gamma"], p["bn1_beta"], p["bn1_mean"], p["bn1_var"])
    out1 = jnp.maximum(out, 0.0)
    out = conv(out1, p["conv1_w"])
    out = jnp.maximum(bn(out, p["bn2_gamma"], p["bn2_beta"],
                         p["bn2_mean"], p["bn2_var"]), 0.0)
    out = conv(out, p["conv2_w"], s=stride, pad=1)
    out = jnp.maximum(bn(out, p["bn3_gamma"], p["bn3_beta"],
                         p["bn3_mean"], p["bn3_var"]), 0.0)
    out = conv(out, p["conv3_w"])
    if cin != cout or stride != 1:
        residual = conv(out1, p["conv4_w"], s=stride)
    return out + residual


# ----------------------------------------------------------------------------
if __name__ == "__main__":
    # Case 1: projection residual (Cin != Cout), stride 1.
    N, Cin, H, W, Cout, stride = 2, 4, 16, 16, 8, 1
    x = jax.random.normal(jax.random.PRNGKey(0), (N, Cin, H, W), jnp.float32)
    params = init_params(jax.random.PRNGKey(1), Cin, Cout)
    out = jax.block_until_ready(
        residual_bottleneck_block(x, params, stride=stride))
    ref = ref_forward(x, params, stride=stride)
    assert out.shape == ref.shape == (N, Cout, H, W)
    assert np.allclose(np.asarray(out), np.asarray(ref), atol=1e-4, rtol=1e-4)

    # Case 2: identity residual (Cin == Cout, stride 1) -> no projection
    # matmul, no out1 materialization inside the kernel.
    N2, Cin2, Cout2 = 2, 8, 8
    x2 = jax.random.normal(jax.random.PRNGKey(2), (N2, Cin2, H, W), jnp.float32)
    params2 = init_params(jax.random.PRNGKey(3), Cin2, Cout2)
    out2 = jax.block_until_ready(
        residual_bottleneck_block(x2, params2, stride=1))
    ref2 = ref_forward(x2, params2, stride=1)
    assert out2.shape == ref2.shape == (N2, Cout2, H, W)
    assert np.allclose(np.asarray(out2), np.asarray(ref2), atol=1e-4, rtol=1e-4)

    print("KERNEL_OK")
</pallas_src>

<mosaic_0001>
module attributes {stable_mosaic.version = 11 : i64} {
  func.func @kernel(%arg0: i32, %arg1: memref<1x16x16x128xf32, #tpu.memory_space<vmem>>, %arg2: memref<1x128xf32, #tpu.memory_space<vmem>>, %arg3: memref<1x128xf32, #tpu.memory_space<vmem>>, %arg4: memref<128x128xf32, #tpu.memory_space<vmem>>, %arg5: memref<1x128xf32, #tpu.memory_space<vmem>>, %arg6: memref<9x128x128xf32, #tpu.memory_space<vmem>>, %arg7: memref<1x128xf32, #tpu.memory_space<vmem>>, %arg8: memref<128x128xf32, #tpu.memory_space<vmem>>, %arg9: memref<128x128xf32, #tpu.memory_space<vmem>>, %arg10: memref<1x16x16x128xf32, #tpu.memory_space<vmem>>, %arg11: memref<18x32x128xf32, #tpu.memory_space<vmem>>) attributes {dimension_semantics = [#tpu.dimension_semantics<parallel>], iteration_bounds = array<i64: 2>, scalar_prefetch = 0 : i64, scratch_operands = 1 : i64, tpu.core_type = #tpu.core_type<tc>, window_params = [{transform_indices = @transform_0, window_bounds = array<i64: 1, 16, 16, 128>}, {pipeline_mode = #tpu.pipeline_mode<synchronous>, transform_indices = @transform_1, window_bounds = array<i64: 1, 128>}, {pipeline_mode = #tpu.pipeline_mode<synchronous>, transform_indices = @transform_2, window_bounds = array<i64: 1, 128>}, {pipeline_mode = #tpu.pipeline_mode<synchronous>, transform_indices = @transform_3, window_bounds = array<i64: 128, 128>}, {pipeline_mode = #tpu.pipeline_mode<synchronous>, transform_indices = @transform_4, window_bounds = array<i64: 1, 128>}, {pipeline_mode = #tpu.pipeline_mode<synchronous>, transform_indices = @transform_5, window_bounds = array<i64: 9, 128, 128>}, {pipeline_mode = #tpu.pipeline_mode<synchronous>, transform_indices = @transform_6, window_bounds = array<i64: 1, 128>}, {pipeline_mode = #tpu.pipeline_mode<synchronous>, transform_indices = @transform_7, window_bounds = array<i64: 128, 128>}, {pipeline_mode = #tpu.pipeline_mode<synchronous>, transform_indices = @transform_8, window_bounds = array<i64: 128, 128>}, {transform_indices = @transform_9, window_bounds = array<i64: 1, 16, 16, 128>}]} {
    %c0 = arith.constant 0 : index
    %c0_0 = arith.constant 0 : index
    %c0_1 = arith.constant 0 : index
    %c0_2 = arith.constant 0 : index
    %0 = vector.load %arg1[%c0, %c0_0, %c0_1, %c0_2] : memref<1x16x16x128xf32, #tpu.memory_space<vmem>>, vector<1x16x16x128xf32>
    %1 = vector.shape_cast %0 : vector<1x16x16x128xf32> to vector<16x16x128xf32>
    %2 = vector.shape_cast %1 : vector<16x16x128xf32> to vector<256x128xf32>
    %c0_3 = arith.constant 0 : index
    %c0_4 = arith.constant 0 : index
    %3 = vector.load %arg2[%c0_3, %c0_4] : memref<1x128xf32, #tpu.memory_space<vmem>>, vector<1x128xf32>
    %4 = vector.broadcast %3 : vector<1x128xf32> to vector<256x128xf32>
    %5 = arith.mulf %2, %4 : vector<256x128xf32>
    %c0_5 = arith.constant 0 : index
    %c0_6 = arith.constant 0 : index
    %6 = vector.load %arg3[%c0_5, %c0_6] : memref<1x128xf32, #tpu.memory_space<vmem>>, vector<1x128xf32>
    %7 = vector.broadcast %6 : vector<1x128xf32> to vector<256x128xf32>
    %8 = arith.addf %5, %7 : vector<256x128xf32>
    %cst = arith.constant 0.000000e+00 : f32
    %9 = vector.broadcast %cst : f32 to vector<256x128xf32>
    %10 = arith.maximumf %8, %9 : vector<256x128xf32>
    %c0_7 = arith.constant 0 : index
    %c0_8 = arith.constant 0 : index
    %11 = vector.load %arg4[%c0_7, %c0_8] : memref<128x128xf32, #tpu.memory_space<vmem>>, vector<128x128xf32>
    %cst_9 = arith.constant dense<0.000000e+00> : vector<256x128xf32>
    %12 = tpu.matmul %10, %11, %cst_9 {dimension_numbers = #tpu.dot_dimension_numbers<[1], [0], [0], [1], [0, 0, 1, 1], [], []>} : vector<256x128xf32>, vector<128x128xf32>, vector<256x128xf32> -> vector<256x128xf32>
    %c0_10 = arith.constant 0 : index
    %c0_11 = arith.constant 0 : index
    %13 = vector.load %arg5[%c0_10, %c0_11] : memref<1x128xf32, #tpu.memory_space<vmem>>, vector<1x128xf32>
    %14 = vector.broadcast %13 : vector<1x128xf32> to vector<256x128xf32>
    %15 = arith.addf %12, %14 : vector<256x128xf32>
    %cst_12 = arith.constant 0.000000e+00 : f32
    %16 = vector.broadcast %cst_12 : f32 to vector<256x128xf32>
    %17 = arith.maximumf %15, %16 : vector<256x128xf32>
    %cst_13 = arith.constant 0.000000e+00 : f32
    %18 = vector.broadcast %cst_13 : f32 to vector<18x32x128xf32>
    %c0_14 = arith.constant 0 : index
    %c0_15 = arith.constant 0 : index
    %c0_16 = arith.constant 0 : index
    %19 = vector.load %arg11[%c0_14, %c0_15, %c0_16] : memref<18x32x128xf32, #tpu.memory_space<vmem>>, vector<18x32x128xf32>
    tpu.vector_store %arg11[%c0_14, %c0_15, %c0_16], %18 {strides = array<i32>} : memref<18x32x128xf32, #tpu.memory_space<vmem>>, vector<18x32x128xf32>,
    %20 = vector.shape_cast %17 : vector<256x128xf32> to vector<16x16x128xf32>
    %c1 = arith.constant 1 : index
    %c8 = arith.constant 8 : index
    %c0_17 = arith.constant 0 : index
    %21 = vector.load %arg11[%c1, %c8, %c0_17] : memref<18x32x128xf32, #tpu.memory_space<vmem>>, vector<16x16x128xf32>
    tpu.vector_store %arg11[%c1, %c8, %c0_17], %20 {strides = array<i32>} : memref<18x32x128xf32, #tpu.memory_space<vmem>>, vector<16x16x128xf32>,
    %cst_18 = arith.constant 0.000000e+00 : f32
    %22 = vector.broadcast %cst_18 : f32 to vector<256x128xf32>
    %c0_19 = arith.constant 0 : index
    %c0_20 = arith.constant 0 : index
    %c0_21 = arith.constant 0 : index
    %23 = vector.load %arg11[%c0_19, %c0_20, %c0_21] : memref<18x32x128xf32, #tpu.memory_space<vmem>>, vector<16x32x128xf32>
    %24 = vector.extract_strided_slice %23 {offsets = [0, 7, 0], sizes = [16, 16, 128], strides = [1, 1, 1]} : vector<16x32x128xf32> to vector<16x16x128xf32>
    %25 = vector.shape_cast %24 : vector<16x16x128xf32> to vector<256x128xf32>
    %c0_22 = arith.constant 0 : index
    %c0_23 = arith.constant 0 : index
    %c0_24 = arith.constant 0 : index
    %26 = vector.load %arg6[%c0_22, %c0_23, %c0_24] : memref<9x128x128xf32, #tpu.memory_space<vmem>>, vector<1x128x128xf32>
    %27 = vector.shape_cast %26 : vector<1x128x128xf32> to vector<128x128xf32>
    %cst_25 = arith.constant dense<0.000000e+00> : vector<256x128xf32>
    %28 = tpu.matmul %25, %27, %cst_25 {dimension_numbers = #tpu.dot_dimension_numbers<[1], [0], [0], [1], [0, 0, 1, 1], [], []>} : vector<256x128xf32>, vector<128x128xf32>, vector<256x128xf32> -> vector<256x128xf32>
    %29 = arith.addf %22, %28 : vector<256x128xf32>
    %30 = vector.extract_strided_slice %23 {offsets = [0, 8, 0], sizes = [16, 16, 128], strides = [1, 1, 1]} : vector<16x32x128xf32> to vector<16x16x128xf32>
    %31 = vector.shape_cast %30 : vector<16x16x128xf32> to vector<256x128xf32>
    %c1_26 = arith.constant 1 : index
    %c0_27 = arith.constant 0 : index
    %c0_28 = arith.constant 0 : index
    %32 = vector.load %arg6[%c1_26, %c0_27, %c0_28] : memref<9x128x128xf32, #tpu.memory_space<vmem>>, vector<1x128x128xf32>
    %33 = vector.shape_cast %32 : vector<1x128x128xf32> to vector<128x128xf32>
    %cst_29 = arith.constant dense<0.000000e+00> : vector<256x128xf32>
    %34 = tpu.matmul %31, %33, %cst_29 {dimension_numbers = #tpu.dot_dimension_numbers<[1], [0], [0], [1], [0, 0, 1, 1], [], []>} : vector<256x128xf32>, vector<128x128xf32>, vector<256x128xf32> -> vector<256x128xf32>
    %35 = arith.addf %29, %34 : vector<256x128xf32>
    %36 = vector.extract_strided_slice %23 {offsets = [0, 9, 0], sizes = [16, 16, 128], strides = [1, 1, 1]} : vector<16x32x128xf32> to vector<16x16x128xf32>
    %37 = vector.shape_cast %36 : vector<16x16x128xf32> to vector<256x128xf32>
    %c2 = arith.constant 2 : index
    %c0_30 = arith.constant 0 : index
    %c0_31 = arith.constant 0 : index
    %38 = vector.load %arg6[%c2, %c0_30, %c0_31] : memref<9x128x128xf32, #tpu.memory_space<vmem>>, vector<1x128x128xf32>
    %39 = vector.shape_cast %38 : vector<1x128x128xf32> to vector<128x128xf32>
    %cst_32 = arith.constant dense<0.000000e+00> : vector<256x128xf32>
    %40 = tpu.matmul %37, %39, %cst_32 {dimension_numbers = #tpu.dot_dimension_numbers<[1], [0], [0], [1], [0, 0, 1, 1], [], []>} : vector<256x128xf32>, vector<128x128xf32>, vector<256x128xf32> -> vector<256x128xf32>
    %41 = arith.addf %35, %40 : vector<256x128xf32>
    %c1_33 = arith.constant 1 : index
    %c0_34 = arith.constant 0 : index
    %c0_35 = arith.constant 0 : index
    %42 = vector.load %arg11[%c1_33, %c0_34, %c0_35] : memref<18x32x128xf32, #tpu.memory_space<vmem>>, vector<16x32x128xf32>
    %43 = vector.extract_strided_slice %42 {offsets = [0, 7, 0], sizes = [16, 16, 128], strides = [1, 1, 1]} : vector<16x32x128xf32> to vector<16x16x128xf32>
    %44 = vector.shape_cast %43 : vector<16x16x128xf32> to vector<256x128xf32>
    %c3 = arith.constant 3 : index
    %c0_36 = arith.constant 0 : index
    %c0_37 = arith.constant 0 : index
    %45 = vector.load %arg6[%c3, %c0_36, %c0_37] : memref<9x128x128xf32, #tpu.memory_space<vmem>>, vector<1x128x128xf32>
    %46 = vector.shape_cast %45 : vector<1x128x128xf32> to vector<128x128xf32>
    %cst_38 = arith.constant dense<0.000000e+00> : vector<256x128xf32>
    %47 = tpu.matmul %44, %46, %cst_38 {dimension_numbers = #tpu.dot_dimension_numbers<[1], [0], [0], [1], [0, 0, 1, 1], [], []>} : vector<256x128xf32>, vector<128x128xf32>, vector<256x128xf32> -> vector<256x128xf32>
    %48 = arith.addf %41, %47 : vector<256x128xf32>
    %49 = vector.extract_strided_slice %42 {offsets = [0, 8, 0], sizes = [16, 16, 128], strides = [1, 1, 1]} : vector<16x32x128xf32> to vector<16x16x128xf32>
    %50 = vector.shape_cast %49 : vector<16x16x128xf32> to vector<256x128xf32>
    %c4 = arith.constant 4 : index
    %c0_39 = arith.constant 0 : index
    %c0_40 = arith.constant 0 : index
    %51 = vector.load %arg6[%c4, %c0_39, %c0_40] : memref<9x128x128xf32, #tpu.memory_space<vmem>>, vector<1x128x128xf32>
    %52 = vector.shape_cast %51 : vector<1x128x128xf32> to vector<128x128xf32>
    %cst_41 = arith.constant dense<0.000000e+00> : vector<256x128xf32>
    %53 = tpu.matmul %50, %52, %cst_41 {dimension_numbers = #tpu.dot_dimension_numbers<[1], [0], [0], [1], [0, 0, 1, 1], [], []>} : vector<256x128xf32>, vector<128x128xf32>, vector<256x128xf32> -> vector<256x128xf32>
    %54 = arith.addf %48, %53 : vector<256x128xf32>
    %55 = vector.extract_strided_slice %42 {offsets = [0, 9, 0], sizes = [16, 16, 128], strides = [1, 1, 1]} : vector<16x32x128xf32> to vector<16x16x128xf32>
    %56 = vector.shape_cast %55 : vector<16x16x128xf32> to vector<256x128xf32>
    %c5 = arith.constant 5 : index
    %c0_42 = arith.constant 0 : index
    %c0_43 = arith.constant 0 : index
    %57 = vector.load %arg6[%c5, %c0_42, %c0_43] : memref<9x128x128xf32, #tpu.memory_space<vmem>>, vector<1x128x128xf32>
    %58 = vector.shape_cast %57 : vector<1x128x128xf32> to vector<128x128xf32>
    %cst_44 = arith.constant dense<0.000000e+00> : vector<256x128xf32>
    %59 = tpu.matmul %56, %58, %cst_44 {dimension_numbers = #tpu.dot_dimension_numbers<[1], [0], [0], [1], [0, 0, 1, 1], [], []>} : vector<256x128xf32>, vector<128x128xf32>, vector<256x128xf32> -> vector<256x128xf32>
    %60 = arith.addf %54, %59 : vector<256x128xf32>
    %c2_45 = arith.constant 2 : index
    %c0_46 = arith.constant 0 : index
    %c0_47 = arith.constant 0 : index
    %61 = vector.load %arg11[%c2_45, %c0_46, %c0_47] : memref<18x32x128xf32, #tpu.memory_space<vmem>>, vector<16x32x128xf32>
    %62 = vector.extract_strided_slice %61 {offsets = [0, 7, 0], sizes = [16, 16, 128], strides = [1, 1, 1]} : vector<16x32x128xf32> to vector<16x16x128xf32>
    %63 = vector.shape_cast %62 : vector<16x16x128xf32> to vector<256x128xf32>
    %c6 = arith.constant 6 : index
    %c0_48 = arith.constant 0 : index
    %c0_49 = arith.constant 0 : index
    %64 = vector.load %arg6[%c6, %c0_48, %c0_49] : memref<9x128x128xf32, #tpu.memory_space<vmem>>, vector<1x128x128xf32>
    %65 = vector.shape_cast %64 : vector<1x128x128xf32> to vector<128x128xf32>
    %cst_50 = arith.constant dense<0.000000e+00> : vector<256x128xf32>
    %66 = tpu.matmul %63, %65, %cst_50 {dimension_numbers = #tpu.dot_dimension_numbers<[1], [0], [0], [1], [0, 0, 1, 1], [], []>} : vector<256x128xf32>, vector<128x128xf32>, vector<256x128xf32> -> vector<256x128xf32>
    %67 = arith.addf %60, %66 : vector<256x128xf32>
    %68 = vector.extract_strided_slice %61 {offsets = [0, 8, 0], sizes = [16, 16, 128], strides = [1, 1, 1]} : vector<16x32x128xf32> to vector<16x16x128xf32>
    %69 = vector.shape_cast %68 : vector<16x16x128xf32> to vector<256x128xf32>
    %c7 = arith.constant 7 : index
    %c0_51 = arith.constant 0 : index
    %c0_52 = arith.constant 0 : index
    %70 = vector.load %arg6[%c7, %c0_51, %c0_52] : memref<9x128x128xf32, #tpu.memory_space<vmem>>, vector<1x128x128xf32>
    %71 = vector.shape_cast %70 : vector<1x128x128xf32> to vector<128x128xf32>
    %cst_53 = arith.constant dense<0.000000e+00> : vector<256x128xf32>
    %72 = tpu.matmul %69, %71, %cst_53 {dimension_numbers = #tpu.dot_dimension_numbers<[1], [0], [0], [1], [0, 0, 1, 1], [], []>} : vector<256x128xf32>, vector<128x128xf32>, vector<256x128xf32> -> vector<256x128xf32>
    %73 = arith.addf %67, %72 : vector<256x128xf32>
    %74 = vector.extract_strided_slice %61 {offsets = [0, 9, 0], sizes = [16, 16, 128], strides = [1, 1, 1]} : vector<16x32x128xf32> to vector<16x16x128xf32>
    %75 = vector.shape_cast %74 : vector<16x16x128xf32> to vector<256x128xf32>
    %c8_54 = arith.constant 8 : index
    %c0_55 = arith.constant 0 : index
    %c0_56 = arith.constant 0 : index
    %76 = vector.load %arg6[%c8_54, %c0_55, %c0_56] : memref<9x128x128xf32, #tpu.memory_space<vmem>>, vector<1x128x128xf32>
    %77 = vector.shape_cast %76 : vector<1x128x128xf32> to vector<128x128xf32>
    %cst_57 = arith.constant dense<0.000000e+00> : vector<256x128xf32>
    %78 = tpu.matmul %75, %77, %cst_57 {dimension_numbers = #tpu.dot_dimension_numbers<[1], [0], [0], [1], [0, 0, 1, 1], [], []>} : vector<256x128xf32>, vector<128x128xf32>, vector<256x128xf32> -> vector<256x128xf32>
    %79 = arith.addf %73, %78 : vector<256x128xf32>
    %c0_58 = arith.constant 0 : index
    %c0_59 = arith.constant 0 : index
    %80 = vector.load %arg7[%c0_58, %c0_59] : memref<1x128xf32, #tpu.memory_space<vmem>>, vector<1x128xf32>
    %81 = vector.broadcast %80 : vector<1x128xf32> to vector<256x128xf32>
    %82 = arith.addf %79, %81 : vector<256x128xf32>
    %cst_60 = arith.constant 0.000000e+00 : f32
    %83 = vector.broadcast %cst_60 : f32 to vector<256x128xf32>
    %84 = arith.maximumf %82, %83 : vector<256x128xf32>
    %c0_61 = arith.constant 0 : index
    %c0_62 = arith.constant 0 : index
    %85 = vector.load %arg8[%c0_61, %c0_62] : memref<128x128xf32, #tpu.memory_space<vmem>>, vector<128x128xf32>
    %cst_63 = arith.constant dense<0.000000e+00> : vector<256x128xf32>
    %86 = tpu.matmul %84, %85, %cst_63 {dimension_numbers = #tpu.dot_dimension_numbers<[1], [0], [0], [1], [0, 0, 1, 1], [], []>} : vector<256x128xf32>, vector<128x128xf32>, vector<256x128xf32> -> vector<256x128xf32>
    %c0_64 = arith.constant 0 : index
    %c0_65 = arith.constant 0 : index
    %87 = vector.load %arg9[%c0_64, %c0_65] : memref<128x128xf32, #tpu.memory_space<vmem>>, vector<128x128xf32>
    %cst_66 = arith.constant dense<0.000000e+00> : vector<256x128xf32>
    %88 = tpu.matmul %10, %87, %cst_66 {dimension_numbers = #tpu.dot_dimension_numbers<[1], [0], [0], [1], [0, 0, 1, 1], [], []>} : vector<256x128xf32>, vector<128x128xf32>, vector<256x128xf32> -> vector<256x128xf32>
    %89 = arith.addf %86, %88 : vector<256x128xf32>
    %90 = vector.shape_cast %89 : vector<256x128xf32> to vector<16x16x128xf32>
    %c0_67 = arith.constant 0 : index
    %c0_68 = arith.constant 0 : index
    %c0_69 = arith.constant 0 : index
    %c0_70 = arith.constant 0 : index
    %91 = vector.load %arg10[%c0_67, %c0_68, %c0_69, %c0_70] : memref<1x16x16x128xf32, #tpu.memory_space<vmem>>, vector<1x16x16x128xf32>
    %92 = vector.shape_cast %91 : vector<1x16x16x128xf32> to vector<16x16x128xf32>
    %93 = vector.shape_cast %90 : vector<16x16x128xf32> to vector<1x16x16x128xf32>
    tpu.vector_store %arg10[%c0_67, %c0_68, %c0_69, %c0_70], %93 {strides = array<i32>} : memref<1x16x16x128xf32, #tpu.memory_space<vmem>>, vector<1x16x16x128xf32>,
    return
  }
  func.func @transform_0(%arg0: i32) -> (i32, i32, i32, i32) {
    %c0_i32 = arith.constant 0 : i32
    %c0_i32_0 = arith.constant 0 : i32
    %c0_i32_1 = arith.constant 0 : i32
    %c0_i32_2 = arith.constant 0 : i32
    return %arg0, %c0_i32, %c0_i32_0, %c0_i32_1 : i32, i32, i32, i32
  }
  func.func @transform_1(%arg0: i32) -> (i32, i32) {
    %c0_i32 = arith.constant 0 : i32
    %c0_i32_0 = arith.constant 0 : i32
    %c0_i32_1 = arith.constant 0 : i32
    return %c0_i32, %c0_i32_0 : i32, i32
  }
  func.func @transform_2(%arg0: i32) -> (i32, i32) {
    %c0_i32 = arith.constant 0 : i32
    %c0_i32_0 = arith.constant 0 : i32
    %c0_i32_1 = arith.constant 0 : i32
    return %c0_i32, %c0_i32_0 : i32, i32
  }
  func.func @transform_3(%arg0: i32) -> (i32, i32) {
    %c0_i32 = arith.constant 0 : i32
    %c0_i32_0 = arith.constant 0 : i32
    %c0_i32_1 = arith.constant 0 : i32
    return %c0_i32, %c0_i32_0 : i32, i32
  }
  func.func @transform_4(%arg0: i32) -> (i32, i32) {
    %c0_i32 = arith.constant 0 : i32
    %c0_i32_0 = arith.constant 0 : i32
    %c0_i32_1 = arith.constant 0 : i32
    return %c0_i32, %c0_i32_0 : i32, i32
  }
  func.func @transform_5(%arg0: i32) -> (i32, i32, i32) {
    %c0_i32 = arith.constant 0 : i32
    %c0_i32_0 = arith.constant 0 : i32
    %c0_i32_1 = arith.constant 0 : i32
    %c0_i32_2 = arith.constant 0 : i32
    return %c0_i32, %c0_i32_0, %c0_i32_1 : i32, i32, i32
  }
  func.func @transform_6(%arg0: i32) -> (i32, i32) {
    %c0_i32 = arith.constant 0 : i32
    %c0_i32_0 = arith.constant 0 : i32
    %c0_i32_1 = arith.constant 0 : i32
    return %c0_i32, %c0_i32_0 : i32, i32
  }
  func.func @transform_7(%arg0: i32) -> (i32, i32) {
    %c0_i32 = arith.constant 0 : i32
    %c0_i32_0 = arith.constant 0 : i32
    %c0_i32_1 = arith.constant 0 : i32
    return %c0_i32, %c0_i32_0 : i32, i32
  }
  func.func @transform_8(%arg0: i32) -> (i32, i32) {
    %c0_i32 = arith.constant 0 : i32
    %c0_i32_0 = arith.constant 0 : i32
    %c0_i32_1 = arith.constant 0 : i32
    return %c0_i32, %c0_i32_0 : i32, i32
  }
  func.func @transform_9(%arg0: i32) -> (i32, i32, i32, i32) {
    %c0_i32 = arith.constant 0 : i32
    %c0_i32_0 = arith.constant 0 : i32
    %c0_i32_1 = arith.constant 0 : i32
    %c0_i32_2 = arith.constant 0 : i32
    return %arg0, %c0_i32, %c0_i32_0, %c0_i32_1 : i32, i32, i32, i32
  }
}

</mosaic_0001>

<llo_original>
// kernel: residual_bottleneck_block_nhwc.1
$region0: #{residual_bottleneck_block_nhwc.1}
  #allocation0 [shape = 'u32[]', space=smem, size = 0x4, offset = 0x4, fixed_abs, tag = 'smem constant byte address 0x4 - core index']
  #allocation1 [shape = 'u32[72,128]{1,0:T(1,128)}', space=vmem, size = 0x9000, scoped, tag = 'internal scratch']
  #allocation2 [shape = 'f32[18,32,128]{2,1,0:T(8,128)}', space=vmem, size = 0x48000, scoped, tag = 'scratch operand']
  %s0 = inlined_call_operand.vmem [shape: f32[2,16,16,128], index: 0, kind: input, shape index: {}]
  %s1 = inlined_call_operand.vmem [shape: f32[1,128], index: 1, kind: input, shape index: {}]
  %s2 = inlined_call_operand.vmem [shape: f32[1,128], index: 2, kind: input, shape index: {}]
  %s3 = inlined_call_operand.vmem [shape: f32[128,128], index: 3, kind: input, shape index: {}]
  %s4 = inlined_call_operand.vmem [shape: f32[1,128], index: 4, kind: input, shape index: {}]
  %s5 = inlined_call_operand.vmem [shape: f32[9,128,128], index: 5, kind: input, shape index: {}]
  %s6 = inlined_call_operand.vmem [shape: f32[1,128], index: 6, kind: input, shape index: {}]
  %s7 = inlined_call_operand.vmem [shape: f32[128,128], index: 7, kind: input, shape index: {}]
  %s8 = inlined_call_operand.vmem [shape: f32[128,128], index: 8, kind: input, shape index: {}]
  %s9 = inlined_call_operand.vmem [shape: f32[2,16,16,128], index: 9, kind: output, shape index: {}]
  %s10 = sld [smem:[#allocation0]]
  $region69: #{residual_bottleneck_block_nhwc.1} parent=0
    _
  %s12 = ssub.s32 1, %s10
  %s13 = scalar_select 0, %s12, %s10
  loop: start=0, step=1, limit=4
  $region2: #{residual_bottleneck_block_nhwc.1} parent=0 // loop_pre_header
    _
  $region3: #{residual_bottleneck_block_nhwc.1} parent=0 // loop_header
    %s15 = sphi 0, %s19
    %p16 = scmp.ge.s32.totalorder %s15, 4
    %s25 = sphi 0, %s27
    %s28 = sphi 0, %s25
    %s29 = sphi 0, %s28
    %s45 = sphi 0, %s29
    %s49 = sphi 0, %s49
    %s51 = sphi 0, %s49
    %s52 = sphi 0, %s51
    %s66 = sphi 0, %s52
    %s70 = sphi 0, %s70
    %s72 = sphi 0, %s70
    %s73 = sphi 0, %s72
    %s87 = sphi 0, %s73
    %s91 = sphi 0, %s91
    %s93 = sphi 0, %s91
    %s94 = sphi 0, %s93
    %s108 = sphi 0, %s94
    %s112 = sphi 0, %s112
    %s114 = sphi 0, %s112
    %s115 = sphi 0, %s114
    %s129 = sphi 0, %s115
    %s133 = sphi 0, %s133
    %s135 = sphi 0, %s133
    %s136 = sphi 0, %s135
    %s150 = sphi 0, %s136
    %s154 = sphi 0, %s154
    %s156 = sphi 0, %s154
    %s157 = sphi 0, %s156
    %s171 = sphi 0, %s157
    %s175 = sphi 0, %s175
    %s177 = sphi 0, %s175
    %s178 = sphi 0, %s177
    %s192 = sphi 0, %s178
    %s196 = sphi 0, %s196
    %s198 = sphi 0, %s196
    %s199 = sphi 0, %s198
    %s213 = sphi 0, %s199
    %s219 = sphi 0, %s221
    %s222 = sphi 0, %s219
    %s223 = sphi 0, %s222
    %s239 = sphi 0, %s223
  $region4: #{residual_bottleneck_block_nhwc.1} parent=0 // loop_header_branch
    %18 = sbr.rel (%p16) target = $region8
  $region5: #{residual_bottleneck_block_nhwc.1} parent=0 // loop_body
    %s20 = ssub.s32 %s15, 1
    %s21 = ssub.s32 %s15, 2
    %s22 = sadd.s32 %s15, 1
    %s23 = ssub.s32 %s15, %s22
    %p24 = scmp.eq.s32.totalorder %s23, 0
    %s26 = sadd.s32 %s25, 1
    %s27 = scalar_select %p24, %s25, %s26
    %p30 = pneg %p24
    %p31 = scmp.eq.s32.totalorder %s15, 1
    %p32 = por %p30, %p31
    %p33 = scmp.ne.s32.totalorder %s25, %s28
    %p34 = scmp.eq.s32.totalorder %s15, 0
    %p35 = por %p33, %p34
    %p36 = scmp.ne.s32.totalorder %s25, %s28
    %p37 = scmp.eq.s32.totalorder %s20, 1
    %p38 = por %p36, %p37
    %p39 = scmp.ne.s32.totalorder %s28, %s29
    %p40 = scmp.eq.s32.totalorder %s20, 0
    %p41 = por %p39, %p40
    %p42 = scmp.ne.s32.totalorder %s28, %s29
    %p43 = scmp.eq.s32.totalorder %s21, 1
    %p44 = por %p42, %p43
    %p46 = scmp.ne.s32.totalorder %s29, %s45
    %p47 = scmp.eq.s32.totalorder %s21, 0
    %p48 = por %p46, %p47
    %s50 = sadd.s32 %s49, 1
    %p53 = scmp.eq.s32.totalorder %s15, 1
    %p54 = scmp.ne.s32.totalorder %s49, %s51
    %p55 = scmp.eq.s32.totalorder %s15, 0
    %p56 = por %p54, %p55
    %p57 = scmp.ne.s32.totalorder %s49, %s51
    %p58 = scmp.eq.s32.totalorder %s20, 1
    %p59 = por %p57, %p58
    %p60 = scmp.ne.s32.totalorder %s51, %s52
    %p61 = scmp.eq.s32.totalorder %s20, 0
    %p62 = por %p60, %p61
    %p63 = scmp.ne.s32.totalorder %s51, %s52
    %p64 = scmp.eq.s32.totalorder %s21, 1
    %p65 = por %p63, %p64
    %p67 = scmp.ne.s32.totalorder %s52, %s66
    %p68 = scmp.eq.s32.totalorder %s21, 0
    %p69 = por %p67, %p68
    %s71 = sadd.s32 %s70, 1
    %p74 = scmp.eq.s32.totalorder %s15, 1
    %p75 = scmp.ne.s32.totalorder %s70, %s72
    %p76 = scmp.eq.s32.totalorder %s15, 0
    %p77 = por %p75, %p76
    %p78 = scmp.ne.s32.totalorder %s70, %s72
    %p79 = scmp.eq.s32.totalorder %s20, 1
    %p80 = por %p78, %p79
    %p81 = scmp.ne.s32.totalorder %s72, %s73
    %p82 = scmp.eq.s32.totalorder %s20, 0
    %p83 = por %p81, %p82
    %p84 = scmp.ne.s32.totalorder %s72, %s73
    %p85 = scmp.eq.s32.totalorder %s21, 1
    %p86 = por %p84, %p85
    %p88 = scmp.ne.s32.totalorder %s73, %s87
    %p89 = scmp.eq.s32.totalorder %s21, 0
    %p90 = por %p88, %p89
    %s92 = sadd.s32 %s91, 1
    %p95 = scmp.eq.s32.totalorder %s15, 1
    %p96 = scmp.ne.s32.totalorder %s91, %s93
    %p97 = scmp.eq.s32.totalorder %s15, 0
    %p98 = por %p96, %p97
    %p99 = scmp.ne.s32.totalorder %s91, %s93
    %p100 = scmp.eq.s32.totalorder %s20, 1
    %p101 = por %p99, %p100
    %p102 = scmp.ne.s32.totalorder %s93, %s94
    %p103 = scmp.eq.s32.totalorder %s20, 0
    %p104 = por %p102, %p103
    %p105 = scmp.ne.s32.totalorder %s93, %s94
    %p106 = scmp.eq.s32.totalorder %s21, 1
    %p107 = por %p105, %p106
    %p109 = scmp.ne.s32.totalorder %s94, %s108
    %p110 = scmp.eq.s32.totalorder %s21, 0
    %p111 = por %p109, %p110
    %s113 = sadd.s32 %s112, 1
    %p116 = scmp.eq.s32.totalorder %s15, 1
    %p117 = scmp.ne.s32.totalorder %s112, %s114
    %p118 = scmp.eq.s32.totalorder %s15, 0
    %p119 = por %p117, %p118
    %p120 = scmp.ne.s32.totalorder %s112, %s114
    %p121 = scmp.eq.s32.totalorder %s20, 1
    %p122 = por %p120, %p121
    %p123 = scmp.ne.s32.totalorder %s114, %s115
    %p124 = scmp.eq.s32.totalorder %s20, 0
    %p125 = por %p123, %p124
    %p126 = scmp.ne.s32.totalorder %s114, %s115
    %p127 = scmp.eq.s32.totalorder %s21, 1
    %p128 = por %p126, %p127
    %p130 = scmp.ne.s32.totalorder %s115, %s129
    %p131 = scmp.eq.s32.totalorder %s21, 0
    %p132 = por %p130, %p131
    %s134 = sadd.s32 %s133, 1
    %p137 = scmp.eq.s32.totalorder %s15, 1
    %p138 = scmp.ne.s32.totalorder %s133, %s135
    %p139 = scmp.eq.s32.totalorder %s15, 0
    %p140 = por %p138, %p139
    %p141 = scmp.ne.s32.totalorder %s133, %s135
    %p142 = scmp.eq.s32.totalorder %s20, 1
    %p143 = por %p141, %p142
    %p144 = scmp.ne.s32.totalorder %s135, %s136
    %p145 = scmp.eq.s32.totalorder %s20, 0
    %p146 = por %p144, %p145
    %p147 = scmp.ne.s32.totalorder %s135, %s136
    %p148 = scmp.eq.s32.totalorder %s21, 1
    %p149 = por %p147, %p148
    %p151 = scmp.ne.s32.totalorder %s136, %s150
    %p152 = scmp.eq.s32.totalorder %s21, 0
    %p153 = por %p151, %p152
    %s155 = sadd.s32 %s154, 1
    %p158 = scmp.eq.s32.totalorder %s15, 1
    %p159 = scmp.ne.s32.totalorder %s154, %s156
    %p160 = scmp.eq.s32.totalorder %s15, 0
    %p161 = por %p159, %p160
    %p162 = scmp.ne.s32.totalorder %s154, %s156
    %p163 = scmp.eq.s32.totalorder %s20, 1
    %p164 = por %p162, %p163
    %p165 = scmp.ne.s32.totalorder %s156, %s157
    %p166 = scmp.eq.s32.totalorder %s20, 0
    %p167 = por %p165, %p166
    %p168 = scmp.ne.s32.totalorder %s156, %s157
    %p169 = scmp.eq.s32.totalorder %s21, 1
    %p170 = por %p168, %p169
    %p172 = scmp.ne.s32.totalorder %s157, %s171
    %p173 = scmp.eq.s32.totalorder %s21, 0
    %p174 = por %p172, %p173
    %s176 = sadd.s32 %s175, 1
    %p179 = scmp.eq.s32.totalorder %s15, 1
    %p180 = scmp.ne.s32.totalorder %s175, %s177
    %p181 = scmp.eq.s32.totalorder %s15, 0
    %p182 = por %p180, %p181
    %p183 = scmp.ne.s32.totalorder %s175, %s177
    %p184 = scmp.eq.s32.totalorder %s20, 1
    %p185 = por %p183, %p184
    %p186 = scmp.ne.s32.totalorder %s177, %s178
    %p187 = scmp.eq.s32.totalorder %s20, 0
    %p188 = por %p186, %p187
    %p189 = scmp.ne.s32.totalorder %s177, %s178
    %p190 = scmp.eq.s32.totalorder %s21, 1
    %p191 = por %p189, %p190
    %p193 = scmp.ne.s32.totalorder %s178, %s192
    %p194 = scmp.eq.s32.totalorder %s21, 0
    %p195 = por %p193, %p194
    %s197 = sadd.s32 %s196, 1
    %p200 = scmp.eq.s32.totalorder %s15, 1
    %p201 = scmp.ne.s32.totalorder %s196, %s198
    %p202 = scmp.eq.s32.totalorder %s15, 0
    %p203 = por %p201, %p202
    %p204 = scmp.ne.s32.totalorder %s196, %s198
    %p205 = scmp.eq.s32.totalorder %s20, 1
    %p206 = por %p204, %p205
    %p207 = scmp.ne.s32.totalorder %s198, %s199
    %p208 = scmp.eq.s32.totalorder %s20, 0
    %p209 = por %p207, %p208
    %p210 = scmp.ne.s32.totalorder %s198, %s199
    %p211 = scmp.eq.s32.totalorder %s21, 1
    %p212 = por %p210, %p211
    %p214 = scmp.ne.s32.totalorder %s199, %s213
    %p215 = scmp.eq.s32.totalorder %s21, 0
    %p216 = por %p214, %p215
    %s217 = ssub.s32 %s15, %s22
    %p218 = scmp.eq.s32.totalorder %s217, 0
    %s220 = sadd.s32 %s219, 1
    %s221 = scalar_select %p218, %s219, %s220
    %p224 = pneg %p218
    %p225 = scmp.eq.s32.totalorder %s15, 1
    %p226 = por %p224, %p225
    %p227 = scmp.ne.s32.totalorder %s219, %s222
    %p228 = scmp.eq.s32.totalorder %s15, 0
    %p229 = por %p227, %p228
    %p230 = scmp.ne.s32.totalorder %s219, %s222
    %p231 = scmp.eq.s32.totalorder %s20, 1
    %p232 = por %p230, %p231
    %p233 = scmp.ne.s32.totalorder %s222, %s223
    %p234 = scmp.eq.s32.totalorder %s20, 0
    %p235 = por %p233, %p234
    %p236 = scmp.ne.s32.totalorder %s222, %s223
    %p237 = scmp.eq.s32.totalorder %s21, 1
    %p238 = por %p236, %p237
    %p240 = scmp.ne.s32.totalorder %s223, %s239
    %p241 = scmp.eq.s32.totalorder %s21, 0
    %p242 = por %p240, %p241
    %p243 = scmp.le.s32.totalorder 1, %s15
    %p244 = scmp.lt.s32.totalorder %s15, 3
    %p245 = pnand %p243, %p244
    %p246 = pneg %p245
    // Predicated region
    $region9: #{residual_bottleneck_block_nhwc.1} parent=5 // pred_check
      _
    $region10: #{residual_bottleneck_block_nhwc.1} parent=5 // pred_check_branch
      %248 = sbr.rel (%p245) target = $region12
    $region11: #{residual_bottleneck_block_nhwc.1} parent=5 // pred_region
      %s249 = ssub.s32 %s15, 1
      // Predicated region
      $region13: #{residual_bottleneck_block_nhwc.1} parent=11 // pred_check
        %p250 = pneg %p62
      $region14: #{residual_bottleneck_block_nhwc.1} parent=11 // pred_check_branch
        %252 = sbr.rel (%p250) target = $region16
      $region15: #{residual_bottleneck_block_nhwc.1} parent=11 // pred_region
        _
      $region16: #{residual_bottleneck_block_nhwc.1} parent=11 // pred_fallthru
        _
      // Predicated region
      $region17: #{residual_bottleneck_block_nhwc.1} parent=11 // pred_check
        %p253 = pneg %p83
      $region18: #{residual_bottleneck_block_nhwc.1} parent=11 // pred_check_branch
        %255 = sbr.rel (%p253) target = $region20
      $region19: #{residual_bottleneck_block_nhwc.1} parent=11 // pred_region
        _
      $region20: #{residual_bottleneck_block_nhwc.1} parent=11 // pred_fallthru
        _
      // Predicated region
      $region21: #{residual_bottleneck_block_nhwc.1} parent=11 // pred_check
        %p256 = pneg %p104
      $region22: #{residual_bottleneck_block_nhwc.1} parent=11 // pred_check_branch
        %258 = sbr.rel (%p256) target = $region24
      $region23: #{residual_bottleneck_block_nhwc.1} parent=11 // pred_region
        _
      $region24: #{residual_bottleneck_block_nhwc.1} parent=11 // pred_fallthru
        _
      // Predicated region
      $region25: #{residual_bottleneck_block_nhwc.1} parent=11 // pred_check
        %p259 = pneg %p125
      $region26: #{residual_bottleneck_block_nhwc.1} parent=11 // pred_check_branch
        %261 = sbr.rel (%p259) target = $region28
      $region27: #{residual_bottleneck_block_nhwc.1} parent=11 // pred_region
        _
      $region28: #{residual_bottleneck_block_nhwc.1} parent=11 // pred_fallthru
        _
      // Predicated region
      $region29: #{residual_bottleneck_block_nhwc.1} parent=11 // pred_check
        %p262 = pneg %p146
      $region30: #{residual_bottleneck_block_nhwc.1} parent=11 // pred_check_branch
        %264 = sbr.rel (%p262) target = $region32
      $region31: #{residual_bottleneck_block_nhwc.1} parent=11 // pred_region
        _
      $region32: #{residual_bottleneck_block_nhwc.1} parent=11 // pred_fallthru
        _
      // Predicated region
      $region33: #{residual_bottleneck_block_nhwc.1} parent=11 // pred_check
        %p265 = pneg %p167
      $region34: #{residual_bottleneck_block_nhwc.1} parent=11 // pred_check_branch
        %267 = sbr.rel (%p265) target = $region36
      $region35: #{residual_bottleneck_block_nhwc.1} parent=11 // pred_region
        _
      $region36: #{residual_bottleneck_block_nhwc.1} parent=11 // pred_fallthru
        _
      // Predicated region
      $region37: #{residual_bottleneck_block_nhwc.1} parent=11 // pred_check
        %p268 = pneg %p188
      $region38: #{residual_bottleneck_block_nhwc.1} parent=11 // pred_check_branch
        %270 = sbr.rel (%p268) target = $region40
      $region39: #{residual_bottleneck_block_nhwc.1} parent=11 // pred_region
        _
      $region40: #{residual_bottleneck_block_nhwc.1} parent=11 // pred_fallthru
        _
      // Predicated region
      $region41: #{residual_bottleneck_block_nhwc.1} parent=11 // pred_check
        %p271 = pneg %p209
      $region42: #{residual_bottleneck_block_nhwc.1} parent=11 // pred_check_branch
        %273 = sbr.rel (%p271) target = $region44
      $region43: #{residual_bottleneck_block_nhwc.1} parent=11 // pred_region
        _
      $region44: #{residual_bottleneck_block_nhwc.1} parent=11 // pred_fallthru
        _
    $region12: #{residual_bottleneck_block_nhwc.1} parent=5 // pred_fallthru
      _
    %p274 = scmp.lt.s32.totalorder %s15, 2
    // Predicated region
    $region45: #{residual_bottleneck_block_nhwc.1} parent=5 // pred_check
      %p275 = pneg %p274
    $region46: #{residual_bottleneck_block_nhwc.1} parent=5 // pred_check_branch
      %277 = sbr.rel (%p275) target = $region48
    $region47: #{residual_bottleneck_block_nhwc.1} parent=5 // pred_region
      // Predicated region
      $region49: #{residual_bottleneck_block_nhwc.1} parent=47 // pred_check
        %p278 = pneg %p35
      $region50: #{residual_bottleneck_block_nhwc.1} parent=47 // pred_check_branch
        %280 = sbr.rel (%p278) target = $region52
      $region51: #{residual_bottleneck_block_nhwc.1} parent=47 // pred_region
        %p281 = scmp.lt.s32.totalorder %s15, 1
        %s282 = scalar_select %p281, %s15, 1
        %s283 = smul.addr %s282, 32
        %s284 = smul.addr %s283, 8
        %s285 = scalar_lea.vmem %s0, %s284
      $region52: #{residual_bottleneck_block_nhwc.1} parent=47 // pred_fallthru
        _
    $region48: #{residual_bottleneck_block_nhwc.1} parent=5 // pred_fallthru
      _
    %p286 = scmp.le.s32.totalorder 1, %s15
    %p287 = scmp.lt.s32.totalorder %s15, 3
    %p288 = pnand %p286, %p287
    %p289 = pneg %p288
    // Predicated region
    $region53: #{residual_bottleneck_block_nhwc.1} parent=5 // pred_check
      _
    $region54: #{residual_bottleneck_block_nhwc.1} parent=5 // pred_check_branch
      %291 = sbr.rel (%p288) target = $region56
    $region55: #{residual_bottleneck_block_nhwc.1} parent=5 // pred_region
      %s292 = ssub.s32 %s15, 1
      %p293 = scmp.lt.s32.totalorder %s20, 1
      %s294 = scalar_select %p293, %s20, 1
      %s295 = smul.addr %s294, 32
      %s296 = smul.addr %s295, 8
      %s297 = scalar_lea.vmem %s0, %s296
      %p298 = pneg %p41
      %p299 = pneg %p38
      %p300 = pneg %p62
      %p301 = pneg %p59
      %p302 = pneg %p83
      %p303 = pneg %p80
      %p304 = pneg %p104
      %p305 = pneg %p101
      %p306 = pneg %p125
      %p307 = pneg %p122
      %p308 = pneg %p146
      %p309 = pneg %p143
      %p310 = pneg %p167
      %p311 = pneg %p164
      %p312 = pneg %p188
      %p313 = pneg %p185
      %p314 = pneg %p209
      %p315 = pneg %p206
      %p316 = pneg %p235
      %p317 = pneg %p232
      %p318 = scmp.lt.s32.totalorder %s20, 1
      %s319 = scalar_select %p318, %s20, 1
      %s320 = smul.addr %s319, 32
      %s321 = smul.addr %s320, 8
      %s322 = scalar_lea.vmem %s9, %s321
      %p323 = scmp.lt.s32.totalorder %s20, 1
      %s324 = scalar_select %p323, %s20, 1
      %s325 = smul.addr %s324, 32
      %s326 = smul.addr %s325, 8
      %s327 = scalar_lea.vmem %s0, %s326
      %p328 = scmp.lt.s32.totalorder %s20, 1
      %s329 = scalar_select %p328, %s20, 1
      %s330 = smul.addr %s329, 32
      %s331 = smul.addr %s330, 8
      %s332 = scalar_lea.vmem %s9, %s331
      %v333 = vld [vmem:[%s327] sm:$0xff]
      %v334 = vld [vmem:[%s327 + $0x8] sm:$0xff]
      %v335 = vld [vmem:[%s327 + $0x10] sm:$0xff]
      %v336 = vld [vmem:[%s327 + $0x18] sm:$0xff]
      %v337 = vld [vmem:[%s327 + $0x20] sm:$0xff]
      %v338 = vld [vmem:[%s327 + $0x28] sm:$0xff]
      %v339 = vld [vmem:[%s327 + $0x30] sm:$0xff]
      %v340 = vld [vmem:[%s327 + $0x38] sm:$0xff]
      %v341 = vld [vmem:[%s327 + $0x40] sm:$0xff]
      %v342 = vld [vmem:[%s327 + $0x48] sm:$0xff]
      %v343 = vld [vmem:[%s327 + $0x50] sm:$0xff]
      %v344 = vld [vmem:[%s327 + $0x58] sm:$0xff]
      %v345 = vld [vmem:[%s327 + $0x60] sm:$0xff]
      %v346 = vld [vmem:[%s327 + $0x68] sm:$0xff]
      %v347 = vld [vmem:[%s327 + $0x70] sm:$0xff]
      %v348 = vld [vmem:[%s327 + $0x78] sm:$0xff]
      %v349 = vld [vmem:[%s327 + $0x80] sm:$0xff]
      %v350 = vld [vmem:[%s327 + $0x88] sm:$0xff]
      %v351 = vld [vmem:[%s327 + $0x90] sm:$0xff]
      %v352 = vld [vmem:[%s327 + $0x98] sm:$0xff]
      %v353 = vld [vmem:[%s327 + $0xa0] sm:$0xff]
      %v354 = vld [vmem:[%s327 + $0xa8] sm:$0xff]
      %v355 = vld [vmem:[%s327 + $0xb0] sm:$0xff]
      %v356 = vld [vmem:[%s327 + $0xb8] sm:$0xff]
      %v357 = vld [vmem:[%s327 + $0xc0] sm:$0xff]
      %v358 = vld [vmem:[%s327 + $0xc8] sm:$0xff]
      %v359 = vld [vmem:[%s327 + $0xd0] sm:$0xff]
      %v360 = vld [vmem:[%s327 + $0xd8] sm:$0xff]
      %v361 = vld [vmem:[%s327 + $0xe0] sm:$0xff]
      %v362 = vld [vmem:[%s327 + $0xe8] sm:$0xff]
      %v363 = vld [vmem:[%s327 + $0xf0] sm:$0xff]
      %v364 = vld [vmem:[%s327 + $0xf8] sm:$0xff]
      %v365 = vld [vmem:[%s1] sm:$0x1]
      %v367 = vperm.slane %v365, 0
      %v369 = vmul.f32 %v333, %v367
      %v370 = vmul.f32 %v334, %v367
      %v371 = vmul.f32 %v335, %v367
      %v372 = vmul.f32 %v336, %v367
      %v373 = vmul.f32 %v337, %v367
      %v374 = vmul.f32 %v338, %v367
      %v375 = vmul.f32 %v339, %v367
      %v376 = vmul.f32 %v340, %v367
      %v377 = vmul.f32 %v341, %v367
      %v378 = vmul.f32 %v342, %v367
      %v379 = vmul.f32 %v343, %v367
      %v380 = vmul.f32 %v344, %v367
      %v381 = vmul.f32 %v345, %v367
      %v382 = vmul.f32 %v346, %v367
      %v383 = vmul.f32 %v347, %v367
      %v384 = vmul.f32 %v348, %v367
      %v385 = vmul.f32 %v349, %v367
      %v386 = vmul.f32 %v350, %v367
      %v387 = vmul.f32 %v351, %v367
      %v388 = vmul.f32 %v352, %v367
      %v389 = vmul.f32 %v353, %v367
      %v390 = vmul.f32 %v354, %v367
      %v391 = vmul.f32 %v355, %v367
      %v392 = vmul.f32 %v356, %v367
      %v393 = vmul.f32 %v357, %v367
      %v394 = vmul.f32 %v358, %v367
      %v395 = vmul.f32 %v359, %v367
      %v396 = vmul.f32 %v360, %v367
      %v397 = vmul.f32 %v361, %v367
      %v398 = vmul.f32 %v362, %v367
      %v399 = vmul.f32 %v363, %v367
      %v400 = vmul.f32 %v364, %v367
      %v401 = vld [vmem:[%s2] sm:$0x1]
      %v403 = vperm.slane %v401, 0
      %v405 = vadd.f32 %v369, %v403
      %v406 = vadd.f32 %v370, %v403
      %v407 = vadd.f32 %v371, %v403
      %v408 = vadd.f32 %v372, %v403
      %v409 = vadd.f32 %v373, %v403
      %v410 = vadd.f32 %v374, %v403
      %v411 = vadd.f32 %v375, %v403
      %v412 = vadd.f32 %v376, %v403
      %v413 = vadd.f32 %v377, %v403
      %v414 = vadd.f32 %v378, %v403
      %v415 = vadd.f32 %v379, %v403
      %v416 = vadd.f32 %v380, %v403
      %v417 = vadd.f32 %v381, %v403
      %v418 = vadd.f32 %v382, %v403
      %v419 = vadd.f32 %v383, %v403
      %v420 = vadd.f32 %v384, %v403
      %v421 = vadd.f32 %v385, %v403
      %v422 = vadd.f32 %v386, %v403
      %v423 = vadd.f32 %v387, %v403
      %v424 = vadd.f32 %v388, %v403
      %v425 = vadd.f32 %v389, %v403
      %v426 = vadd.f32 %v390, %v403
      %v427 = vadd.f32 %v391, %v403
      %v428 = vadd.f32 %v392, %v403
      %v429 = vadd.f32 %v393, %v403
      %v430 = vadd.f32 %v394, %v403
      %v431 = vadd.f32 %v395, %v403
      %v432 = vadd.f32 %v396, %v403
      %v433 = vadd.f32 %v397, %v403
      %v434 = vadd.f32 %v398, %v403
      %v435 = vadd.f32 %v399, %v403
      %v436 = vadd.f32 %v400, %v403
      %v437 = vmax.f32 %v405, 0.0
      %v438 = vmax.f32 %v406, 0.0
      %v439 = vmax.f32 %v407, 0.0
      %v440 = vmax.f32 %v408, 0.0
      %v441 = vmax.f32 %v409, 0.0
      %v442 = vmax.f32 %v410, 0.0
      %v443 = vmax.f32 %v411, 0.0
      %v444 = vmax.f32 %v412, 0.0
      %v445 = vmax.f32 %v413, 0.0
      %v446 = vmax.f32 %v414, 0.0
      %v447 = vmax.f32 %v415, 0.0
      %v448 = vmax.f32 %v416, 0.0
      %v449 = vmax.f32 %v417, 0.0
      %v450 = vmax.f32 %v418, 0.0
      %v451 = vmax.f32 %v419, 0.0
      %v452 = vmax.f32 %v420, 0.0
      %v453 = vmax.f32 %v421, 0.0
      %v454 = vmax.f32 %v422, 0.0
      %v455 = vmax.f32 %v423, 0.0
      %v456 = vmax.f32 %v424, 0.0
      %v457 = vmax.f32 %v425, 0.0
      %v458 = vmax.f32 %v426, 0.0
      %v459 = vmax.f32 %v427, 0.0
      %v460 = vmax.f32 %v428, 0.0
      %v461 = vmax.f32 %v429, 0.0
      %v462 = vmax.f32 %v430, 0.0
      %v463 = vmax.f32 %v431, 0.0
      %v464 = vmax.f32 %v432, 0.0
      %v465 = vmax.f32 %v433, 0.0
      %v466 = vmax.f32 %v434, 0.0
      %v467 = vmax.f32 %v435, 0.0
      %v468 = vmax.f32 %v436, 0.0
      %v469 = vld [vmem:[%s3] sm:$0xff]
      %v470 = vld [vmem:[%s3 + $0x8] sm:$0xff]
      %v471 = vld [vmem:[%s3 + $0x10] sm:$0xff]
      %v472 = vld [vmem:[%s3 + $0x18] sm:$0xff]
      %v473 = vld [vmem:[%s3 + $0x20] sm:$0xff]
      %v474 = vld [vmem:[%s3 + $0x28] sm:$0xff]
      %v475 = vld [vmem:[%s3 + $0x30] sm:$0xff]
      %v476 = vld [vmem:[%s3 + $0x38] sm:$0xff]
      %v477 = vld [vmem:[%s3 + $0x40] sm:$0xff]
      %v478 = vld [vmem:[%s3 + $0x48] sm:$0xff]
      %v479 = vld [vmem:[%s3 + $0x50] sm:$0xff]
      %v480 = vld [vmem:[%s3 + $0x58] sm:$0xff]
      %v481 = vld [vmem:[%s3 + $0x60] sm:$0xff]
      %v482 = vld [vmem:[%s3 + $0x68] sm:$0xff]
      %v483 = vld [vmem:[%s3 + $0x70] sm:$0xff]
      %v484 = vld [vmem:[%s3 + $0x78] sm:$0xff]
      %v485 = vld [vmem:[%s4] sm:$0x1]
      %v487 = vperm.slane %v485, 0
      %489 = vmatpush.msra.mxu0 %v484
      %490 = vmatpush.msra.mxu0 %v483
      %491 = vmatpush.msra.mxu0 %v482
      %492 = vmatpush.msra.mxu0 %v481
      %493 = vmatpush.msra.mxu0 %v480
      %494 = vmatpush.msra.mxu0 %v479
      %495 = vmatpush.msra.mxu0 %v478
      %496 = vmatpush.msra.mxu0 %v477
      %497 = vmatpush.msra.mxu0 %v476
      %498 = vmatpush.msra.mxu0 %v475
      %499 = vmatpush.msra.mxu0 %v474
      %500 = vmatpush.msra.mxu0 %v473
      %501 = vmatpush.msra.mxu0 %v472
      %502 = vmatpush.msra.mxu0 %v471
      %503 = vmatpush.msra.mxu0 %v470
      %504 = vmatpush.msra.mxu0 %v469
      %505 = vmatmul.f32.gmra.mxu0 %v437
      %v506 = vpop.f32.mrf.mxu0
      %v507 = vadd.f32 %v487, %v506
      %508 = vmatmul.f32.gmra.mxu0 %v438
      %v509 = vpop.f32.mrf.mxu0
      %v510 = vadd.f32 %v487, %v509
      %511 = vmatmul.f32.gmra.mxu0 %v439
      %v512 = vpop.f32.mrf.mxu0
      %v513 = vadd.f32 %v487, %v512
      %514 = vmatmul.f32.gmra.mxu0 %v440
      %v515 = vpop.f32.mrf.mxu0
      %v516 = vadd.f32 %v487, %v515
      %517 = vmatmul.f32.gmra.mxu0 %v441
      %v518 = vpop.f32.mrf.mxu0
      %v519 = vadd.f32 %v487, %v518
      %520 = vmatmul.f32.gmra.mxu0 %v442
      %v521 = vpop.f32.mrf.mxu0
      %v522 = vadd.f32 %v487, %v521
      %523 = vmatmul.f32.gmra.mxu0 %v443
      %v524 = vpop.f32.mrf.mxu0
      %v525 = vadd.f32 %v487, %v524
      %526 = vmatmul.f32.gmra.mxu0 %v444
      %v527 = vpop.f32.mrf.mxu0
      %v528 = vadd.f32 %v487, %v527
      %529 = vmatmul.f32.gmra.mxu0 %v445
      %v530 = vpop.f32.mrf.mxu0
      %v531 = vadd.f32 %v487, %v530
      %532 = vmatmul.f32.gmra.mxu0 %v446
      %v533 = vpop.f32.mrf.mxu0
      %v534 = vadd.f32 %v487, %v533
      %535 = vmatmul.f32.gmra.mxu0 %v447
      %v536 = vpop.f32.mrf.mxu0
      %v537 = vadd.f32 %v487, %v536
      %538 = vmatmul.f32.gmra.mxu0 %v448
      %v539 = vpop.f32.mrf.mxu0
      %v540 = vadd.f32 %v487, %v539
      %541 = vmatmul.f32.gmra.mxu0 %v449
      %v542 = vpop.f32.mrf.mxu0
      %v543 = vadd.f32 %v487, %v542
      %544 = vmatmul.f32.gmra.mxu0 %v450
      %v545 = vpop.f32.mrf.mxu0
      %v546 = vadd.f32 %v487, %v545
      %547 = vmatmul.f32.gmra.mxu0 %v451
      %v548 = vpop.f32.mrf.mxu0
      %v549 = vadd.f32 %v487, %v548
      %550 = vmatmul.f32.gmra.mxu0 %v452
      %v551 = vpop.f32.mrf.mxu0
      %v552 = vadd.f32 %v487, %v551
      %553 = vmatmul.f32.gmra.mxu0 %v453
      %v554 = vpop.f32.mrf.mxu0
      %v555 = vadd.f32 %v487, %v554
      %556 = vmatmul.f32.gmra.mxu0 %v454
      %v557 = vpop.f32.mrf.mxu0
      %v558 = vadd.f32 %v487, %v557
      %559 = vmatmul.f32.gmra.mxu0 %v455
      %v560 = vpop.f32.mrf.mxu0
      %v561 = vadd.f32 %v487, %v560
      %562 = vmatmul.f32.gmra.mxu0 %v456
      %v563 = vpop.f32.mrf.mxu0
      %v564 = vadd.f32 %v487, %v563
      %565 = vmatmul.f32.gmra.mxu0 %v457
      %v566 = vpop.f32.mrf.mxu0
      %v567 = vadd.f32 %v487, %v566
      %568 = vmatmul.f32.gmra.mxu0 %v458
      %v569 = vpop.f32.mrf.mxu0
      %v570 = vadd.f32 %v487, %v569
      %571 = vmatmul.f32.gmra.mxu0 %v459
      %v572 = vpop.f32.mrf.mxu0
      %v573 = vadd.f32 %v487, %v572
      %574 = vmatmul.f32.gmra.mxu0 %v460
      %v575 = vpop.f32.mrf.mxu0
      %v576 = vadd.f32 %v487, %v575
      %577 = vmatmul.f32.gmra.mxu0 %v461
      %v578 = vpop.f32.mrf.mxu0
      %v579 = vadd.f32 %v487, %v578
      %580 = vmatmul.f32.gmra.mxu0 %v462
      %v581 = vpop.f32.mrf.mxu0
      %v582 = vadd.f32 %v487, %v581
      %583 = vmatmul.f32.gmra.mxu0 %v463
      %v584 = vpop.f32.mrf.mxu0
      %v585 = vadd.f32 %v487, %v584
      %586 = vmatmul.f32.gmra.mxu0 %v464
      %v587 = vpop.f32.mrf.mxu0
      %v588 = vadd.f32 %v487, %v587
      %589 = vmatmul.f32.gmra.mxu0 %v465
      %v590 = vpop.f32.mrf.mxu0
      %v591 = vadd.f32 %v487, %v590
      %592 = vmatmul.f32.gmra.mxu0 %v466
      %v593 = vpop.f32.mrf.mxu0
      %v594 = vadd.f32 %v487, %v593
      %595 = vmatmul.f32.gmra.mxu0 %v467
      %v596 = vpop.f32.mrf.mxu0
      %v597 = vadd.f32 %v487, %v596
      %598 = vmatmul.f32.gmra.mxu0 %v468
      %v599 = vpop.f32.mrf.mxu0
      %v600 = vadd.f32 %v487, %v599
      %601 = vdwg.mxu0
      %v602 = vmax.f32 %v507, 0.0
      %v603 = vmax.f32 %v510, 0.0
      %v604 = vmax.f32 %v513, 0.0
      %v605 = vmax.f32 %v516, 0.0
      %v606 = vmax.f32 %v519, 0.0
      %v607 = vmax.f32 %v522, 0.0
      %v608 = vmax.f32 %v525, 0.0
      %v609 = vmax.f32 %v528, 0.0
      %v610 = vmax.f32 %v531, 0.0
      %v611 = vmax.f32 %v534, 0.0
      %v612 = vmax.f32 %v537, 0.0
      %v613 = vmax.f32 %v540, 0.0
      %v614 = vmax.f32 %v543, 0.0
      %v615 = vmax.f32 %v546, 0.0
      %v616 = vmax.f32 %v549, 0.0
      %v617 = vmax.f32 %v552, 0.0
      %v618 = vmax.f32 %v555, 0.0
      %v619 = vmax.f32 %v558, 0.0
      %v620 = vmax.f32 %v561, 0.0
      %v621 = vmax.f32 %v564, 0.0
      %v622 = vmax.f32 %v567, 0.0
      %v623 = vmax.f32 %v570, 0.0
      %v624 = vmax.f32 %v573, 0.0
      %v625 = vmax.f32 %v576, 0.0
      %v626 = vmax.f32 %v579, 0.0
      %v627 = vmax.f32 %v582, 0.0
      %v628 = vmax.f32 %v585, 0.0
      %v629 = vmax.f32 %v588, 0.0
      %v630 = vmax.f32 %v591, 0.0
      %v631 = vmax.f32 %v594, 0.0
      %v632 = vmax.f32 %v597, 0.0
      %v633 = vmax.f32 %v600, 0.0
      %634 = vst [vmem:[#allocation2] sm:$0xff] 0.0
      %635 = vst [vmem:[#allocation2 + $0x8] sm:$0xff] 0.0
      %636 = vst [vmem:[#allocation2 + $0x10] sm:$0xff] 0.0
      %637 = vst [vmem:[#allocation2 + $0x18] sm:$0xff] 0.0
      %638 = vst [vmem:[#allocation2 + $0x20] sm:$0xff] 0.0
      %639 = vst [vmem:[#allocation2 + $0x28] sm:$0xff] 0.0
      %640 = vst [vmem:[#allocation2 + $0x30] sm:$0xff] 0.0
      %641 = vst [vmem:[#allocation2 + $0x38] sm:$0xff] 0.0
      %642 = vst [vmem:[#allocation2 + $0x40] sm:$0xff] 0.0
      %643 = vst [vmem:[#allocation2 + $0x48] sm:$0xff] 0.0
      %644 = vst [vmem:[#allocation2 + $0x50] sm:$0xff] 0.0
      %645 = vst [vmem:[#allocation2 + $0x58] sm:$0xff] 0.0
      %646 = vst [vmem:[#allocation2 + $0x60] sm:$0xff] 0.0
      %647 = vst [vmem:[#allocation2 + $0x68] sm:$0xff] 0.0
      %648 = vst [vmem:[#allocation2 + $0x70] sm:$0xff] 0.0
      %649 = vst [vmem:[#allocation2 + $0x78] sm:$0xff] 0.0
      %650 = vst [vmem:[#allocation2 + $0x80] sm:$0xff] 0.0
      %651 = vst [vmem:[#allocation2 + $0x88] sm:$0xff] 0.0
      %652 = vst [vmem:[#allocation2 + $0x90] sm:$0xff] 0.0
      %653 = vst [vmem:[#allocation2 + $0x98] sm:$0xff] 0.0
      %654 = vst [vmem:[#allocation2 + $0xa0] sm:$0xff] 0.0
      %655 = vst [vmem:[#allocation2 + $0xa8] sm:$0xff] 0.0
      %656 = vst [vmem:[#allocation2 + $0xb0] sm:$0xff] 0.0
      %657 = vst [vmem:[#allocation2 + $0xb8] sm:$0xff] 0.0
      %658 = vst [vmem:[#allocation2 + $0xc0] sm:$0xff] 0.0
      %659 = vst [vmem:[#allocation2 + $0xc8] sm:$0xff] 0.0
      %660 = vst [vmem:[#allocation2 + $0xd0] sm:$0xff] 0.0
      %661 = vst [vmem:[#allocation2 + $0xd8] sm:$0xff] 0.0
      %662 = vst [vmem:[#allocation2 + $0xe0] sm:$0xff] 0.0
      %663 = vst [vmem:[#allocation2 + $0xe8] sm:$0xff] 0.0
      %664 = vst [vmem:[#allocation2 + $0xf0] sm:$0xff] 0.0
      %665 = vst [vmem:[#allocation2 + $0xf8] sm:$0xff] 0.0
      %666 = vst [vmem:[#allocation2 + $0x100] sm:$0xff] 0.0
      %667 = vst [vmem:[#allocation2 + $0x108] sm:$0xff] 0.0
      %668 = vst [vmem:[#allocation2 + $0x110] sm:$0xff] 0.0
      %669 = vst [vmem:[#allocation2 + $0x118] sm:$0xff] 0.0
      %670 = vst [vmem:[#allocation2 + $0x120] sm:$0xff] 0.0
      %671 = vst [vmem:[#allocation2 + $0x128] sm:$0xff] 0.0
      %672 = vst [vmem:[#allocation2 + $0x130] sm:$0xff] 0.0
      %673 = vst [vmem:[#allocation2 + $0x138] sm:$0xff] 0.0
      %674 = vst [vmem:[#allocation2 + $0x140] sm:$0xff] 0.0
      %675 = vst [vmem:[#allocation2 + $0x148] sm:$0xff] 0.0
      %676 = vst [vmem:[#allocation2 + $0x150] sm:$0xff] 0.0
      %677 = vst [vmem:[#allocation2 + $0x158] sm:$0xff] 0.0
      %678 = vst [vmem:[#allocation2 + $0x160] sm:$0xff] 0.0
      %679 = vst [vmem:[#allocation2 + $0x168] sm:$0xff] 0.0
      %680 = vst [vmem:[#allocation2 + $0x170] sm:$0xff] 0.0
      %681 = vst [vmem:[#allocation2 + $0x178] sm:$0xff] 0.0
      %682 = vst [vmem:[#allocation2 + $0x180] sm:$0xff] 0.0
      %683 = vst [vmem:[#allocation2 + $0x188] sm:$0xff] 0.0
      %684 = vst [vmem:[#allocation2 + $0x190] sm:$0xff] 0.0
      %685 = vst [vmem:[#allocation2 + $0x198] sm:$0xff] 0.0
      %686 = vst [vmem:[#allocation2 + $0x1a0] sm:$0xff] 0.0
      %687 = vst [vmem:[#allocation2 + $0x1a8] sm:$0xff] 0.0
      %688 = vst [vmem:[#allocation2 + $0x1b0] sm:$0xff] 0.0
      %689 = vst [vmem:[#allocation2 + $0x1b8] sm:$0xff] 0.0
      %690 = vst [vmem:[#allocation2 + $0x1c0] sm:$0xff] 0.0
      %691 = vst [vmem:[#allocation2 + $0x1c8] sm:$0xff] 0.0
      %692 = vst [vmem:[#allocation2 + $0x1d0] sm:$0xff] 0.0
      %693 = vst [vmem:[#allocation2 + $0x1d8] sm:$0xff] 0.0
      %694 = vst [vmem:[#allocation2 + $0x1e0] sm:$0xff] 0.0
      %695 = vst [vmem:[#allocation2 + $0x1e8] sm:$0xff] 0.0
      %696 = vst [vmem:[#allocation2 + $0x1f0] sm:$0xff] 0.0
      %697 = vst [vmem:[#allocation2 + $0x1f8] sm:$0xff] 0.0
      %698 = vst [vmem:[#allocation2 + $0x200] sm:$0xff] 0.0
      %699 = vst [vmem:[#allocation2 + $0x208] sm:$0xff] 0.0
      %700 = vst [vmem:[#allocation2 + $0x210] sm:$0xff] 0.0
      %701 = vst [vmem:[#allocation2 + $0x218] sm:$0xff] 0.0
      %702 = vst [vmem:[#allocation2 + $0x220] sm:$0xff] 0.0
      %703 = vst [vmem:[#allocation2 + $0x228] sm:$0xff] 0.0
      %704 = vst [vmem:[#allocation2 + $0x230] sm:$0xff] 0.0
      %705 = vst [vmem:[#allocation2 + $0x238] sm:$0xff] 0.0
      %s706 = scalar_lea.vmem [#allocation2], 32
      %707 = vst [vmem:[%s706 + $0x8] sm:$0xff] %v602
      %708 = vst [vmem:[%s706 + $0x10] sm:$0xff] %v603
      %709 = vst [vmem:[%s706 + $0x28] sm:$0xff] %v604
      %710 = vst [vmem:[%s706 + $0x30] sm:$0xff] %v605
      %711 = vst [vmem:[%s706 + $0x48] sm:$0xff] %v606
      %712 = vst [vmem:[%s706 + $0x50] sm:$0xff] %v607
      %713 = vst [vmem:[%s706 + $0x68] sm:$0xff] %v608
      %714 = vst [vmem:[%s706 + $0x70] sm:$0xff] %v609
      %715 = vst [vmem:[%s706 + $0x88] sm:$0xff] %v610
      %716 = vst [vmem:[%s706 + $0x90] sm:$0xff] %v611
      %717 = vst [vmem:[%s706 + $0xa8] sm:$0xff] %v612
      %718 = vst [vmem:[%s706 + $0xb0] sm:$0xff] %v613
      %719 = vst [vmem:[%s706 + $0xc8] sm:$0xff] %v614
      %720 = vst [vmem:[%s706 + $0xd0] sm:$0xff] %v615
      %721 = vst [vmem:[%s706 + $0xe8] sm:$0xff] %v616
      %722 = vst [vmem:[%s706 + $0xf0] sm:$0xff] %v617
      %723 = vst [vmem:[%s706 + $0x108] sm:$0xff] %v618
      %724 = vst [vmem:[%s706 + $0x110] sm:$0xff] %v619
      %725 = vst [vmem:[%s706 + $0x128] sm:$0xff] %v620
      %726 = vst [vmem:[%s706 + $0x130] sm:$0xff] %v621
      %727 = vst [vmem:[%s706 + $0x148] sm:$0xff] %v622
      %728 = vst [vmem:[%s706 + $0x150] sm:$0xff] %v623
      %729 = vst [vmem:[%s706 + $0x168] sm:$0xff] %v624
      %730 = vst [vmem:[%s706 + $0x170] sm:$0xff] %v625
      %731 = vst [vmem:[%s706 + $0x188] sm:$0xff] %v626
      %732 = vst [vmem:[%s706 + $0x190] sm:$0xff] %v627
      %733 = vst [vmem:[%s706 + $0x1a8] sm:$0xff] %v628
      %734 = vst [vmem:[%s706 + $0x1b0] sm:$0xff] %v629
      %735 = vst [vmem:[%s706 + $0x1c8] sm:$0xff] %v630
      %736 = vst [vmem:[%s706 + $0x1d0] sm:$0xff] %v631
      %737 = vst [vmem:[%s706 + $0x1e8] sm:$0xff] %v632
      %738 = vst [vmem:[%s706 + $0x1f0] sm:$0xff] %v633
      %v739 = vld [vmem:[#allocation2] sm:$0xff]
      %v740 = vld [vmem:[#allocation2 + $0x8] sm:$0xff]
      %v741 = vld [vmem:[#allocation2 + $0x10] sm:$0xff]
      %v742 = vld [vmem:[#allocation2 + $0x18] sm:$0xff]
      %v743 = vld [vmem:[#allocation2 + $0x20] sm:$0xff]
      %v744 = vld [vmem:[#allocation2 + $0x28] sm:$0xff]
      %v745 = vld [vmem:[#allocation2 + $0x30] sm:$0xff]
      %v746 = vld [vmem:[#allocation2 + $0x38] sm:$0xff]
      %v747 = vld [vmem:[#allocation2 + $0x40] sm:$0xff]
      %v748 = vld [vmem:[#allocation2 + $0x48] sm:$0xff]
      %v749 = vld [vmem:[#allocation2 + $0x50] sm:$0xff]
      %v750 = vld [vmem:[#allocation2 + $0x58] sm:$0xff]
      %v751 = vld [vmem:[#allocation2 + $0x60] sm:$0xff]
      %v752 = vld [vmem:[#allocation2 + $0x68] sm:$0xff]
      %v753 = vld [vmem:[#allocation2 + $0x70] sm:$0xff]
      %v754 = vld [vmem:[#allocation2 + $0x78] sm:$0xff]
      %v755 = vld [vmem:[#allocation2 + $0x80] sm:$0xff]
      %v756 = vld [vmem:[#allocation2 + $0x88] sm:$0xff]
      %v757 = vld [vmem:[#allocation2 + $0x90] sm:$0xff]
      %v758 = vld [vmem:[#allocation2 + $0x98] sm:$0xff]
      %v759 = vld [vmem:[#allocation2 + $0xa0] sm:$0xff]
      %v760 = vld [vmem:[#allocation2 + $0xa8] sm:$0xff]
      %v761 = vld [vmem:[#allocation2 + $0xb0] sm:$0xff]
      %v762 = vld [vmem:[#allocation2 + $0xb8] sm:$0xff]
      %v763 = vld [vmem:[#allocation2 + $0xc0] sm:$0xff]
      %v764 = vld [vmem:[#allocation2 + $0xc8] sm:$0xff]
      %v765 = vld [vmem:[#allocation2 + $0xd0] sm:$0xff]
      %v766 = vld [vmem:[#allocation2 + $0xd8] sm:$0xff]
      %v767 = vld [vmem:[#allocation2 + $0xe0] sm:$0xff]
      %v768 = vld [vmem:[#allocation2 + $0xe8] sm:$0xff]
      %v769 = vld [vmem:[#allocation2 + $0xf0] sm:$0xff]
      %v770 = vld [vmem:[#allocation2 + $0xf8] sm:$0xff]
      %v771 = vld [vmem:[#allocation2 + $0x100] sm:$0xff]
      %v772 = vld [vmem:[#allocation2 + $0x108] sm:$0xff]
      %v773 = vld [vmem:[#allocation2 + $0x110] sm:$0xff]
      %v774 = vld [vmem:[#allocation2 + $0x118] sm:$0xff]
      %v775 = vld [vmem:[#allocation2 + $0x120] sm:$0xff]
      %v776 = vld [vmem:[#allocation2 + $0x128] sm:$0xff]
      %v777 = vld [vmem:[#allocation2 + $0x130] sm:$0xff]
      %v778 = vld [vmem:[#allocation2 + $0x138] sm:$0xff]
      %v779 = vld [vmem:[#allocation2 + $0x140] sm:$0xff]
      %v780 = vld [vmem:[#allocation2 + $0x148] sm:$0xff]
      %v781 = vld [vmem:[#allocation2 + $0x150] sm:$0xff]
      %v782 = vld [vmem:[#allocation2 + $0x158] sm:$0xff]
      %v783 = vld [vmem:[#allocation2 + $0x160] sm:$0xff]
      %v784 = vld [vmem:[#allocation2 + $0x168] sm:$0xff]
      %v785 = vld [vmem:[#allocation2 + $0x170] sm:$0xff]
      %v786 = vld [vmem:[#allocation2 + $0x178] sm:$0xff]
      %v787 = vld [vmem:[#allocation2 + $0x180] sm:$0xff]
      %v788 = vld [vmem:[#allocation2 + $0x188] sm:$0xff]
      %v789 = vld [vmem:[#allocation2 + $0x190] sm:$0xff]
      %v790 = vld [vmem:[#allocation2 + $0x198] sm:$0xff]
      %v791 = vld [vmem:[#allocation2 + $0x1a0] sm:$0xff]
      %v792 = vld [vmem:[#allocation2 + $0x1a8] sm:$0xff]
      %v793 = vld [vmem:[#allocation2 + $0x1b0] sm:$0xff]
      %v794 = vld [vmem:[#allocation2 + $0x1b8] sm:$0xff]
      %v795 = vld [vmem:[#allocation2 + $0x1c0] sm:$0xff]
      %v796 = vld [vmem:[#allocation2 + $0x1c8] sm:$0xff]
      %v797 = vld [vmem:[#allocation2 + $0x1d0] sm:$0xff]
      %v798 = vld [vmem:[#allocation2 + $0x1d8] sm:$0xff]
      %v799 = vld [vmem:[#allocation2 + $0x1e0] sm:$0xff]
      %v800 = vld [vmem:[#allocation2 + $0x1e8] sm:$0xff]
      %v801 = vld [vmem:[#allocation2 + $0x1f0] sm:$0xff]
      %v802 = vld [vmem:[#allocation2 + $0x1f8] sm:$0xff]
      %vm851 = vcmask 1040384
      %v852 = vrot.slane %v739, 7
      %v853 = vrot.slane %v740, 7
      %v854 = vsel %vm851, %v852, %v853
      %v855 = vrot.slane %v741, 7
      %v856 = vsel %vm851, %v853, %v855
      %v857 = vrot.slane %v743, 7
      %v858 = vrot.slane %v744, 7
      %v859 = vsel %vm851, %v857, %v858
      %v860 = vrot.slane %v745, 7
      %v861 = vsel %vm851, %v858, %v860
      %v862 = vrot.slane %v747, 7
      %v863 = vrot.slane %v748, 7
      %v864 = vsel %vm851, %v862, %v863
      %v865 = vrot.slane %v749, 7
      %v866 = vsel %vm851, %v863, %v865
      %v867 = vrot.slane %v751, 7
      %v868 = vrot.slane %v752, 7
      %v869 = vsel %vm851, %v867, %v868
      %v870 = vrot.slane %v753, 7
      %v871 = vsel %vm851, %v868, %v870
      %v872 = vrot.slane %v755, 7
      %v873 = vrot.slane %v756, 7
      %v874 = vsel %vm851, %v872, %v873
      %v875 = vrot.slane %v757, 7
      %v876 = vsel %vm851, %v873, %v875
      %v877 = vrot.slane %v759, 7
      %v878 = vrot.slane %v760, 7
      %v879 = vsel %vm851, %v877, %v878
      %v880 = vrot.slane %v761, 7
      %v881 = vsel %vm851, %v878, %v880
      %v882 = vrot.slane %v763, 7
      %v883 = vrot.slane %v764, 7
      %v884 = vsel %vm851, %v882, %v883
      %v885 = vrot.slane %v765, 7
      %v886 = vsel %vm851, %v883, %v885
      %v887 = vrot.slane %v767, 7
      %v888 = vrot.slane %v768, 7
      %v889 = vsel %vm851, %v887, %v888
      %v890 = vrot.slane %v769, 7
      %v891 = vsel %vm851, %v888, %v890
      %v892 = vrot.slane %v771, 7
      %v893 = vrot.slane %v772, 7
      %v894 = vsel %vm851, %v892, %v893
      %v895 = vrot.slane %v773, 7
      %v896 = vsel %vm851, %v893, %v895
      %v897 = vrot.slane %v775, 7
      %v898 = vrot.slane %v776, 7
      %v899 = vsel %vm851, %v897, %v898
      %v900 = vrot.slane %v777, 7
      %v901 = vsel %vm851, %v898, %v900
      %v902 = vrot.slane %v779, 7
      %v903 = vrot.slane %v780, 7
      %v904 = vsel %vm851, %v902, %v903
      %v905 = vrot.slane %v781, 7
      %v906 = vsel %vm851, %v903, %v905
      %v907 = vrot.slane %v783, 7
      %v908 = vrot.slane %v784, 7
      %v909 = vsel %vm851, %v907, %v908
      %v910 = vrot.slane %v785, 7
      %v911 = vsel %vm851, %v908, %v910
      %v912 = vrot.slane %v787, 7
      %v913 = vrot.slane %v788, 7
      %v914 = vsel %vm851, %v912, %v913
      %v915 = vrot.slane %v789, 7
      %v916 = vsel %vm851, %v913, %v915
      %v917 = vrot.slane %v791, 7
      %v918 = vrot.slane %v792, 7
      %v919 = vsel %vm851, %v917, %v918
      %v920 = vrot.slane %v793, 7
      %v921 = vsel %vm851, %v918, %v920
      %v922 = vrot.slane %v795, 7
      %v923 = vrot.slane %v796, 7
      %v924 = vsel %vm851, %v922, %v923
      %v925 = vrot.slane %v797, 7
      %v926 = vsel %vm851, %v923, %v925
      %v927 = vrot.slane %v799, 7
      %v928 = vrot.slane %v800, 7
      %v929 = vsel %vm851, %v927, %v928
      %v930 = vrot.slane %v801, 7
      %v931 = vsel %vm851, %v928, %v930
      %v964 = vld [vmem:[%s5] sm:$0xff]
      %v965 = vld [vmem:[%s5 + $0x8] sm:$0xff]
      %v966 = vld [vmem:[%s5 + $0x10] sm:$0xff]
      %v967 = vld [vmem:[%s5 + $0x18] sm:$0xff]
      %v968 = vld [vmem:[%s5 + $0x20] sm:$0xff]
      %v969 = vld [vmem:[%s5 + $0x28] sm:$0xff]
      %v970 = vld [vmem:[%s5 + $0x30] sm:$0xff]
      %v971 = vld [vmem:[%s5 + $0x38] sm:$0xff]
      %v972 = vld [vmem:[%s5 + $0x40] sm:$0xff]
      %v973 = vld [vmem:[%s5 + $0x48] sm:$0xff]
      %v974 = vld [vmem:[%s5 + $0x50] sm:$0xff]
      %v975 = vld [vmem:[%s5 + $0x58] sm:$0xff]
      %v976 = vld [vmem:[%s5 + $0x60] sm:$0xff]
      %v977 = vld [vmem:[%s5 + $0x68] sm:$0xff]
      %v978 = vld [vmem:[%s5 + $0x70] sm:$0xff]
      %v979 = vld [vmem:[%s5 + $0x78] sm:$0xff]
      %s980 = scalar_lea.vmem %s5, 128
      %v981 = vld [vmem:[%s980] sm:$0xff]
      %v982 = vld [vmem:[%s980 + $0x8] sm:$0xff]
      %v983 = vld [vmem:[%s980 + $0x10] sm:$0xff]
      %v984 = vld [vmem:[%s980 + $0x18] sm:$0xff]
      %v985 = vld [vmem:[%s980 + $0x20] sm:$0xff]
      %v986 = vld [vmem:[%s980 + $0x28] sm:$0xff]
      %v987 = vld [vmem:[%s980 + $0x30] sm:$0xff]
      %v988 = vld [vmem:[%s980 + $0x38] sm:$0xff]
      %v989 = vld [vmem:[%s980 + $0x40] sm:$0xff]
      %v990 = vld [vmem:[%s980 + $0x48] sm:$0xff]
      %v991 = vld [vmem:[%s980 + $0x50] sm:$0xff]
      %v992 = vld [vmem:[%s980 + $0x58] sm:$0xff]
      %v993 = vld [vmem:[%s980 + $0x60] sm:$0xff]
      %v994 = vld [vmem:[%s980 + $0x68] sm:$0xff]
      %v995 = vld [vmem:[%s980 + $0x70] sm:$0xff]
      %v996 = vld [vmem:[%s980 + $0x78] sm:$0xff]
      %997 = vmatpush.msra.mxu0 %v996
      %998 = vmatpush.msra.mxu0 %v995
      %999 = vmatpush.msra.mxu0 %v994
      %1000 = vmatpush.msra.mxu0 %v993
      %1001 = vmatpush.msra.mxu0 %v992
      %1002 = vmatpush.msra.mxu0 %v991
      %1003 = vmatpush.msra.mxu0 %v990
      %1004 = vmatpush.msra.mxu0 %v989
      %1005 = vmatpush.msra.mxu0 %v988
      %1006 = vmatpush.msra.mxu0 %v987
      %1007 = vmatpush.msra.mxu0 %v986
      %1008 = vmatpush.msra.mxu0 %v985
      %1009 = vmatpush.msra.mxu0 %v984
      %1010 = vmatpush.msra.mxu0 %v983
      %1011 = vmatpush.msra.mxu0 %v982
      %1012 = vmatpush.msra.mxu0 %v981
      %1013 = vmatmul.f32.gmra.mxu0 %v740
      %v1014 = vpop.f32.mrf.mxu0
      %v1015 = vadd.f32 0.0, %v1014
      %1016 = vmatmul.f32.gmra.mxu0 %v741
      %v1017 = vpop.f32.mrf.mxu0
      %v1018 = vadd.f32 0.0, %v1017
      %1019 = vmatmul.f32.gmra.mxu0 %v744
      %v1020 = vpop.f32.mrf.mxu0
      %v1021 = vadd.f32 0.0, %v1020
      %1022 = vmatmul.f32.gmra.mxu0 %v745
      %v1023 = vpop.f32.mrf.mxu0
      %v1024 = vadd.f32 0.0, %v1023
      %1025 = vmatmul.f32.gmra.mxu0 %v748
      %v1026 = vpop.f32.mrf.mxu0
      %v1027 = vadd.f32 0.0, %v1026
      %1028 = vmatmul.f32.gmra.mxu0 %v749
      %v1029 = vpop.f32.mrf.mxu0
      %v1030 = vadd.f32 0.0, %v1029
      %1031 = vmatmul.f32.gmra.mxu0 %v752
      %v1032 = vpop.f32.mrf.mxu0
      %v1033 = vadd.f32 0.0, %v1032
      %1034 = vmatmul.f32.gmra.mxu0 %v753
      %v1035 = vpop.f32.mrf.mxu0
      %v1036 = vadd.f32 0.0, %v1035
      %1037 = vmatmul.f32.gmra.mxu0 %v756
      %v1038 = vpop.f32.mrf.mxu0
      %v1039 = vadd.f32 0.0, %v1038
      %1040 = vmatmul.f32.gmra.mxu0 %v757
      %v1041 = vpop.f32.mrf.mxu0
      %v1042 = vadd.f32 0.0, %v1041
      %1043 = vmatmul.f32.gmra.mxu0 %v760
      %v1044 = vpop.f32.mrf.mxu0
      %v1045 = vadd.f32 0.0, %v1044
      %1046 = vmatmul.f32.gmra.mxu0 %v761
      %v1047 = vpop.f32.mrf.mxu0
      %v1048 = vadd.f32 0.0, %v1047
      %1049 = vmatmul.f32.gmra.mxu0 %v764
      %v1050 = vpop.f32.mrf.mxu0
      %v1051 = vadd.f32 0.0, %v1050
      %1052 = vmatmul.f32.gmra.mxu0 %v765
      %v1053 = vpop.f32.mrf.mxu0
      %v1054 = vadd.f32 0.0, %v1053
      %1055 = vmatmul.f32.gmra.mxu0 %v768
      %v1056 = vpop.f32.mrf.mxu0
      %v1057 = vadd.f32 0.0, %v1056
      %1058 = vmatmul.f32.gmra.mxu0 %v769
      %v1059 = vpop.f32.mrf.mxu0
      %v1060 = vadd.f32 0.0, %v1059
      %1061 = vmatmul.f32.gmra.mxu0 %v772
      %v1062 = vpop.f32.mrf.mxu0
      %v1063 = vadd.f32 0.0, %v1062
      %1064 = vmatmul.f32.gmra.mxu0 %v773
      %v1065 = vpop.f32.mrf.mxu0
      %v1066 = vadd.f32 0.0, %v1065
      %1067 = vmatmul.f32.gmra.mxu0 %v776
      %v1068 = vpop.f32.mrf.mxu0
      %v1069 = vadd.f32 0.0, %v1068
      %1070 = vmatmul.f32.gmra.mxu0 %v777
      %v1071 = vpop.f32.mrf.mxu0
      %v1072 = vadd.f32 0.0, %v1071
      %1073 = vmatmul.f32.gmra.mxu0 %v780
      %v1074 = vpop.f32.mrf.mxu0
      %v1075 = vadd.f32 0.0, %v1074
      %1076 = vmatmul.f32.gmra.mxu0 %v781
      %v1077 = vpop.f32.mrf.mxu0
      %v1078 = vadd.f32 0.0, %v1077
      %1079 = vmatmul.f32.gmra.mxu0 %v784
      %v1080 = vpop.f32.mrf.mxu0
      %v1081 = vadd.f32 0.0, %v1080
      %1082 = vmatmul.f32.gmra.mxu0 %v785
      %v1083 = vpop.f32.mrf.mxu0
      %v1084 = vadd.f32 0.0, %v1083
      %1085 = vmatmul.f32.gmra.mxu0 %v788
      %v1086 = vpop.f32.mrf.mxu0
      %v1087 = vadd.f32 0.0, %v1086
      %1088 = vmatmul.f32.gmra.mxu0 %v789
      %v1089 = vpop.f32.mrf.mxu0
      %v1090 = vadd.f32 0.0, %v1089
      %1091 = vmatmul.f32.gmra.mxu0 %v792
      %v1092 = vpop.f32.mrf.mxu0
      %v1093 = vadd.f32 0.0, %v1092
      %1094 = vmatmul.f32.gmra.mxu0 %v793
      %v1095 = vpop.f32.mrf.mxu0
      %v1096 = vadd.f32 0.0, %v1095
      %1097 = vmatmul.f32.gmra.mxu0 %v796
      %v1098 = vpop.f32.mrf.mxu0
      %v1099 = vadd.f32 0.0, %v1098
      %1100 = vmatmul.f32.gmra.mxu0 %v797
      %v1101 = vpop.f32.mrf.mxu0
      %v1102 = vadd.f32 0.0, %v1101
      %1103 = vmatmul.f32.gmra.mxu0 %v800
      %v1104 = vpop.f32.mrf.mxu0
      %v1105 = vadd.f32 0.0, %v1104
      %1106 = vmatmul.f32.gmra.mxu0 %v801
      %v1107 = vpop.f32.mrf.mxu0
      %v1108 = vadd.f32 0.0, %v1107
      %1109 = vdwg.mxu0
      %1110 = vmatpush.msra.mxu0 %v979
      %1111 = vmatpush.msra.mxu0 %v978
      %1112 = vmatpush.msra.mxu0 %v977
      %1113 = vmatpush.msra.mxu0 %v976
      %1114 = vmatpush.msra.mxu0 %v975
      %1115 = vmatpush.msra.mxu0 %v974
      %1116 = vmatpush.msra.mxu0 %v973
      %1117 = vmatpush.msra.mxu0 %v972
      %1118 = vmatpush.msra.mxu0 %v971
      %1119 = vmatpush.msra.mxu0 %v970
      %1120 = vmatpush.msra.mxu0 %v969
      %1121 = vmatpush.msra.mxu0 %v968
      %1122 = vmatpush.msra.mxu0 %v967
      %1123 = vmatpush.msra.mxu0 %v966
      %1124 = vmatpush.msra.mxu0 %v965
      %1125 = vmatpush.msra.mxu0 %v964
      %1126 = vmatmul.f32.gmra.mxu0 %v854
      %v1127 = vpop.f32.mrf.mxu0
      %v1128 = vadd.f32 %v1015, %v1127
      %1129 = vmatmul.f32.gmra.mxu0 %v856
      %v1130 = vpop.f32.mrf.mxu0
      %v1131 = vadd.f32 %v1018, %v1130
      %1132 = vmatmul.f32.gmra.mxu0 %v859
      %v1133 = vpop.f32.mrf.mxu0
      %v1134 = vadd.f32 %v1021, %v1133
      %1135 = vmatmul.f32.gmra.mxu0 %v861
      %v1136 = vpop.f32.mrf.mxu0
      %v1137 = vadd.f32 %v1024, %v1136
      %1138 = vmatmul.f32.gmra.mxu0 %v864
      %v1139 = vpop.f32.mrf.mxu0
      %v1140 = vadd.f32 %v1027, %v1139
      %1141 = vmatmul.f32.gmra.mxu0 %v866
      %v1142 = vpop.f32.mrf.mxu0
      %v1143 = vadd.f32 %v1030, %v1142
      %1144 = vmatmul.f32.gmra.mxu0 %v869
      %v1145 = vpop.f32.mrf.mxu0
      %v1146 = vadd.f32 %v1033, %v1145
      %1147 = vmatmul.f32.gmra.mxu0 %v871
      %v1148 = vpop.f32.mrf.mxu0
      %v1149 = vadd.f32 %v1036, %v1148
      %1150 = vmatmul.f32.gmra.mxu0 %v874
      %v1151 = vpop.f32.mrf.mxu0
      %v1152 = vadd.f32 %v1039, %v1151
      %1153 = vmatmul.f32.gmra.mxu0 %v876
      %v1154 = vpop.f32.mrf.mxu0
      %v1155 = vadd.f32 %v1042, %v1154
      %1156 = vmatmul.f32.gmra.mxu0 %v879
      %v1157 = vpop.f32.mrf.mxu0
      %v1158 = vadd.f32 %v1045, %v1157
      %1159 = vmatmul.f32.gmra.mxu0 %v881
      %v1160 = vpop.f32.mrf.mxu0
      %v1161 = vadd.f32 %v1048, %v1160
      %1162 = vmatmul.f32.gmra.mxu0 %v884
      %v1163 = vpop.f32.mrf.mxu0
      %v1164 = vadd.f32 %v1051, %v1163
      %1165 = vmatmul.f32.gmra.mxu0 %v886
      %v1166 = vpop.f32.mrf.mxu0
      %v1167 = vadd.f32 %v1054, %v1166
      %1168 = vmatmul.f32.gmra.mxu0 %v889
      %v1169 = vpop.f32.mrf.mxu0
      %v1170 = vadd.f32 %v1057, %v1169
      %1171 = vmatmul.f32.gmra.mxu0 %v891
      %v1172 = vpop.f32.mrf.mxu0
      %v1173 = vadd.f32 %v1060, %v1172
      %1174 = vmatmul.f32.gmra.mxu0 %v894
      %v1175 = vpop.f32.mrf.mxu0
      %v1176 = vadd.f32 %v1063, %v1175
      %1177 = vmatmul.f32.gmra.mxu0 %v896
      %v1178 = vpop.f32.mrf.mxu0
      %v1179 = vadd.f32 %v1066, %v1178
      %1180 = vmatmul.f32.gmra.mxu0 %v899
      %v1181 = vpop.f32.mrf.mxu0
      %v1182 = vadd.f32 %v1069, %v1181
      %1183 = vmatmul.f32.gmra.mxu0 %v901
      %v1184 = vpop.f32.mrf.mxu0
      %v1185 = vadd.f32 %v1072, %v1184
      %1186 = vmatmul.f32.gmra.mxu0 %v904
      %v1187 = vpop.f32.mrf.mxu0
      %v1188 = vadd.f32 %v1075, %v1187
      %1189 = vmatmul.f32.gmra.mxu0 %v906
      %v1190 = vpop.f32.mrf.mxu0
      %v1191 = vadd.f32 %v1078, %v1190
      %1192 = vmatmul.f32.gmra.mxu0 %v909
      %v1193 = vpop.f32.mrf.mxu0
      %v1194 = vadd.f32 %v1081, %v1193
      %1195 = vmatmul.f32.gmra.mxu0 %v911
      %v1196 = vpop.f32.mrf.mxu0
      %v1197 = vadd.f32 %v1084, %v1196
      %1198 = vmatmul.f32.gmra.mxu0 %v914
      %v1199 = vpop.f32.mrf.mxu0
      %v1200 = vadd.f32 %v1087, %v1199
      %1201 = vmatmul.f32.gmra.mxu0 %v916
      %v1202 = vpop.f32.mrf.mxu0
      %v1203 = vadd.f32 %v1090, %v1202
      %1204 = vmatmul.f32.gmra.mxu0 %v919
      %v1205 = vpop.f32.mrf.mxu0
      %v1206 = vadd.f32 %v1093, %v1205
      %1207 = vmatmul.f32.gmra.mxu0 %v921
      %v1208 = vpop.f32.mrf.mxu0
      %v1209 = vadd.f32 %v1096, %v1208
      %1210 = vmatmul.f32.gmra.mxu0 %v924
      %v1211 = vpop.f32.mrf.mxu0
      %v1212 = vadd.f32 %v1099, %v1211
      %1213 = vmatmul.f32.gmra.mxu0 %v926
      %v1214 = vpop.f32.mrf.mxu0
      %v1215 = vadd.f32 %v1102, %v1214
      %1216 = vmatmul.f32.gmra.mxu0 %v929
      %v1217 = vpop.f32.mrf.mxu0
      %v1218 = vadd.f32 %v1105, %v1217
      %1219 = vmatmul.f32.gmra.mxu0 %v931
      %v1220 = vpop.f32.mrf.mxu0
      %v1221 = vadd.f32 %v1108, %v1220
      %1222 = vdwg.mxu0
      %vm1239 = vcmask 1046528
      %v1240 = vrot.slane %v740, 1
      %v1241 = vrot.slane %v741, 1
      %v1242 = vsel %vm1239, %v1240, %v1241
      %v1243 = vrot.slane %v742, 1
      %v1244 = vsel %vm1239, %v1241, %v1243
      %v1245 = vrot.slane %v744, 1
      %v1246 = vrot.slane %v745, 1
      %v1247 = vsel %vm1239, %v1245, %v1246
      %v1248 = vrot.slane %v746, 1
      %v1249 = vsel %vm1239, %v1246, %v1248
      %v1250 = vrot.slane %v748, 1
      %v1251 = vrot.slane %v749, 1
      %v1252 = vsel %vm1239, %v1250, %v1251
      %v1253 = vrot.slane %v750, 1
      %v1254 = vsel %vm1239, %v1251, %v1253
      %v1255 = vrot.slane %v752, 1
      %v1256 = vrot.slane %v753, 1
      %v1257 = vsel %vm1239, %v1255, %v1256
      %v1258 = vrot.slane %v754, 1
      %v1259 = vsel %vm1239, %v1256, %v1258
      %v1260 = vrot.slane %v756, 1
      %v1261 = vrot.slane %v757, 1
      %v1262 = vsel %vm1239, %v1260, %v1261
      %v1263 = vrot.slane %v758, 1
      %v1264 = vsel %vm1239, %v1261, %v1263
      %v1265 = vrot.slane %v760, 1
      %v1266 = vrot.slane %v761, 1
      %v1267 = vsel %vm1239, %v1265, %v1266
      %v1268 = vrot.slane %v762, 1
      %v1269 = vsel %vm1239, %v1266, %v1268
      %v1270 = vrot.slane %v764, 1
      %v1271 = vrot.slane %v765, 1
      %v1272 = vsel %vm1239, %v1270, %v1271
      %v1273 = vrot.slane %v766, 1
      %v1274 = vsel %vm1239, %v1271, %v1273
      %v1275 = vrot.slane %v768, 1
      %v1276 = vrot.slane %v769, 1
      %v1277 = vsel %vm1239, %v1275, %v1276
      %v1278 = vrot.slane %v770, 1
      %v1279 = vsel %vm1239, %v1276, %v1278
      %v1280 = vrot.slane %v772, 1
      %v1281 = vrot.slane %v773, 1
      %v1282 = vsel %vm1239, %v1280, %v1281
      %v1283 = vrot.slane %v774, 1
      %v1284 = vsel %vm1239, %v1281, %v1283
      %v1285 = vrot.slane %v776, 1
      %v1286 = vrot.slane %v777, 1
      %v1287 = vsel %vm1239, %v1285, %v1286
      %v1288 = vrot.slane %v778, 1
      %v1289 = vsel %vm1239, %v1286, %v1288
      %v1290 = vrot.slane %v780, 1
      %v1291 = vrot.slane %v781, 1
      %v1292 = vsel %vm1239, %v1290, %v1291
      %v1293 = vrot.slane %v782, 1
      %v1294 = vsel %vm1239, %v1291, %v1293
      %v1295 = vrot.slane %v784, 1
      %v1296 = vrot.slane %v785, 1
      %v1297 = vsel %vm1239, %v1295, %v1296
      %v1298 = vrot.slane %v786, 1
      %v1299 = vsel %vm1239, %v1296, %v1298
      %v1300 = vrot.slane %v788, 1
      %v1301 = vrot.slane %v789, 1
      %v1302 = vsel %vm1239, %v1300, %v1301
      %v1303 = vrot.slane %v790, 1
      %v1304 = vsel %vm1239, %v1301, %v1303
      %v1305 = vrot.slane %v792, 1
      %v1306 = vrot.slane %v793, 1
      %v1307 = vsel %vm1239, %v1305, %v1306
      %v1308 = vrot.slane %v794, 1
      %v1309 = vsel %vm1239, %v1306, %v1308
      %v1310 = vrot.slane %v796, 1
      %v1311 = vrot.slane %v797, 1
      %v1312 = vsel %vm1239, %v1310, %v1311
      %v1313 = vrot.slane %v798, 1
      %v1314 = vsel %vm1239, %v1311, %v1313
      %v1315 = vrot.slane %v800, 1
      %v1316 = vrot.slane %v801, 1
      %v1317 = vsel %vm1239, %v1315, %v1316
      %v1318 = vrot.slane %v802, 1
      %v1319 = vsel %vm1239, %v1316, %v1318
      %s1352 = scalar_lea.vmem %s5, 256
      %v1353 = vld [vmem:[%s1352] sm:$0xff]
      %v1354 = vld [vmem:[%s1352 + $0x8] sm:$0xff]
      %v1355 = vld [vmem:[%s1352 + $0x10] sm:$0xff]
      %v1356 = vld [vmem:[%s1352 + $0x18] sm:$0xff]
      %v1357 = vld [vmem:[%s1352 + $0x20] sm:$0xff]
      %v1358 = vld [vmem:[%s1352 + $0x28] sm:$0xff]
      %v1359 = vld [vmem:[%s1352 + $0x30] sm:$0xff]
      %v1360 = vld [vmem:[%s1352 + $0x38] sm:$0xff]
      %v1361 = vld [vmem:[%s1352 + $0x40] sm:$0xff]
      %v1362 = vld [vmem:[%s1352 + $0x48] sm:$0xff]
      %v1363 = vld [vmem:[%s1352 + $0x50] sm:$0xff]
      %v1364 = vld [vmem:[%s1352 + $0x58] sm:$0xff]
      %v1365 = vld [vmem:[%s1352 + $0x60] sm:$0xff]
      %v1366 = vld [vmem:[%s1352 + $0x68] sm:$0xff]
      %v1367 = vld [vmem:[%s1352 + $0x70] sm:$0xff]
      %v1368 = vld [vmem:[%s1352 + $0x78] sm:$0xff]
      %1369 = vmatpush.msra.mxu0 %v1368
      %1370 = vmatpush.msra.mxu0 %v1367
      %1371 = vmatpush.msra.mxu0 %v1366
      %1372 = vmatpush.msra.mxu0 %v1365
      %1373 = vmatpush.msra.mxu0 %v1364
      %1374 = vmatpush.msra.mxu0 %v1363
      %1375 = vmatpush.msra.mxu0 %v1362
      %1376 = vmatpush.msra.mxu0 %v1361
      %1377 = vmatpush.msra.mxu0 %v1360
      %1378 = vmatpush.msra.mxu0 %v1359
      %1379 = vmatpush.msra.mxu0 %v1358
      %1380 = vmatpush.msra.mxu0 %v1357
      %1381 = vmatpush.msra.mxu0 %v1356
      %1382 = vmatpush.msra.mxu0 %v1355
      %1383 = vmatpush.msra.mxu0 %v1354
      %1384 = vmatpush.msra.mxu0 %v1353
      %1385 = vmatmul.f32.gmra.mxu0 %v1242
      %v1386 = vpop.f32.mrf.mxu0
      %v1387 = vadd.f32 0.0, %v1386
      %1388 = vmatmul.f32.gmra.mxu0 %v1244
      %v1389 = vpop.f32.mrf.mxu0
      %v1390 = vadd.f32 0.0, %v1389
      %1391 = vmatmul.f32.gmra.mxu0 %v1247
      %v1392 = vpop.f32.mrf.mxu0
      %v1393 = vadd.f32 0.0, %v1392
      %1394 = vmatmul.f32.gmra.mxu0 %v1249
      %v1395 = vpop.f32.mrf.mxu0
      %v1396 = vadd.f32 0.0, %v1395
      %1397 = vmatmul.f32.gmra.mxu0 %v1252
      %v1398 = vpop.f32.mrf.mxu0
      %v1399 = vadd.f32 0.0, %v1398
      %1400 = vmatmul.f32.gmra.mxu0 %v1254
      %v1401 = vpop.f32.mrf.mxu0
      %v1402 = vadd.f32 0.0, %v1401
      %1403 = vmatmul.f32.gmra.mxu0 %v1257
      %v1404 = vpop.f32.mrf.mxu0
      %v1405 = vadd.f32 0.0, %v1404
      %1406 = vmatmul.f32.gmra.mxu0 %v1259
      %v1407 = vpop.f32.mrf.mxu0
      %v1408 = vadd.f32 0.0, %v1407
      %1409 = vmatmul.f32.gmra.mxu0 %v1262
      %v1410 = vpop.f32.mrf.mxu0
      %v1411 = vadd.f32 0.0, %v1410
      %1412 = vmatmul.f32.gmra.mxu0 %v1264
      %v1413 = vpop.f32.mrf.mxu0
      %v1414 = vadd.f32 0.0, %v1413
      %1415 = vmatmul.f32.gmra.mxu0 %v1267
      %v1416 = vpop.f32.mrf.mxu0
      %v1417 = vadd.f32 0.0, %v1416
      %1418 = vmatmul.f32.gmra.mxu0 %v1269
      %v1419 = vpop.f32.mrf.mxu0
      %v1420 = vadd.f32 0.0, %v1419
      %1421 = vmatmul.f32.gmra.mxu0 %v1272
      %v1422 = vpop.f32.mrf.mxu0
      %v1423 = vadd.f32 0.0, %v1422
      %1424 = vmatmul.f32.gmra.mxu0 %v1274
      %v1425 = vpop.f32.mrf.mxu0
      %v1426 = vadd.f32 0.0, %v1425
      %1427 = vmatmul.f32.gmra.mxu0 %v1277
      %v1428 = vpop.f32.mrf.mxu0
      %v1429 = vadd.f32 0.0, %v1428
      %1430 = vmatmul.f32.gmra.mxu0 %v1279
      %v1431 = vpop.f32.mrf.mxu0
      %v1432 = vadd.f32 0.0, %v1431
      %1433 = vmatmul.f32.gmra.mxu0 %v1282
      %v1434 = vpop.f32.mrf.mxu0
      %v1435 = vadd.f32 0.0, %v1434
      %1436 = vmatmul.f32.gmra.mxu0 %v1284
      %v1437 = vpop.f32.mrf.mxu0
      %v1438 = vadd.f32 0.0, %v1437
      %1439 = vmatmul.f32.gmra.mxu0 %v1287
      %v1440 = vpop.f32.mrf.mxu0
      %v1441 = vadd.f32 0.0, %v1440
      %1442 = vmatmul.f32.gmra.mxu0 %v1289
      %v1443 = vpop.f32.mrf.mxu0
      %v1444 = vadd.f32 0.0, %v1443
      %1445 = vmatmul.f32.gmra.mxu0 %v1292
      %v1446 = vpop.f32.mrf.mxu0
      %v1447 = vadd.f32 0.0, %v1446
      %1448 = vmatmul.f32.gmra.mxu0 %v1294
      %v1449 = vpop.f32.mrf.mxu0
      %v1450 = vadd.f32 0.0, %v1449
      %1451 = vmatmul.f32.gmra.mxu0 %v1297
      %v1452 = vpop.f32.mrf.mxu0
      %v1453 = vadd.f32 0.0, %v1452
      %1454 = vmatmul.f32.gmra.mxu0 %v1299
      %v1455 = vpop.f32.mrf.mxu0
      %v1456 = vadd.f32 0.0, %v1455
      %1457 = vmatmul.f32.gmra.mxu0 %v1302
      %v1458 = vpop.f32.mrf.mxu0
      %v1459 = vadd.f32 0.0, %v1458
      %1460 = vmatmul.f32.gmra.mxu0 %v1304
      %v1461 = vpop.f32.mrf.mxu0
      %v1462 = vadd.f32 0.0, %v1461
      %1463 = vmatmul.f32.gmra.mxu0 %v1307
      %v1464 = vpop.f32.mrf.mxu0
      %v1465 = vadd.f32 0.0, %v1464
      %1466 = vmatmul.f32.gmra.mxu0 %v1309
      %v1467 = vpop.f32.mrf.mxu0
      %v1468 = vadd.f32 0.0, %v1467
      %1469 = vmatmul.f32.gmra.mxu0 %v1312
      %v1470 = vpop.f32.mrf.mxu0
      %v1471 = vadd.f32 0.0, %v1470
      %1472 = vmatmul.f32.gmra.mxu0 %v1314
      %v1473 = vpop.f32.mrf.mxu0
      %v1474 = vadd.f32 0.0, %v1473
      %1475 = vmatmul.f32.gmra.mxu0 %v1317
      %v1476 = vpop.f32.mrf.mxu0
      %v1477 = vadd.f32 0.0, %v1476
      %1478 = vmatmul.f32.gmra.mxu0 %v1319
      %v1479 = vpop.f32.mrf.mxu0
      %v1480 = vadd.f32 0.0, %v1479
      %1481 = vdwg.mxu0
      %v1482 = vadd.f32 %v1128, %v1387
      %v1483 = vadd.f32 %v1131, %v1390
      %v1484 = vadd.f32 %v1134, %v1393
      %v1485 = vadd.f32 %v1137, %v1396
      %v1486 = vadd.f32 %v1140, %v1399
      %v1487 = vadd.f32 %v1143, %v1402
      %v1488 = vadd.f32 %v1146, %v1405
      %v1489 = vadd.f32 %v1149, %v1408
      %v1490 = vadd.f32 %v1152, %v1411
      %v1491 = vadd.f32 %v1155, %v1414
      %v1492 = vadd.f32 %v1158, %v1417
      %v1493 = vadd.f32 %v1161, %v1420
      %v1494 = vadd.f32 %v1164, %v1423
      %v1495 = vadd.f32 %v1167, %v1426
      %v1496 = vadd.f32 %v1170, %v1429
      %v1497 = vadd.f32 %v1173, %v1432
      %v1498 = vadd.f32 %v1176, %v1435
      %v1499 = vadd.f32 %v1179, %v1438
      %v1500 = vadd.f32 %v1182, %v1441
      %v1501 = vadd.f32 %v1185, %v1444
      %v1502 = vadd.f32 %v1188, %v1447
      %v1503 = vadd.f32 %v1191, %v1450
      %v1504 = vadd.f32 %v1194, %v1453
      %v1505 = vadd.f32 %v1197, %v1456
      %v1506 = vadd.f32 %v1200, %v1459
      %v1507 = vadd.f32 %v1203, %v1462
      %v1508 = vadd.f32 %v1206, %v1465
      %v1509 = vadd.f32 %v1209, %v1468
      %v1510 = vadd.f32 %v1212, %v1471
      %v1511 = vadd.f32 %v1215, %v1474
      %v1512 = vadd.f32 %v1218, %v1477
      %v1513 = vadd.f32 %v1221, %v1480
      %v1514 = vld [vmem:[%s706] sm:$0xff]
      %v1515 = vld [vmem:[%s706 + $0x8] sm:$0xff]
      %v1516 = vld [vmem:[%s706 + $0x10] sm:$0xff]
      %v1517 = vld [vmem:[%s706 + $0x18] sm:$0xff]
      %v1518 = vld [vmem:[%s706 + $0x20] sm:$0xff]
      %v1519 = vld [vmem:[%s706 + $0x28] sm:$0xff]
      %v1520 = vld [vmem:[%s706 + $0x30] sm:$0xff]
      %v1521 = vld [vmem:[%s706 + $0x38] sm:$0xff]
      %v1522 = vld [vmem:[%s706 + $0x40] sm:$0xff]
      %v1523 = vld [vmem:[%s706 + $0x48] sm:$0xff]
      %v1524 = vld [vmem:[%s706 + $0x50] sm:$0xff]
      %v1525 = vld [vmem:[%s706 + $0x58] sm:$0xff]
      %v1526 = vld [vmem:[%s706 + $0x60] sm:$0xff]
      %v1527 = vld [vmem:[%s706 + $0x68] sm:$0xff]
      %v1528 = vld [vmem:[%s706 + $0x70] sm:$0xff]
      %v1529 = vld [vmem:[%s706 + $0x78] sm:$0xff]
      %v1530 = vld [vmem:[%s706 + $0x80] sm:$0xff]
      %v1531 = vld [vmem:[%s706 + $0x88] sm:$0xff]
      %v1532 = vld [vmem:[%s706 + $0x90] sm:$0xff]
      %v1533 = vld [vmem:[%s706 + $0x98] sm:$0xff]
      %v1534 = vld [vmem:[%s706 + $0xa0] sm:$0xff]
      %v1535 = vld [vmem:[%s706 + $0xa8] sm:$0xff]
      %v1536 = vld [vmem:[%s706 + $0xb0] sm:$0xff]
      %v1537 = vld [vmem:[%s706 + $0xb8] sm:$0xff]
      %v1538 = vld [vmem:[%s706 + $0xc0] sm:$0xff]
      %v1539 = vld [vmem:[%s706 + $0xc8] sm:$0xff]
      %v1540 = vld [vmem:[%s706 + $0xd0] sm:$0xff]
      %v1541 = vld [vmem:[%s706 + $0xd8] sm:$0xff]
      %v1542 = vld [vmem:[%s706 + $0xe0] sm:$0xff]
      %v1543 = vld [vmem:[%s706 + $0xe8] sm:$0xff]
      %v1544 = vld [vmem:[%s706 + $0xf0] sm:$0xff]
      %v1545 = vld [vmem:[%s706 + $0xf8] sm:$0xff]
      %v1546 = vld [vmem:[%s706 + $0x100] sm:$0xff]
      %v1547 = vld [vmem:[%s706 + $0x108] sm:$0xff]
      %v1548 = vld [vmem:[%s706 + $0x110] sm:$0xff]
      %v1549 = vld [vmem:[%s706 + $0x118] sm:$0xff]
      %v1550 = vld [vmem:[%s706 + $0x120] sm:$0xff]
      %v1551 = vld [vmem:[%s706 + $0x128] sm:$0xff]
      %v1552 = vld [vmem:[%s706 + $0x130] sm:$0xff]
      %v1553 = vld [vmem:[%s706 + $0x138] sm:$0xff]
      %v1554 = vld [vmem:[%s706 + $0x140] sm:$0xff]
      %v1555 = vld [vmem:[%s706 + $0x148] sm:$0xff]
      %v1556 = vld [vmem:[%s706 + $0x150] sm:$0xff]
      %v1557 = vld [vmem:[%s706 + $0x158] sm:$0xff]
      %v1558 = vld [vmem:[%s706 + $0x160] sm:$0xff]
      %v1559 = vld [vmem:[%s706 + $0x168] sm:$0xff]
      %v1560 = vld [vmem:[%s706 + $0x170] sm:$0xff]
      %v1561 = vld [vmem:[%s706 + $0x178] sm:$0xff]
      %v1562 = vld [vmem:[%s706 + $0x180] sm:$0xff]
      %v1563 = vld [vmem:[%s706 + $0x188] sm:$0xff]
      %v1564 = vld [vmem:[%s706 + $0x190] sm:$0xff]
      %v1565 = vld [vmem:[%s706 + $0x198] sm:$0xff]
      %v1566 = vld [vmem:[%s706 + $0x1a0] sm:$0xff]
      %v1567 = vld [vmem:[%s706 + $0x1a8] sm:$0xff]
      %v1568 = vld [vmem:[%s706 + $0x1b0] sm:$0xff]
      %v1569 = vld [vmem:[%s706 + $0x1b8] sm:$0xff]
      %v1570 = vld [vmem:[%s706 + $0x1c0] sm:$0xff]
      %v1571 = vld [vmem:[%s706 + $0x1c8] sm:$0xff]
      %v1572 = vld [vmem:[%s706 + $0x1d0] sm:$0xff]
      %v1573 = vld [vmem:[%s706 + $0x1d8] sm:$0xff]
      %v1574 = vld [vmem:[%s706 + $0x1e0] sm:$0xff]
      %v1575 = vld [vmem:[%s706 + $0x1e8] sm:$0xff]
      %v1576 = vld [vmem:[%s706 + $0x1f0] sm:$0xff]
      %v1577 = vld [vmem:[%s706 + $0x1f8] sm:$0xff]
      %v1626 = vrot.slane %v1514, 7
      %v1627 = vrot.slane %v1515, 7
      %v1628 = vsel %vm851, %v1626, %v1627
      %v1629 = vrot.slane %v1516, 7
      %v1630 = vsel %vm851, %v1627, %v1629
      %v1631 = vrot.slane %v1518, 7
      %v1632 = vrot.slane %v1519, 7
      %v1633 = vsel %vm851, %v1631, %v1632
      %v1634 = vrot.slane %v1520, 7
      %v1635 = vsel %vm851, %v1632, %v1634
      %v1636 = vrot.slane %v1522, 7
      %v1637 = vrot.slane %v1523, 7
      %v1638 = vsel %vm851, %v1636, %v1637
      %v1639 = vrot.slane %v1524, 7
      %v1640 = vsel %vm851, %v1637, %v1639
      %v1641 = vrot.slane %v1526, 7
      %v1642 = vrot.slane %v1527, 7
      %v1643 = vsel %vm851, %v1641, %v1642
      %v1644 = vrot.slane %v1528, 7
      %v1645 = vsel %vm851, %v1642, %v1644
      %v1646 = vrot.slane %v1530, 7
      %v1647 = vrot.slane %v1531, 7
      %v1648 = vsel %vm851, %v1646, %v1647
      %v1649 = vrot.slane %v1532, 7
      %v1650 = vsel %vm851, %v1647, %v1649
      %v1651 = vrot.slane %v1534, 7
      %v1652 = vrot.slane %v1535, 7
      %v1653 = vsel %vm851, %v1651, %v1652
      %v1654 = vrot.slane %v1536, 7
      %v1655 = vsel %vm851, %v1652, %v1654
      %v1656 = vrot.slane %v1538, 7
      %v1657 = vrot.slane %v1539, 7
      %v1658 = vsel %vm851, %v1656, %v1657
      %v1659 = vrot.slane %v1540, 7
      %v1660 = vsel %vm851, %v1657, %v1659
      %v1661 = vrot.slane %v1542, 7
      %v1662 = vrot.slane %v1543, 7
      %v1663 = vsel %vm851, %v1661, %v1662
      %v1664 = vrot.slane %v1544, 7
      %v1665 = vsel %vm851, %v1662, %v1664
      %v1666 = vrot.slane %v1546, 7
      %v1667 = vrot.slane %v1547, 7
      %v1668 = vsel %vm851, %v1666, %v1667
      %v1669 = vrot.slane %v1548, 7
      %v1670 = vsel %vm851, %v1667, %v1669
      %v1671 = vrot.slane %v1550, 7
      %v1672 = vrot.slane %v1551, 7
      %v1673 = vsel %vm851, %v1671, %v1672
      %v1674 = vrot.slane %v1552, 7
      %v1675 = vsel %vm851, %v1672, %v1674
      %v1676 = vrot.slane %v1554, 7
      %v1677 = vrot.slane %v1555, 7
      %v1678 = vsel %vm851, %v1676, %v1677
      %v1679 = vrot.slane %v1556, 7
      %v1680 = vsel %vm851, %v1677, %v1679
      %v1681 = vrot.slane %v1558, 7
      %v1682 = vrot.slane %v1559, 7
      %v1683 = vsel %vm851, %v1681, %v1682
      %v1684 = vrot.slane %v1560, 7
      %v1685 = vsel %vm851, %v1682, %v1684
      %v1686 = vrot.slane %v1562, 7
      %v1687 = vrot.slane %v1563, 7
      %v1688 = vsel %vm851, %v1686, %v1687
      %v1689 = vrot.slane %v1564, 7
      %v1690 = vsel %vm851, %v1687, %v1689
      %v1691 = vrot.slane %v1566, 7
      %v1692 = vrot.slane %v1567, 7
      %v1693 = vsel %vm851, %v1691, %v1692
      %v1694 = vrot.slane %v1568, 7
      %v1695 = vsel %vm851, %v1692, %v1694
      %v1696 = vrot.slane %v1570, 7
      %v1697 = vrot.slane %v1571, 7
      %v1698 = vsel %vm851, %v1696, %v1697
      %v1699 = vrot.slane %v1572, 7
      %v1700 = vsel %vm851, %v1697, %v1699
      %v1701 = vrot.slane %v1574, 7
      %v1702 = vrot.slane %v1575, 7
      %v1703 = vsel %vm851, %v1701, %v1702
      %v1704 = vrot.slane %v1576, 7
      %v1705 = vsel %vm851, %v1702, %v1704
      %s1738 = scalar_lea.vmem %s5, 384
      %v1739 = vld [vmem:[%s1738] sm:$0xff]
      %v1740 = vld [vmem:[%s1738 + $0x8] sm:$0xff]
      %v1741 = vld [vmem:[%s1738 + $0x10] sm:$0xff]
      %v1742 = vld [vmem:[%s1738 + $0x18] sm:$0xff]
      %v1743 = vld [vmem:[%s1738 + $0x20] sm:$0xff]
      %v1744 = vld [vmem:[%s1738 + $0x28] sm:$0xff]
      %v1745 = vld [vmem:[%s1738 + $0x30] sm:$0xff]
      %v1746 = vld [vmem:[%s1738 + $0x38] sm:$0xff]
      %v1747 = vld [vmem:[%s1738 + $0x40] sm:$0xff]
      %v1748 = vld [vmem:[%s1738 + $0x48] sm:$0xff]
      %v1749 = vld [vmem:[%s1738 + $0x50] sm:$0xff]
      %v1750 = vld [vmem:[%s1738 + $0x58] sm:$0xff]
      %v1751 = vld [vmem:[%s1738 + $0x60] sm:$0xff]
      %v1752 = vld [vmem:[%s1738 + $0x68] sm:$0xff]
      %v1753 = vld [vmem:[%s1738 + $0x70] sm:$0xff]
      %v1754 = vld [vmem:[%s1738 + $0x78] sm:$0xff]
      %1755 = vmatpush.msra.mxu0 %v1754
      %1756 = vmatpush.msra.mxu0 %v1753
      %1757 = vmatpush.msra.mxu0 %v1752
      %1758 = vmatpush.msra.mxu0 %v1751
      %1759 = vmatpush.msra.mxu0 %v1750
      %1760 = vmatpush.msra.mxu0 %v1749
      %1761 = vmatpush.msra.mxu0 %v1748
      %1762 = vmatpush.msra.mxu0 %v1747
      %1763 = vmatpush.msra.mxu0 %v1746
      %1764 = vmatpush.msra.mxu0 %v1745
      %1765 = vmatpush.msra.mxu0 %v1744
      %1766 = vmatpush.msra.mxu0 %v1743
      %1767 = vmatpush.msra.mxu0 %v1742
      %1768 = vmatpush.msra.mxu0 %v1741
      %1769 = vmatpush.msra.mxu0 %v1740
      %1770 = vmatpush.msra.mxu0 %v1739
      %1771 = vmatmul.f32.gmra.mxu0 %v1628
      %v1772 = vpop.f32.mrf.mxu0
      %v1773 = vadd.f32 0.0, %v1772
      %1774 = vmatmul.f32.gmra.mxu0 %v1630
      %v1775 = vpop.f32.mrf.mxu0
      %v1776 = vadd.f32 0.0, %v1775
      %1777 = vmatmul.f32.gmra.mxu0 %v1633
      %v1778 = vpop.f32.mrf.mxu0
      %v1779 = vadd.f32 0.0, %v1778
      %1780 = vmatmul.f32.gmra.mxu0 %v1635
      %v1781 = vpop.f32.mrf.mxu0
      %v1782 = vadd.f32 0.0, %v1781
      %1783 = vmatmul.f32.gmra.mxu0 %v1638
      %v1784 = vpop.f32.mrf.mxu0
      %v1785 = vadd.f32 0.0, %v1784
      %1786 = vmatmul.f32.gmra.mxu0 %v1640
      %v1787 = vpop.f32.mrf.mxu0
      %v1788 = vadd.f32 0.0, %v1787
      %1789 = vmatmul.f32.gmra.mxu0 %v1643
      %v1790 = vpop.f32.mrf.mxu0
      %v1791 = vadd.f32 0.0, %v1790
      %1792 = vmatmul.f32.gmra.mxu0 %v1645
      %v1793 = vpop.f32.mrf.mxu0
      %v1794 = vadd.f32 0.0, %v1793
      %1795 = vmatmul.f32.gmra.mxu0 %v1648
      %v1796 = vpop.f32.mrf.mxu0
      %v1797 = vadd.f32 0.0, %v1796
      %1798 = vmatmul.f32.gmra.mxu0 %v1650
      %v1799 = vpop.f32.mrf.mxu0
      %v1800 = vadd.f32 0.0, %v1799
      %1801 = vmatmul.f32.gmra.mxu0 %v1653
      %v1802 = vpop.f32.mrf.mxu0
      %v1803 = vadd.f32 0.0, %v1802
      %1804 = vmatmul.f32.gmra.mxu0 %v1655
      %v1805 = vpop.f32.mrf.mxu0
      %v1806 = vadd.f32 0.0, %v1805
      %1807 = vmatmul.f32.gmra.mxu0 %v1658
      %v1808 = vpop.f32.mrf.mxu0
      %v1809 = vadd.f32 0.0, %v1808
      %1810 = vmatmul.f32.gmra.mxu0 %v1660
      %v1811 = vpop.f32.mrf.mxu0
      %v1812 = vadd.f32 0.0, %v1811
      %1813 = vmatmul.f32.gmra.mxu0 %v1663
      %v1814 = vpop.f32.mrf.mxu0
      %v1815 = vadd.f32 0.0, %v1814
      %1816 = vmatmul.f32.gmra.mxu0 %v1665
      %v1817 = vpop.f32.mrf.mxu0
      %v1818 = vadd.f32 0.0, %v1817
      %1819 = vmatmul.f32.gmra.mxu0 %v1668
      %v1820 = vpop.f32.mrf.mxu0
      %v1821 = vadd.f32 0.0, %v1820
      %1822 = vmatmul.f32.gmra.mxu0 %v1670
      %v1823 = vpop.f32.mrf.mxu0
      %v1824 = vadd.f32 0.0, %v1823
      %1825 = vmatmul.f32.gmra.mxu0 %v1673
      %v1826 = vpop.f32.mrf.mxu0
      %v1827 = vadd.f32 0.0, %v1826
      %1828 = vmatmul.f32.gmra.mxu0 %v1675
      %v1829 = vpop.f32.mrf.mxu0
      %v1830 = vadd.f32 0.0, %v1829
      %1831 = vmatmul.f32.gmra.mxu0 %v1678
      %v1832 = vpop.f32.mrf.mxu0
      %v1833 = vadd.f32 0.0, %v1832
      %1834 = vmatmul.f32.gmra.mxu0 %v1680
      %v1835 = vpop.f32.mrf.mxu0
      %v1836 = vadd.f32 0.0, %v1835
      %1837 = vmatmul.f32.gmra.mxu0 %v1683
      %v1838 = vpop.f32.mrf.mxu0
      %v1839 = vadd.f32 0.0, %v1838
      %1840 = vmatmul.f32.gmra.mxu0 %v1685
      %v1841 = vpop.f32.mrf.mxu0
      %v1842 = vadd.f32 0.0, %v1841
      %1843 = vmatmul.f32.gmra.mxu0 %v1688
      %v1844 = vpop.f32.mrf.mxu0
      %v1845 = vadd.f32 0.0, %v1844
      %1846 = vmatmul.f32.gmra.mxu0 %v1690
      %v1847 = vpop.f32.mrf.mxu0
      %v1848 = vadd.f32 0.0, %v1847
      %1849 = vmatmul.f32.gmra.mxu0 %v1693
      %v1850 = vpop.f32.mrf.mxu0
      %v1851 = vadd.f32 0.0, %v1850
      %1852 = vmatmul.f32.gmra.mxu0 %v1695
      %v1853 = vpop.f32.mrf.mxu0
      %v1854 = vadd.f32 0.0, %v1853
      %1855 = vmatmul.f32.gmra.mxu0 %v1698
      %v1856 = vpop.f32.mrf.mxu0
      %v1857 = vadd.f32 0.0, %v1856
      %1858 = vmatmul.f32.gmra.mxu0 %v1700
      %v1859 = vpop.f32.mrf.mxu0
      %v1860 = vadd.f32 0.0, %v1859
      %1861 = vmatmul.f32.gmra.mxu0 %v1703
      %v1862 = vpop.f32.mrf.mxu0
      %v1863 = vadd.f32 0.0, %v1862
      %1864 = vmatmul.f32.gmra.mxu0 %v1705
      %v1865 = vpop.f32.mrf.mxu0
      %v1866 = vadd.f32 0.0, %v1865
      %1867 = vdwg.mxu0
      %v1868 = vadd.f32 %v1482, %v1773
      %v1869 = vadd.f32 %v1483, %v1776
      %v1870 = vadd.f32 %v1484, %v1779
      %v1871 = vadd.f32 %v1485, %v1782
      %v1872 = vadd.f32 %v1486, %v1785
      %v1873 = vadd.f32 %v1487, %v1788
      %v1874 = vadd.f32 %v1488, %v1791
      %v1875 = vadd.f32 %v1489, %v1794
      %v1876 = vadd.f32 %v1490, %v1797
      %v1877 = vadd.f32 %v1491, %v1800
      %v1878 = vadd.f32 %v1492, %v1803
      %v1879 = vadd.f32 %v1493, %v1806
      %v1880 = vadd.f32 %v1494, %v1809
      %v1881 = vadd.f32 %v1495, %v1812
      %v1882 = vadd.f32 %v1496, %v1815
      %v1883 = vadd.f32 %v1497, %v1818
      %v1884 = vadd.f32 %v1498, %v1821
      %v1885 = vadd.f32 %v1499, %v1824
      %v1886 = vadd.f32 %v1500, %v1827
      %v1887 = vadd.f32 %v1501, %v1830
      %v1888 = vadd.f32 %v1502, %v1833
      %v1889 = vadd.f32 %v1503, %v1836
      %v1890 = vadd.f32 %v1504, %v1839
      %v1891 = vadd.f32 %v1505, %v1842
      %v1892 = vadd.f32 %v1506, %v1845
      %v1893 = vadd.f32 %v1507, %v1848
      %v1894 = vadd.f32 %v1508, %v1851
      %v1895 = vadd.f32 %v1509, %v1854
      %v1896 = vadd.f32 %v1510, %v1857
      %v1897 = vadd.f32 %v1511, %v1860
      %v1898 = vadd.f32 %v1512, %v1863
      %v1899 = vadd.f32 %v1513, %v1866
      %s1900 = scalar_lea.vmem %s5, 512
      %v1901 = vld [vmem:[%s1900] sm:$0xff]
      %v1902 = vld [vmem:[%s1900 + $0x8] sm:$0xff]
      %v1903 = vld [vmem:[%s1900 + $0x10] sm:$0xff]
      %v1904 = vld [vmem:[%s1900 + $0x18] sm:$0xff]
      %v1905 = vld [vmem:[%s1900 + $0x20] sm:$0xff]
      %v1906 = vld [vmem:[%s1900 + $0x28] sm:$0xff]
      %v1907 = vld [vmem:[%s1900 + $0x30] sm:$0xff]
      %v1908 = vld [vmem:[%s1900 + $0x38] sm:$0xff]
      %v1909 = vld [vmem:[%s1900 + $0x40] sm:$0xff]
      %v1910 = vld [vmem:[%s1900 + $0x48] sm:$0xff]
      %v1911 = vld [vmem:[%s1900 + $0x50] sm:$0xff]
      %v1912 = vld [vmem:[%s1900 + $0x58] sm:$0xff]
      %v1913 = vld [vmem:[%s1900 + $0x60] sm:$0xff]
      %v1914 = vld [vmem:[%s1900 + $0x68] sm:$0xff]
      %v1915 = vld [vmem:[%s1900 + $0x70] sm:$0xff]
      %v1916 = vld [vmem:[%s1900 + $0x78] sm:$0xff]
      %1917 = vmatpush.msra.mxu0 %v1916
      %1918 = vmatpush.msra.mxu0 %v1915
      %1919 = vmatpush.msra.mxu0 %v1914
      %1920 = vmatpush.msra.mxu0 %v1913
      %1921 = vmatpush.msra.mxu0 %v1912
      %1922 = vmatpush.msra.mxu0 %v1911
      %1923 = vmatpush.msra.mxu0 %v1910
      %1924 = vmatpush.msra.mxu0 %v1909
      %1925 = vmatpush.msra.mxu0 %v1908
      %1926 = vmatpush.msra.mxu0 %v1907
      %1927 = vmatpush.msra.mxu0 %v1906
      %1928 = vmatpush.msra.mxu0 %v1905
      %1929 = vmatpush.msra.mxu0 %v1904
      %1930 = vmatpush.msra.mxu0 %v1903
      %1931 = vmatpush.msra.mxu0 %v1902
      %1932 = vmatpush.msra.mxu0 %v1901
      %1933 = vmatmul.f32.gmra.mxu0 %v1515
      %v1934 = vpop.f32.mrf.mxu0
      %v1935 = vadd.f32 0.0, %v1934
      %1936 = vmatmul.f32.gmra.mxu0 %v1516
      %v1937 = vpop.f32.mrf.mxu0
      %v1938 = vadd.f32 0.0, %v1937
      %1939 = vmatmul.f32.gmra.mxu0 %v1519
      %v1940 = vpop.f32.mrf.mxu0
      %v1941 = vadd.f32 0.0, %v1940
      %1942 = vmatmul.f32.gmra.mxu0 %v1520
      %v1943 = vpop.f32.mrf.mxu0
      %v1944 = vadd.f32 0.0, %v1943
      %1945 = vmatmul.f32.gmra.mxu0 %v1523
      %v1946 = vpop.f32.mrf.mxu0
      %v1947 = vadd.f32 0.0, %v1946
      %1948 = vmatmul.f32.gmra.mxu0 %v1524
      %v1949 = vpop.f32.mrf.mxu0
      %v1950 = vadd.f32 0.0, %v1949
      %1951 = vmatmul.f32.gmra.mxu0 %v1527
      %v1952 = vpop.f32.mrf.mxu0
      %v1953 = vadd.f32 0.0, %v1952
      %1954 = vmatmul.f32.gmra.mxu0 %v1528
      %v1955 = vpop.f32.mrf.mxu0
      %v1956 = vadd.f32 0.0, %v1955
      %1957 = vmatmul.f32.gmra.mxu0 %v1531
      %v1958 = vpop.f32.mrf.mxu0
      %v1959 = vadd.f32 0.0, %v1958
      %1960 = vmatmul.f32.gmra.mxu0 %v1532
      %v1961 = vpop.f32.mrf.mxu0
      %v1962 = vadd.f32 0.0, %v1961
      %1963 = vmatmul.f32.gmra.mxu0 %v1535
      %v1964 = vpop.f32.mrf.mxu0
      %v1965 = vadd.f32 0.0, %v1964
      %1966 = vmatmul.f32.gmra.mxu0 %v1536
      %v1967 = vpop.f32.mrf.mxu0
      %v1968 = vadd.f32 0.0, %v1967
      %1969 = vmatmul.f32.gmra.mxu0 %v1539
      %v1970 = vpop.f32.mrf.mxu0
      %v1971 = vadd.f32 0.0, %v1970
      %1972 = vmatmul.f32.gmra.mxu0 %v1540
      %v1973 = vpop.f32.mrf.mxu0
      %v1974 = vadd.f32 0.0, %v1973
      %1975 = vmatmul.f32.gmra.mxu0 %v1543
      %v1976 = vpop.f32.mrf.mxu0
      %v1977 = vadd.f32 0.0, %v1976
      %1978 = vmatmul.f32.gmra.mxu0 %v1544
      %v1979 = vpop.f32.mrf.mxu0
      %v1980 = vadd.f32 0.0, %v1979
      %1981 = vmatmul.f32.gmra.mxu0 %v1547
      %v1982 = vpop.f32.mrf.mxu0
      %v1983 = vadd.f32 0.0, %v1982
      %1984 = vmatmul.f32.gmra.mxu0 %v1548
      %v1985 = vpop.f32.mrf.mxu0
      %v1986 = vadd.f32 0.0, %v1985
      %1987 = vmatmul.f32.gmra.mxu0 %v1551
      %v1988 = vpop.f32.mrf.mxu0
      %v1989 = vadd.f32 0.0, %v1988
      %1990 = vmatmul.f32.gmra.mxu0 %v1552
      %v1991 = vpop.f32.mrf.mxu0
      %v1992 = vadd.f32 0.0, %v1991
      %1993 = vmatmul.f32.gmra.mxu0 %v1555
      %v1994 = vpop.f32.mrf.mxu0
      %v1995 = vadd.f32 0.0, %v1994
      %1996 = vmatmul.f32.gmra.mxu0 %v1556
      %v1997 = vpop.f32.mrf.mxu0
      %v1998 = vadd.f32 0.0, %v1997
      %1999 = vmatmul.f32.gmra.mxu0 %v1559
      %v2000 = vpop.f32.mrf.mxu0
      %v2001 = vadd.f32 0.0, %v2000
      %2002 = vmatmul.f32.gmra.mxu0 %v1560
      %v2003 = vpop.f32.mrf.mxu0
      %v2004 = vadd.f32 0.0, %v2003
      %2005 = vmatmul.f32.gmra.mxu0 %v1563
      %v2006 = vpop.f32.mrf.mxu0
      %v2007 = vadd.f32 0.0, %v2006
      %2008 = vmatmul.f32.gmra.mxu0 %v1564
      %v2009 = vpop.f32.mrf.mxu0
      %v2010 = vadd.f32 0.0, %v2009
      %2011 = vmatmul.f32.gmra.mxu0 %v1567
      %v2012 = vpop.f32.mrf.mxu0
      %v2013 = vadd.f32 0.0, %v2012
      %2014 = vmatmul.f32.gmra.mxu0 %v1568
      %v2015 = vpop.f32.mrf.mxu0
      %v2016 = vadd.f32 0.0, %v2015
      %2017 = vmatmul.f32.gmra.mxu0 %v1571
      %v2018 = vpop.f32.mrf.mxu0
      %v2019 = vadd.f32 0.0, %v2018
      %2020 = vmatmul.f32.gmra.mxu0 %v1572
      %v2021 = vpop.f32.mrf.mxu0
      %v2022 = vadd.f32 0.0, %v2021
      %2023 = vmatmul.f32.gmra.mxu0 %v1575
      %v2024 = vpop.f32.mrf.mxu0
      %v2025 = vadd.f32 0.0, %v2024
      %2026 = vmatmul.f32.gmra.mxu0 %v1576
      %v2027 = vpop.f32.mrf.mxu0
      %v2028 = vadd.f32 0.0, %v2027
      %2029 = vdwg.mxu0
      %v2030 = vadd.f32 %v1868, %v1935
      %v2031 = vadd.f32 %v1869, %v1938
      %v2032 = vadd.f32 %v1870, %v1941
      %v2033 = vadd.f32 %v1871, %v1944
      %v2034 = vadd.f32 %v1872, %v1947
      %v2035 = vadd.f32 %v1873, %v1950
      %v2036 = vadd.f32 %v1874, %v1953
      %v2037 = vadd.f32 %v1875, %v1956
      %v2038 = vadd.f32 %v1876, %v1959
      %v2039 = vadd.f32 %v1877, %v1962
      %v2040 = vadd.f32 %v1878, %v1965
      %v2041 = vadd.f32 %v1879, %v1968
      %v2042 = vadd.f32 %v1880, %v1971
      %v2043 = vadd.f32 %v1881, %v1974
      %v2044 = vadd.f32 %v1882, %v1977
      %v2045 = vadd.f32 %v1883, %v1980
      %v2046 = vadd.f32 %v1884, %v1983
      %v2047 = vadd.f32 %v1885, %v1986
      %v2048 = vadd.f32 %v1886, %v1989
      %v2049 = vadd.f32 %v1887, %v1992
      %v2050 = vadd.f32 %v1888, %v1995
      %v2051 = vadd.f32 %v1889, %v1998
      %v2052 = vadd.f32 %v1890, %v2001
      %v2053 = vadd.f32 %v1891, %v2004
      %v2054 = vadd.f32 %v1892, %v2007
      %v2055 = vadd.f32 %v1893, %v2010
      %v2056 = vadd.f32 %v1894, %v2013
      %v2057 = vadd.f32 %v1895, %v2016
      %v2058 = vadd.f32 %v1896, %v2019
      %v2059 = vadd.f32 %v1897, %v2022
      %v2060 = vadd.f32 %v1898, %v2025
      %v2061 = vadd.f32 %v1899, %v2028
      %v2078 = vrot.slane %v1515, 1
      %v2079 = vrot.slane %v1516, 1
      %v2080 = vsel %vm1239, %v2078, %v2079
      %v2081 = vrot.slane %v1517, 1
      %v2082 = vsel %vm1239, %v2079, %v2081
      %v2083 = vrot.slane %v1519, 1
      %v2084 = vrot.slane %v1520, 1
      %v2085 = vsel %vm1239, %v2083, %v2084
      %v2086 = vrot.slane %v1521, 1
      %v2087 = vsel %vm1239, %v2084, %v2086
      %v2088 = vrot.slane %v1523, 1
      %v2089 = vrot.slane %v1524, 1
      %v2090 = vsel %vm1239, %v2088, %v2089
      %v2091 = vrot.slane %v1525, 1
      %v2092 = vsel %vm1239, %v2089, %v2091
      %v2093 = vrot.slane %v1527, 1
      %v2094 = vrot.slane %v1528, 1
      %v2095 = vsel %vm1239, %v2093, %v2094
      %v2096 = vrot.slane %v1529, 1
      %v2097 = vsel %vm1239, %v2094, %v2096
      %v2098 = vrot.slane %v1531, 1
      %v2099 = vrot.slane %v1532, 1
      %v2100 = vsel %vm1239, %v2098, %v2099
      %v2101 = vrot.slane %v1533, 1
      %v2102 = vsel %vm1239, %v2099, %v2101
      %v2103 = vrot.slane %v1535, 1
      %v2104 = vrot.slane %v1536, 1
      %v2105 = vsel %vm1239, %v2103, %v2104
      %v2106 = vrot.slane %v1537, 1
      %v2107 = vsel %vm1239, %v2104, %v2106
      %v2108 = vrot.slane %v1539, 1
      %v2109 = vrot.slane %v1540, 1
      %v2110 = vsel %vm1239, %v2108, %v2109
      %v2111 = vrot.slane %v1541, 1
      %v2112 = vsel %vm1239, %v2109, %v2111
      %v2113 = vrot.slane %v1543, 1
      %v2114 = vrot.slane %v1544, 1
      %v2115 = vsel %vm1239, %v2113, %v2114
      %v2116 = vrot.slane %v1545, 1
      %v2117 = vsel %vm1239, %v2114, %v2116
      %v2118 = vrot.slane %v1547, 1
      %v2119 = vrot.slane %v1548, 1
      %v2120 = vsel %vm1239, %v2118, %v2119
      %v2121 = vrot.slane %v1549, 1
      %v2122 = vsel %vm1239, %v2119, %v2121
      %v2123 = vrot.slane %v1551, 1
      %v2124 = vrot.slane %v1552, 1
      %v2125 = vsel %vm1239, %v2123, %v2124
      %v2126 = vrot.slane %v1553, 1
      %v2127 = vsel %vm1239, %v2124, %v2126
      %v2128 = vrot.slane %v1555, 1
      %v2129 = vrot.slane %v1556, 1
      %v2130 = vsel %vm1239, %v2128, %v2129
      %v2131 = vrot.slane %v1557, 1
      %v2132 = vsel %vm1239, %v2129, %v2131
      %v2133 = vrot.slane %v1559, 1
      %v2134 = vrot.slane %v1560, 1
      %v2135 = vsel %vm1239, %v2133, %v2134
      %v2136 = vrot.slane %v1561, 1
      %v2137 = vsel %vm1239, %v2134, %v2136
      %v2138 = vrot.slane %v1563, 1
      %v2139 = vrot.slane %v1564, 1
      %v2140 = vsel %vm1239, %v2138, %v2139
      %v2141 = vrot.slane %v1565, 1
      %v2142 = vsel %vm1239, %v2139, %v2141
      %v2143 = vrot.slane %v1567, 1
      %v2144 = vrot.slane %v1568, 1
      %v2145 = vsel %vm1239, %v2143, %v2144
      %v2146 = vrot.slane %v1569, 1
      %v2147 = vsel %vm1239, %v2144, %v2146
      %v2148 = vrot.slane %v1571, 1
      %v2149 = vrot.slane %v1572, 1
      %v2150 = vsel %vm1239, %v2148, %v2149
      %v2151 = vrot.slane %v1573, 1
      %v2152 = vsel %vm1239, %v2149, %v2151
      %v2153 = vrot.slane %v1575, 1
      %v2154 = vrot.slane %v1576, 1
      %v2155 = vsel %vm1239, %v2153, %v2154
      %v2156 = vrot.slane %v1577, 1
      %v2157 = vsel %vm1239, %v2154, %v2156
      %s2190 = scalar_lea.vmem %s5, 640
      %v2191 = vld [vmem:[%s2190] sm:$0xff]
      %v2192 = vld [vmem:[%s2190 + $0x8] sm:$0xff]
      %v2193 = vld [vmem:[%s2190 + $0x10] sm:$0xff]
      %v2194 = vld [vmem:[%s2190 + $0x18] sm:$0xff]
      %v2195 = vld [vmem:[%s2190 + $0x20] sm:$0xff]
      %v2196 = vld [vmem:[%s2190 + $0x28] sm:$0xff]
      %v2197 = vld [vmem:[%s2190 + $0x30] sm:$0xff]
      %v2198 = vld [vmem:[%s2190 + $0x38] sm:$0xff]
      %v2199 = vld [vmem:[%s2190 + $0x40] sm:$0xff]
      %v2200 = vld [vmem:[%s2190 + $0x48] sm:$0xff]
      %v2201 = vld [vmem:[%s2190 + $0x50] sm:$0xff]
      %v2202 = vld [vmem:[%s2190 + $0x58] sm:$0xff]
      %v2203 = vld [vmem:[%s2190 + $0x60] sm:$0xff]
      %v2204 = vld [vmem:[%s2190 + $0x68] sm:$0xff]
      %v2205 = vld [vmem:[%s2190 + $0x70] sm:$0xff]
      %v2206 = vld [vmem:[%s2190 + $0x78] sm:$0xff]
      %2207 = vmatpush.msra.mxu0 %v2206
      %2208 = vmatpush.msra.mxu0 %v2205
      %2209 = vmatpush.msra.mxu0 %v2204
      %2210 = vmatpush.msra.mxu0 %v2203
      %2211 = vmatpush.msra.mxu0 %v2202
      %2212 = vmatpush.msra.mxu0 %v2201
      %2213 = vmatpush.msra.mxu0 %v2200
      %2214 = vmatpush.msra.mxu0 %v2199
      %2215 = vmatpush.msra.mxu0 %v2198
      %2216 = vmatpush.msra.mxu0 %v2197
      %2217 = vmatpush.msra.mxu0 %v2196
      %2218 = vmatpush.msra.mxu0 %v2195
      %2219 = vmatpush.msra.mxu0 %v2194
      %2220 = vmatpush.msra.mxu0 %v2193
      %2221 = vmatpush.msra.mxu0 %v2192
      %2222 = vmatpush.msra.mxu0 %v2191
      %2223 = vmatmul.f32.gmra.mxu0 %v2080
      %v2224 = vpop.f32.mrf.mxu0
      %v2225 = vadd.f32 0.0, %v2224
      %2226 = vmatmul.f32.gmra.mxu0 %v2082
      %v2227 = vpop.f32.mrf.mxu0
      %v2228 = vadd.f32 0.0, %v2227
      %2229 = vmatmul.f32.gmra.mxu0 %v2085
      %v2230 = vpop.f32.mrf.mxu0
      %v2231 = vadd.f32 0.0, %v2230
      %2232 = vmatmul.f32.gmra.mxu0 %v2087
      %v2233 = vpop.f32.mrf.mxu0
      %v2234 = vadd.f32 0.0, %v2233
      %2235 = vmatmul.f32.gmra.mxu0 %v2090
      %v2236 = vpop.f32.mrf.mxu0
      %v2237 = vadd.f32 0.0, %v2236
      %2238 = vmatmul.f32.gmra.mxu0 %v2092
      %v2239 = vpop.f32.mrf.mxu0
      %v2240 = vadd.f32 0.0, %v2239
      %2241 = vmatmul.f32.gmra.mxu0 %v2095
      %v2242 = vpop.f32.mrf.mxu0
      %v2243 = vadd.f32 0.0, %v2242
      %2244 = vmatmul.f32.gmra.mxu0 %v2097
      %v2245 = vpop.f32.mrf.mxu0
      %v2246 = vadd.f32 0.0, %v2245
      %2247 = vmatmul.f32.gmra.mxu0 %v2100
      %v2248 = vpop.f32.mrf.mxu0
      %v2249 = vadd.f32 0.0, %v2248
      %2250 = vmatmul.f32.gmra.mxu0 %v2102
      %v2251 = vpop.f32.mrf.mxu0
      %v2252 = vadd.f32 0.0, %v2251
      %2253 = vmatmul.f32.gmra.mxu0 %v2105
      %v2254 = vpop.f32.mrf.mxu0
      %v2255 = vadd.f32 0.0, %v2254
      %2256 = vmatmul.f32.gmra.mxu0 %v2107
      %v2257 = vpop.f32.mrf.mxu0
      %v2258 = vadd.f32 0.0, %v2257
      %2259 = vmatmul.f32.gmra.mxu0 %v2110
      %v2260 = vpop.f32.mrf.mxu0
      %v2261 = vadd.f32 0.0, %v2260
      %2262 = vmatmul.f32.gmra.mxu0 %v2112
      %v2263 = vpop.f32.mrf.mxu0
      %v2264 = vadd.f32 0.0, %v2263
      %2265 = vmatmul.f32.gmra.mxu0 %v2115
      %v2266 = vpop.f32.mrf.mxu0
      %v2267 = vadd.f32 0.0, %v2266
      %2268 = vmatmul.f32.gmra.mxu0 %v2117
      %v2269 = vpop.f32.mrf.mxu0
      %v2270 = vadd.f32 0.0, %v2269
      %2271 = vmatmul.f32.gmra.mxu0 %v2120
      %v2272 = vpop.f32.mrf.mxu0
      %v2273 = vadd.f32 0.0, %v2272
      %2274 = vmatmul.f32.gmra.mxu0 %v2122
      %v2275 = vpop.f32.mrf.mxu0
      %v2276 = vadd.f32 0.0, %v2275
      %2277 = vmatmul.f32.gmra.mxu0 %v2125
      %v2278 = vpop.f32.mrf.mxu0
      %v2279 = vadd.f32 0.0, %v2278
      %2280 = vmatmul.f32.gmra.mxu0 %v2127
      %v2281 = vpop.f32.mrf.mxu0
      %v2282 = vadd.f32 0.0, %v2281
      %2283 = vmatmul.f32.gmra.mxu0 %v2130
      %v2284 = vpop.f32.mrf.mxu0
      %v2285 = vadd.f32 0.0, %v2284
      %2286 = vmatmul.f32.gmra.mxu0 %v2132
      %v2287 = vpop.f32.mrf.mxu0
      %v2288 = vadd.f32 0.0, %v2287
      %2289 = vmatmul.f32.gmra.mxu0 %v2135
      %v2290 = vpop.f32.mrf.mxu0
      %v2291 = vadd.f32 0.0, %v2290
      %2292 = vmatmul.f32.gmra.mxu0 %v2137
      %v2293 = vpop.f32.mrf.mxu0
      %v2294 = vadd.f32 0.0, %v2293
      %2295 = vmatmul.f32.gmra.mxu0 %v2140
      %v2296 = vpop.f32.mrf.mxu0
      %v2297 = vadd.f32 0.0, %v2296
      %2298 = vmatmul.f32.gmra.mxu0 %v2142
      %v2299 = vpop.f32.mrf.mxu0
      %v2300 = vadd.f32 0.0, %v2299
      %2301 = vmatmul.f32.gmra.mxu0 %v2145
      %v2302 = vpop.f32.mrf.mxu0
      %v2303 = vadd.f32 0.0, %v2302
      %2304 = vmatmul.f32.gmra.mxu0 %v2147
      %v2305 = vpop.f32.mrf.mxu0
      %v2306 = vadd.f32 0.0, %v2305
      %2307 = vmatmul.f32.gmra.mxu0 %v2150
      %v2308 = vpop.f32.mrf.mxu0
      %v2309 = vadd.f32 0.0, %v2308
      %2310 = vmatmul.f32.gmra.mxu0 %v2152
      %v2311 = vpop.f32.mrf.mxu0
      %v2312 = vadd.f32 0.0, %v2311
      %2313 = vmatmul.f32.gmra.mxu0 %v2155
      %v2314 = vpop.f32.mrf.mxu0
      %v2315 = vadd.f32 0.0, %v2314
      %2316 = vmatmul.f32.gmra.mxu0 %v2157
      %v2317 = vpop.f32.mrf.mxu0
      %v2318 = vadd.f32 0.0, %v2317
      %2319 = vdwg.mxu0
      %v2320 = vadd.f32 %v2030, %v2225
      %v2321 = vadd.f32 %v2031, %v2228
      %v2322 = vadd.f32 %v2032, %v2231
      %v2323 = vadd.f32 %v2033, %v2234
      %v2324 = vadd.f32 %v2034, %v2237
      %v2325 = vadd.f32 %v2035, %v2240
      %v2326 = vadd.f32 %v2036, %v2243
      %v2327 = vadd.f32 %v2037, %v2246
      %v2328 = vadd.f32 %v2038, %v2249
      %v2329 = vadd.f32 %v2039, %v2252
      %v2330 = vadd.f32 %v2040, %v2255
      %v2331 = vadd.f32 %v2041, %v2258
      %v2332 = vadd.f32 %v2042, %v2261
      %v2333 = vadd.f32 %v2043, %v2264
      %v2334 = vadd.f32 %v2044, %v2267
      %v2335 = vadd.f32 %v2045, %v2270
      %v2336 = vadd.f32 %v2046, %v2273
      %v2337 = vadd.f32 %v2047, %v2276
      %v2338 = vadd.f32 %v2048, %v2279
      %v2339 = vadd.f32 %v2049, %v2282
      %v2340 = vadd.f32 %v2050, %v2285
      %v2341 = vadd.f32 %v2051, %v2288
      %v2342 = vadd.f32 %v2052, %v2291
      %v2343 = vadd.f32 %v2053, %v2294
      %v2344 = vadd.f32 %v2054, %v2297
      %v2345 = vadd.f32 %v2055, %v2300
      %v2346 = vadd.f32 %v2056, %v2303
      %v2347 = vadd.f32 %v2057, %v2306
      %v2348 = vadd.f32 %v2058, %v2309
      %v2349 = vadd.f32 %v2059, %v2312
      %v2350 = vadd.f32 %v2060, %v2315
      %v2351 = vadd.f32 %v2061, %v2318
      %s2352 = scalar_lea.vmem [#allocation2], 64
      %v2353 = vld [vmem:[%s2352] sm:$0xff]
      %v2354 = vld [vmem:[%s2352 + $0x8] sm:$0xff]
      %v2355 = vld [vmem:[%s2352 + $0x10] sm:$0xff]
      %v2356 = vld [vmem:[%s2352 + $0x18] sm:$0xff]
      %v2357 = vld [vmem:[%s2352 + $0x20] sm:$0xff]
      %v2358 = vld [vmem:[%s2352 + $0x28] sm:$0xff]
      %v2359 = vld [vmem:[%s2352 + $0x30] sm:$0xff]
      %v2360 = vld [vmem:[%s2352 + $0x38] sm:$0xff]
      %v2361 = vld [vmem:[%s2352 + $0x40] sm:$0xff]
      %v2362 = vld [vmem:[%s2352 + $0x48] sm:$0xff]
      %v2363 = vld [vmem:[%s2352 + $0x50] sm:$0xff]
      %v2364 = vld [vmem:[%s2352 + $0x58] sm:$0xff]
      %v2365 = vld [vmem:[%s2352 + $0x60] sm:$0xff]
      %v2366 = vld [vmem:[%s2352 + $0x68] sm:$0xff]
      %v2367 = vld [vmem:[%s2352 + $0x70] sm:$0xff]
      %v2368 = vld [vmem:[%s2352 + $0x78] sm:$0xff]
      %v2369 = vld [vmem:[%s2352 + $0x80] sm:$0xff]
      %v2370 = vld [vmem:[%s2352 + $0x88] sm:$0xff]
      %v2371 = vld [vmem:[%s2352 + $0x90] sm:$0xff]
      %v2372 = vld [vmem:[%s2352 + $0x98] sm:$0xff]
      %v2373 = vld [vmem:[%s2352 + $0xa0] sm:$0xff]
      %v2374 = vld [vmem:[%s2352 + $0xa8] sm:$0xff]
      %v2375 = vld [vmem:[%s2352 + $0xb0] sm:$0xff]
      %v2376 = vld [vmem:[%s2352 + $0xb8] sm:$0xff]
      %v2377 = vld [vmem:[%s2352 + $0xc0] sm:$0xff]
      %v2378 = vld [vmem:[%s2352 + $0xc8] sm:$0xff]
      %v2379 = vld [vmem:[%s2352 + $0xd0] sm:$0xff]
      %v2380 = vld [vmem:[%s2352 + $0xd8] sm:$0xff]
      %v2381 = vld [vmem:[%s2352 + $0xe0] sm:$0xff]
      %v2382 = vld [vmem:[%s2352 + $0xe8] sm:$0xff]
      %v2383 = vld [vmem:[%s2352 + $0xf0] sm:$0xff]
      %v2384 = vld [vmem:[%s2352 + $0xf8] sm:$0xff]
      %v2385 = vld [vmem:[%s2352 + $0x100] sm:$0xff]
      %v2386 = vld [vmem:[%s2352 + $0x108] sm:$0xff]
      %v2387 = vld [vmem:[%s2352 + $0x110] sm:$0xff]
      %v2388 = vld [vmem:[%s2352 + $0x118] sm:$0xff]
      %v2389 = vld [vmem:[%s2352 + $0x120] sm:$0xff]
      %v2390 = vld [vmem:[%s2352 + $0x128] sm:$0xff]
      %v2391 = vld [vmem:[%s2352 + $0x130] sm:$0xff]
      %v2392 = vld [vmem:[%s2352 + $0x138] sm:$0xff]
      %v2393 = vld [vmem:[%s2352 + $0x140] sm:$0xff]
      %v2394 = vld [vmem:[%s2352 + $0x148] sm:$0xff]
      %v2395 = vld [vmem:[%s2352 + $0x150] sm:$0xff]
      %v2396 = vld [vmem:[%s2352 + $0x158] sm:$0xff]
      %v2397 = vld [vmem:[%s2352 + $0x160] sm:$0xff]
      %v2398 = vld [vmem:[%s2352 + $0x168] sm:$0xff]
      %v2399 = vld [vmem:[%s2352 + $0x170] sm:$0xff]
      %v2400 = vld [vmem:[%s2352 + $0x178] sm:$0xff]
      %v2401 = vld [vmem:[%s2352 + $0x180] sm:$0xff]
      %v2402 = vld [vmem:[%s2352 + $0x188] sm:$0xff]
      %v2403 = vld [vmem:[%s2352 + $0x190] sm:$0xff]
      %v2404 = vld [vmem:[%s2352 + $0x198] sm:$0xff]
      %v2405 = vld [vmem:[%s2352 + $0x1a0] sm:$0xff]
      %v2406 = vld [vmem:[%s2352 + $0x1a8] sm:$0xff]
      %v2407 = vld [vmem:[%s2352 + $0x1b0] sm:$0xff]
      %v2408 = vld [vmem:[%s2352 + $0x1b8] sm:$0xff]
      %v2409 = vld [vmem:[%s2352 + $0x1c0] sm:$0xff]
      %v2410 = vld [vmem:[%s2352 + $0x1c8] sm:$0xff]
      %v2411 = vld [vmem:[%s2352 + $0x1d0] sm:$0xff]
      %v2412 = vld [vmem:[%s2352 + $0x1d8] sm:$0xff]
      %v2413 = vld [vmem:[%s2352 + $0x1e0] sm:$0xff]
      %v2414 = vld [vmem:[%s2352 + $0x1e8] sm:$0xff]
      %v2415 = vld [vmem:[%s2352 + $0x1f0] sm:$0xff]
      %v2416 = vld [vmem:[%s2352 + $0x1f8] sm:$0xff]
      %v2465 = vrot.slane %v2353, 7
      %v2466 = vrot.slane %v2354, 7
      %v2467 = vsel %vm851, %v2465, %v2466
      %v2468 = vrot.slane %v2355, 7
      %v2469 = vsel %vm851, %v2466, %v2468
      %v2470 = vrot.slane %v2357, 7
      %v2471 = vrot.slane %v2358, 7
      %v2472 = vsel %vm851, %v2470, %v2471
      %v2473 = vrot.slane %v2359, 7
      %v2474 = vsel %vm851, %v2471, %v2473
      %v2475 = vrot.slane %v2361, 7
      %v2476 = vrot.slane %v2362, 7
      %v2477 = vsel %vm851, %v2475, %v2476
      %v2478 = vrot.slane %v2363, 7
      %v2479 = vsel %vm851, %v2476, %v2478
      %v2480 = vrot.slane %v2365, 7
      %v2481 = vrot.slane %v2366, 7
      %v2482 = vsel %vm851, %v2480, %v2481
      %v2483 = vrot.slane %v2367, 7
      %v2484 = vsel %vm851, %v2481, %v2483
      %v2485 = vrot.slane %v2369, 7
      %v2486 = vrot.slane %v2370, 7
      %v2487 = vsel %vm851, %v2485, %v2486
      %v2488 = vrot.slane %v2371, 7
      %v2489 = vsel %vm851, %v2486, %v2488
      %v2490 = vrot.slane %v2373, 7
      %v2491 = vrot.slane %v2374, 7
      %v2492 = vsel %vm851, %v2490, %v2491
      %v2493 = vrot.slane %v2375, 7
      %v2494 = vsel %vm851, %v2491, %v2493
      %v2495 = vrot.slane %v2377, 7
      %v2496 = vrot.slane %v2378, 7
      %v2497 = vsel %vm851, %v2495, %v2496
      %v2498 = vrot.slane %v2379, 7
      %v2499 = vsel %vm851, %v2496, %v2498
      %v2500 = vrot.slane %v2381, 7
      %v2501 = vrot.slane %v2382, 7
      %v2502 = vsel %vm851, %v2500, %v2501
      %v2503 = vrot.slane %v2383, 7
      %v2504 = vsel %vm851, %v2501, %v2503
      %v2505 = vrot.slane %v2385, 7
      %v2506 = vrot.slane %v2386, 7
      %v2507 = vsel %vm851, %v2505, %v2506
      %v2508 = vrot.slane %v2387, 7
      %v2509 = vsel %vm851, %v2506, %v2508
      %v2510 = vrot.slane %v2389, 7
      %v2511 = vrot.slane %v2390, 7
      %v2512 = vsel %vm851, %v2510, %v2511
      %v2513 = vrot.slane %v2391, 7
      %v2514 = vsel %vm851, %v2511, %v2513
      %v2515 = vrot.slane %v2393, 7
      %v2516 = vrot.slane %v2394, 7
      %v2517 = vsel %vm851, %v2515, %v2516
      %v2518 = vrot.slane %v2395, 7
      %v2519 = vsel %vm851, %v2516, %v2518
      %v2520 = vrot.slane %v2397, 7
      %v2521 = vrot.slane %v2398, 7
      %v2522 = vsel %vm851, %v2520, %v2521
      %v2523 = vrot.slane %v2399, 7
      %v2524 = vsel %vm851, %v2521, %v2523
      %v2525 = vrot.slane %v2401, 7
      %v2526 = vrot.slane %v2402, 7
      %v2527 = vsel %vm851, %v2525, %v2526
      %v2528 = vrot.slane %v2403, 7
      %v2529 = vsel %vm851, %v2526, %v2528
      %v2530 = vrot.slane %v2405, 7
      %v2531 = vrot.slane %v2406, 7
      %v2532 = vsel %vm851, %v2530, %v2531
      %v2533 = vrot.slane %v2407, 7
      %v2534 = vsel %vm851, %v2531, %v2533
      %v2535 = vrot.slane %v2409, 7
      %v2536 = vrot.slane %v2410, 7
      %v2537 = vsel %vm851, %v2535, %v2536
      %v2538 = vrot.slane %v2411, 7
      %v2539 = vsel %vm851, %v2536, %v2538
      %v2540 = vrot.slane %v2413, 7
      %v2541 = vrot.slane %v2414, 7
      %v2542 = vsel %vm851, %v2540, %v2541
      %v2543 = vrot.slane %v2415, 7
      %v2544 = vsel %vm851, %v2541, %v2543
      %s2577 = scalar_lea.vmem %s5, 768
      %v2578 = vld [vmem:[%s2577] sm:$0xff]
      %v2579 = vld [vmem:[%s2577 + $0x8] sm:$0xff]
      %v2580 = vld [vmem:[%s2577 + $0x10] sm:$0xff]
      %v2581 = vld [vmem:[%s2577 + $0x18] sm:$0xff]
      %v2582 = vld [vmem:[%s2577 + $0x20] sm:$0xff]
      %v2583 = vld [vmem:[%s2577 + $0x28] sm:$0xff]
      %v2584 = vld [vmem:[%s2577 + $0x30] sm:$0xff]
      %v2585 = vld [vmem:[%s2577 + $0x38] sm:$0xff]
      %v2586 = vld [vmem:[%s2577 + $0x40] sm:$0xff]
      %v2587 = vld [vmem:[%s2577 + $0x48] sm:$0xff]
      %v2588 = vld [vmem:[%s2577 + $0x50] sm:$0xff]
      %v2589 = vld [vmem:[%s2577 + $0x58] sm:$0xff]
      %v2590 = vld [vmem:[%s2577 + $0x60] sm:$0xff]
      %v2591 = vld [vmem:[%s2577 + $0x68] sm:$0xff]
      %v2592 = vld [vmem:[%s2577 + $0x70] sm:$0xff]
      %v2593 = vld [vmem:[%s2577 + $0x78] sm:$0xff]
      %2594 = vmatpush.msra.mxu0 %v2593
      %2595 = vmatpush.msra.mxu0 %v2592
      %2596 = vmatpush.msra.mxu0 %v2591
      %2597 = vmatpush.msra.mxu0 %v2590
      %2598 = vmatpush.msra.mxu0 %v2589
      %2599 = vmatpush.msra.mxu0 %v2588
      %2600 = vmatpush.msra.mxu0 %v2587
      %2601 = vmatpush.msra.mxu0 %v2586
      %2602 = vmatpush.msra.mxu0 %v2585
      %2603 = vmatpush.msra.mxu0 %v2584
      %2604 = vmatpush.msra.mxu0 %v2583
      %2605 = vmatpush.msra.mxu0 %v2582
      %2606 = vmatpush.msra.mxu0 %v2581
      %2607 = vmatpush.msra.mxu0 %v2580
      %2608 = vmatpush.msra.mxu0 %v2579
      %2609 = vmatpush.msra.mxu0 %v2578
      %2610 = vmatmul.f32.gmra.mxu0 %v2467
      %v2611 = vpop.f32.mrf.mxu0
      %v2612 = vadd.f32 0.0, %v2611
      %2613 = vmatmul.f32.gmra.mxu0 %v2469
      %v2614 = vpop.f32.mrf.mxu0
      %v2615 = vadd.f32 0.0, %v2614
      %2616 = vmatmul.f32.gmra.mxu0 %v2472
      %v2617 = vpop.f32.mrf.mxu0
      %v2618 = vadd.f32 0.0, %v2617
      %2619 = vmatmul.f32.gmra.mxu0 %v2474
      %v2620 = vpop.f32.mrf.mxu0
      %v2621 = vadd.f32 0.0, %v2620
      %2622 = vmatmul.f32.gmra.mxu0 %v2477
      %v2623 = vpop.f32.mrf.mxu0
      %v2624 = vadd.f32 0.0, %v2623
      %2625 = vmatmul.f32.gmra.mxu0 %v2479
      %v2626 = vpop.f32.mrf.mxu0
      %v2627 = vadd.f32 0.0, %v2626
      %2628 = vmatmul.f32.gmra.mxu0 %v2482
      %v2629 = vpop.f32.mrf.mxu0
      %v2630 = vadd.f32 0.0, %v2629
      %2631 = vmatmul.f32.gmra.mxu0 %v2484
      %v2632 = vpop.f32.mrf.mxu0
      %v2633 = vadd.f32 0.0, %v2632
      %2634 = vmatmul.f32.gmra.mxu0 %v2487
      %v2635 = vpop.f32.mrf.mxu0
      %v2636 = vadd.f32 0.0, %v2635
      %2637 = vmatmul.f32.gmra.mxu0 %v2489
      %v2638 = vpop.f32.mrf.mxu0
      %v2639 = vadd.f32 0.0, %v2638
      %2640 = vmatmul.f32.gmra.mxu0 %v2492
      %v2641 = vpop.f32.mrf.mxu0
      %v2642 = vadd.f32 0.0, %v2641
      %2643 = vmatmul.f32.gmra.mxu0 %v2494
      %v2644 = vpop.f32.mrf.mxu0
      %v2645 = vadd.f32 0.0, %v2644
      %2646 = vmatmul.f32.gmra.mxu0 %v2497
      %v2647 = vpop.f32.mrf.mxu0
      %v2648 = vadd.f32 0.0, %v2647
      %2649 = vmatmul.f32.gmra.mxu0 %v2499
      %v2650 = vpop.f32.mrf.mxu0
      %v2651 = vadd.f32 0.0, %v2650
      %2652 = vmatmul.f32.gmra.mxu0 %v2502
      %v2653 = vpop.f32.mrf.mxu0
      %v2654 = vadd.f32 0.0, %v2653
      %2655 = vmatmul.f32.gmra.mxu0 %v2504
      %v2656 = vpop.f32.mrf.mxu0
      %v2657 = vadd.f32 0.0, %v2656
      %2658 = vmatmul.f32.gmra.mxu0 %v2507
      %v2659 = vpop.f32.mrf.mxu0
      %v2660 = vadd.f32 0.0, %v2659
      %2661 = vmatmul.f32.gmra.mxu0 %v2509
      %v2662 = vpop.f32.mrf.mxu0
      %v2663 = vadd.f32 0.0, %v2662
      %2664 = vmatmul.f32.gmra.mxu0 %v2512
      %v2665 = vpop.f32.mrf.mxu0
      %v2666 = vadd.f32 0.0, %v2665
      %2667 = vmatmul.f32.gmra.mxu0 %v2514
      %v2668 = vpop.f32.mrf.mxu0
      %v2669 = vadd.f32 0.0, %v2668
      %2670 = vmatmul.f32.gmra.mxu0 %v2517
      %v2671 = vpop.f32.mrf.mxu0
      %v2672 = vadd.f32 0.0, %v2671
      %2673 = vmatmul.f32.gmra.mxu0 %v2519
      %v2674 = vpop.f32.mrf.mxu0
      %v2675 = vadd.f32 0.0, %v2674
      %2676 = vmatmul.f32.gmra.mxu0 %v2522
      %v2677 = vpop.f32.mrf.mxu0
      %v2678 = vadd.f32 0.0, %v2677
      %2679 = vmatmul.f32.gmra.mxu0 %v2524
      %v2680 = vpop.f32.mrf.mxu0
      %v2681 = vadd.f32 0.0, %v2680
      %2682 = vmatmul.f32.gmra.mxu0 %v2527
      %v2683 = vpop.f32.mrf.mxu0
      %v2684 = vadd.f32 0.0, %v2683
      %2685 = vmatmul.f32.gmra.mxu0 %v2529
      %v2686 = vpop.f32.mrf.mxu0
      %v2687 = vadd.f32 0.0, %v2686
      %2688 = vmatmul.f32.gmra.mxu0 %v2532
      %v2689 = vpop.f32.mrf.mxu0
      %v2690 = vadd.f32 0.0, %v2689
      %2691 = vmatmul.f32.gmra.mxu0 %v2534
      %v2692 = vpop.f32.mrf.mxu0
      %v2693 = vadd.f32 0.0, %v2692
      %2694 = vmatmul.f32.gmra.mxu0 %v2537
      %v2695 = vpop.f32.mrf.mxu0
      %v2696 = vadd.f32 0.0, %v2695
      %2697 = vmatmul.f32.gmra.mxu0 %v2539
      %v2698 = vpop.f32.mrf.mxu0
      %v2699 = vadd.f32 0.0, %v2698
      %2700 = vmatmul.f32.gmra.mxu0 %v2542
      %v2701 = vpop.f32.mrf.mxu0
      %v2702 = vadd.f32 0.0, %v2701
      %2703 = vmatmul.f32.gmra.mxu0 %v2544
      %v2704 = vpop.f32.mrf.mxu0
      %v2705 = vadd.f32 0.0, %v2704
      %2706 = vdwg.mxu0
      %v2707 = vadd.f32 %v2320, %v2612
      %v2708 = vadd.f32 %v2321, %v2615
      %v2709 = vadd.f32 %v2322, %v2618
      %v2710 = vadd.f32 %v2323, %v2621
      %v2711 = vadd.f32 %v2324, %v2624
      %v2712 = vadd.f32 %v2325, %v2627
      %v2713 = vadd.f32 %v2326, %v2630
      %v2714 = vadd.f32 %v2327, %v2633
      %v2715 = vadd.f32 %v2328, %v2636
      %v2716 = vadd.f32 %v2329, %v2639
      %v2717 = vadd.f32 %v2330, %v2642
      %v2718 = vadd.f32 %v2331, %v2645
      %v2719 = vadd.f32 %v2332, %v2648
      %v2720 = vadd.f32 %v2333, %v2651
      %v2721 = vadd.f32 %v2334, %v2654
      %v2722 = vadd.f32 %v2335, %v2657
      %v2723 = vadd.f32 %v2336, %v2660
      %v2724 = vadd.f32 %v2337, %v2663
      %v2725 = vadd.f32 %v2338, %v2666
      %v2726 = vadd.f32 %v2339, %v2669
      %v2727 = vadd.f32 %v2340, %v2672
      %v2728 = vadd.f32 %v2341, %v2675
      %v2729 = vadd.f32 %v2342, %v2678
      %v2730 = vadd.f32 %v2343, %v2681
      %v2731 = vadd.f32 %v2344, %v2684
      %v2732 = vadd.f32 %v2345, %v2687
      %v2733 = vadd.f32 %v2346, %v2690
      %v2734 = vadd.f32 %v2347, %v2693
      %v2735 = vadd.f32 %v2348, %v2696
      %v2736 = vadd.f32 %v2349, %v2699
      %v2737 = vadd.f32 %v2350, %v2702
      %v2738 = vadd.f32 %v2351, %v2705
      %s2739 = scalar_lea.vmem %s5, 896
      %v2740 = vld [vmem:[%s2739] sm:$0xff]
      %v2741 = vld [vmem:[%s2739 + $0x8] sm:$0xff]
      %v2742 = vld [vmem:[%s2739 + $0x10] sm:$0xff]
      %v2743 = vld [vmem:[%s2739 + $0x18] sm:$0xff]
      %v2744 = vld [vmem:[%s2739 + $0x20] sm:$0xff]
      %v2745 = vld [vmem:[%s2739 + $0x28] sm:$0xff]
      %v2746 = vld [vmem:[%s2739 + $0x30] sm:$0xff]
      %v2747 = vld [vmem:[%s2739 + $0x38] sm:$0xff]
      %v2748 = vld [vmem:[%s2739 + $0x40] sm:$0xff]
      %v2749 = vld [vmem:[%s2739 + $0x48] sm:$0xff]
      %v2750 = vld [vmem:[%s2739 + $0x50] sm:$0xff]
      %v2751 = vld [vmem:[%s2739 + $0x58] sm:$0xff]
      %v2752 = vld [vmem:[%s2739 + $0x60] sm:$0xff]
      %v2753 = vld [vmem:[%s2739 + $0x68] sm:$0xff]
      %v2754 = vld [vmem:[%s2739 + $0x70] sm:$0xff]
      %v2755 = vld [vmem:[%s2739 + $0x78] sm:$0xff]
      %2756 = vmatpush.msra.mxu0 %v2755
      %2757 = vmatpush.msra.mxu0 %v2754
      %2758 = vmatpush.msra.mxu0 %v2753
      %2759 = vmatpush.msra.mxu0 %v2752
      %2760 = vmatpush.msra.mxu0 %v2751
      %2761 = vmatpush.msra.mxu0 %v2750
      %2762 = vmatpush.msra.mxu0 %v2749
      %2763 = vmatpush.msra.mxu0 %v2748
      %2764 = vmatpush.msra.mxu0 %v2747
      %2765 = vmatpush.msra.mxu0 %v2746
      %2766 = vmatpush.msra.mxu0 %v2745
      %2767 = vmatpush.msra.mxu0 %v2744
      %2768 = vmatpush.msra.mxu0 %v2743
      %2769 = vmatpush.msra.mxu0 %v2742
      %2770 = vmatpush.msra.mxu0 %v2741
      %2771 = vmatpush.msra.mxu0 %v2740
      %2772 = vmatmul.f32.gmra.mxu0 %v2354
      %v2773 = vpop.f32.mrf.mxu0
      %v2774 = vadd.f32 0.0, %v2773
      %2775 = vmatmul.f32.gmra.mxu0 %v2355
      %v2776 = vpop.f32.mrf.mxu0
      %v2777 = vadd.f32 0.0, %v2776
      %2778 = vmatmul.f32.gmra.mxu0 %v2358
      %v2779 = vpop.f32.mrf.mxu0
      %v2780 = vadd.f32 0.0, %v2779
      %2781 = vmatmul.f32.gmra.mxu0 %v2359
      %v2782 = vpop.f32.mrf.mxu0
      %v2783 = vadd.f32 0.0, %v2782
      %2784 = vmatmul.f32.gmra.mxu0 %v2362
      %v2785 = vpop.f32.mrf.mxu0
      %v2786 = vadd.f32 0.0, %v2785
      %2787 = vmatmul.f32.gmra.mxu0 %v2363
      %v2788 = vpop.f32.mrf.mxu0
      %v2789 = vadd.f32 0.0, %v2788
      %2790 = vmatmul.f32.gmra.mxu0 %v2366
      %v2791 = vpop.f32.mrf.mxu0
      %v2792 = vadd.f32 0.0, %v2791
      %2793 = vmatmul.f32.gmra.mxu0 %v2367
      %v2794 = vpop.f32.mrf.mxu0
      %v2795 = vadd.f32 0.0, %v2794
      %2796 = vmatmul.f32.gmra.mxu0 %v2370
      %v2797 = vpop.f32.mrf.mxu0
      %v2798 = vadd.f32 0.0, %v2797
      %2799 = vmatmul.f32.gmra.mxu0 %v2371
      %v2800 = vpop.f32.mrf.mxu0
      %v2801 = vadd.f32 0.0, %v2800
      %2802 = vmatmul.f32.gmra.mxu0 %v2374
      %v2803 = vpop.f32.mrf.mxu0
      %v2804 = vadd.f32 0.0, %v2803
      %2805 = vmatmul.f32.gmra.mxu0 %v2375
      %v2806 = vpop.f32.mrf.mxu0
      %v2807 = vadd.f32 0.0, %v2806
      %2808 = vmatmul.f32.gmra.mxu0 %v2378
      %v2809 = vpop.f32.mrf.mxu0
      %v2810 = vadd.f32 0.0, %v2809
      %2811 = vmatmul.f32.gmra.mxu0 %v2379
      %v2812 = vpop.f32.mrf.mxu0
      %v2813 = vadd.f32 0.0, %v2812
      %2814 = vmatmul.f32.gmra.mxu0 %v2382
      %v2815 = vpop.f32.mrf.mxu0
      %v2816 = vadd.f32 0.0, %v2815
      %2817 = vmatmul.f32.gmra.mxu0 %v2383
      %v2818 = vpop.f32.mrf.mxu0
      %v2819 = vadd.f32 0.0, %v2818
      %2820 = vmatmul.f32.gmra.mxu0 %v2386
      %v2821 = vpop.f32.mrf.mxu0
      %v2822 = vadd.f32 0.0, %v2821
      %2823 = vmatmul.f32.gmra.mxu0 %v2387
      %v2824 = vpop.f32.mrf.mxu0
      %v2825 = vadd.f32 0.0, %v2824
      %2826 = vmatmul.f32.gmra.mxu0 %v2390
      %v2827 = vpop.f32.mrf.mxu0
      %v2828 = vadd.f32 0.0, %v2827
      %2829 = vmatmul.f32.gmra.mxu0 %v2391
      %v2830 = vpop.f32.mrf.mxu0
      %v2831 = vadd.f32 0.0, %v2830
      %2832 = vmatmul.f32.gmra.mxu0 %v2394
      %v2833 = vpop.f32.mrf.mxu0
      %v2834 = vadd.f32 0.0, %v2833
      %2835 = vmatmul.f32.gmra.mxu0 %v2395
      %v2836 = vpop.f32.mrf.mxu0
      %v2837 = vadd.f32 0.0, %v2836
      %2838 = vmatmul.f32.gmra.mxu0 %v2398
      %v2839 = vpop.f32.mrf.mxu0
      %v2840 = vadd.f32 0.0, %v2839
      %2841 = vmatmul.f32.gmra.mxu0 %v2399
      %v2842 = vpop.f32.mrf.mxu0
      %v2843 = vadd.f32 0.0, %v2842
      %2844 = vmatmul.f32.gmra.mxu0 %v2402
      %v2845 = vpop.f32.mrf.mxu0
      %v2846 = vadd.f32 0.0, %v2845
      %2847 = vmatmul.f32.gmra.mxu0 %v2403
      %v2848 = vpop.f32.mrf.mxu0
      %v2849 = vadd.f32 0.0, %v2848
      %2850 = vmatmul.f32.gmra.mxu0 %v2406
      %v2851 = vpop.f32.mrf.mxu0
      %v2852 = vadd.f32 0.0, %v2851
      %2853 = vmatmul.f32.gmra.mxu0 %v2407
      %v2854 = vpop.f32.mrf.mxu0
      %v2855 = vadd.f32 0.0, %v2854
      %2856 = vmatmul.f32.gmra.mxu0 %v2410
      %v2857 = vpop.f32.mrf.mxu0
      %v2858 = vadd.f32 0.0, %v2857
      %2859 = vmatmul.f32.gmra.mxu0 %v2411
      %v2860 = vpop.f32.mrf.mxu0
      %v2861 = vadd.f32 0.0, %v2860
      %2862 = vmatmul.f32.gmra.mxu0 %v2414
      %v2863 = vpop.f32.mrf.mxu0
      %v2864 = vadd.f32 0.0, %v2863
      %2865 = vmatmul.f32.gmra.mxu0 %v2415
      %v2866 = vpop.f32.mrf.mxu0
      %v2867 = vadd.f32 0.0, %v2866
      %2868 = vdwg.mxu0
      %v2869 = vadd.f32 %v2707, %v2774
      %v2870 = vadd.f32 %v2708, %v2777
      %v2871 = vadd.f32 %v2709, %v2780
      %v2872 = vadd.f32 %v2710, %v2783
      %v2873 = vadd.f32 %v2711, %v2786
      %v2874 = vadd.f32 %v2712, %v2789
      %v2875 = vadd.f32 %v2713, %v2792
      %v2876 = vadd.f32 %v2714, %v2795
      %v2877 = vadd.f32 %v2715, %v2798
      %v2878 = vadd.f32 %v2716, %v2801
      %v2879 = vadd.f32 %v2717, %v2804
      %v2880 = vadd.f32 %v2718, %v2807
      %v2881 = vadd.f32 %v2719, %v2810
      %v2882 = vadd.f32 %v2720, %v2813
      %v2883 = vadd.f32 %v2721, %v2816
      %v2884 = vadd.f32 %v2722, %v2819
      %v2885 = vadd.f32 %v2723, %v2822
      %v2886 = vadd.f32 %v2724, %v2825
      %v2887 = vadd.f32 %v2725, %v2828
      %v2888 = vadd.f32 %v2726, %v2831
      %v2889 = vadd.f32 %v2727, %v2834
      %v2890 = vadd.f32 %v2728, %v2837
      %v2891 = vadd.f32 %v2729, %v2840
      %v2892 = vadd.f32 %v2730, %v2843
      %v2893 = vadd.f32 %v2731, %v2846
      %v2894 = vadd.f32 %v2732, %v2849
      %v2895 = vadd.f32 %v2733, %v2852
      %v2896 = vadd.f32 %v2734, %v2855
      %v2897 = vadd.f32 %v2735, %v2858
      %v2898 = vadd.f32 %v2736, %v2861
      %v2899 = vadd.f32 %v2737, %v2864
      %v2900 = vadd.f32 %v2738, %v2867
      %v2917 = vrot.slane %v2354, 1
      %v2918 = vrot.slane %v2355, 1
      %v2919 = vsel %vm1239, %v2917, %v2918
      %v2920 = vrot.slane %v2356, 1
      %v2921 = vsel %vm1239, %v2918, %v2920
      %v2922 = vrot.slane %v2358, 1
      %v2923 = vrot.slane %v2359, 1
      %v2924 = vsel %vm1239, %v2922, %v2923
      %v2925 = vrot.slane %v2360, 1
      %v2926 = vsel %vm1239, %v2923, %v2925
      %v2927 = vrot.slane %v2362, 1
      %v2928 = vrot.slane %v2363, 1
      %v2929 = vsel %vm1239, %v2927, %v2928
      %v2930 = vrot.slane %v2364, 1
      %v2931 = vsel %vm1239, %v2928, %v2930
      %v2932 = vrot.slane %v2366, 1
      %v2933 = vrot.slane %v2367, 1
      %v2934 = vsel %vm1239, %v2932, %v2933
      %v2935 = vrot.slane %v2368, 1
      %v2936 = vsel %vm1239, %v2933, %v2935
      %v2937 = vrot.slane %v2370, 1
      %v2938 = vrot.slane %v2371, 1
      %v2939 = vsel %vm1239, %v2937, %v2938
      %v2940 = vrot.slane %v2372, 1
      %v2941 = vsel %vm1239, %v2938, %v2940
      %v2942 = vrot.slane %v2374, 1
      %v2943 = vrot.slane %v2375, 1
      %v2944 = vsel %vm1239, %v2942, %v2943
      %v2945 = vrot.slane %v2376, 1
      %v2946 = vsel %vm1239, %v2943, %v2945
      %v2947 = vrot.slane %v2378, 1
      %v2948 = vrot.slane %v2379, 1
      %v2949 = vsel %vm1239, %v2947, %v2948
      %v2950 = vrot.slane %v2380, 1
      %v2951 = vsel %vm1239, %v2948, %v2950
      %v2952 = vrot.slane %v2382, 1
      %v2953 = vrot.slane %v2383, 1
      %v2954 = vsel %vm1239, %v2952, %v2953
      %v2955 = vrot.slane %v2384, 1
      %v2956 = vsel %vm1239, %v2953, %v2955
      %v2957 = vrot.slane %v2386, 1
      %v2958 = vrot.slane %v2387, 1
      %v2959 = vsel %vm1239, %v2957, %v2958
      %v2960 = vrot.slane %v2388, 1
      %v2961 = vsel %vm1239, %v2958, %v2960
      %v2962 = vrot.slane %v2390, 1
      %v2963 = vrot.slane %v2391, 1
      %v2964 = vsel %vm1239, %v2962, %v2963
      %v2965 = vrot.slane %v2392, 1
      %v2966 = vsel %vm1239, %v2963, %v2965
      %v2967 = vrot.slane %v2394, 1
      %v2968 = vrot.slane %v2395, 1
      %v2969 = vsel %vm1239, %v2967, %v2968
      %v2970 = vrot.slane %v2396, 1
      %v2971 = vsel %vm1239, %v2968, %v2970
      %v2972 = vrot.slane %v2398, 1
      %v2973 = vrot.slane %v2399, 1
      %v2974 = vsel %vm1239, %v2972, %v2973
      %v2975 = vrot.slane %v2400, 1
      %v2976 = vsel %vm1239, %v2973, %v2975
      %v2977 = vrot.slane %v2402, 1
      %v2978 = vrot.slane %v2403, 1
      %v2979 = vsel %vm1239, %v2977, %v2978
      %v2980 = vrot.slane %v2404, 1
      %v2981 = vsel %vm1239, %v2978, %v2980
      %v2982 = vrot.slane %v2406, 1
      %v2983 = vrot.slane %v2407, 1
      %v2984 = vsel %vm1239, %v2982, %v2983
      %v2985 = vrot.slane %v2408, 1
      %v2986 = vsel %vm1239, %v2983, %v2985
      %v2987 = vrot.slane %v2410, 1
      %v2988 = vrot.slane %v2411, 1
      %v2989 = vsel %vm1239, %v2987, %v2988
      %v2990 = vrot.slane %v2412, 1
      %v2991 = vsel %vm1239, %v2988, %v2990
      %v2992 = vrot.slane %v2414, 1
      %v2993 = vrot.slane %v2415, 1
      %v2994 = vsel %vm1239, %v2992, %v2993
      %v2995 = vrot.slane %v2416, 1
      %v2996 = vsel %vm1239, %v2993, %v2995
      %s3029 = scalar_lea.vmem %s5, 1024
      %v3030 = vld [vmem:[%s3029] sm:$0xff]
      %v3031 = vld [vmem:[%s3029 + $0x8] sm:$0xff]
      %v3032 = vld [vmem:[%s3029 + $0x10] sm:$0xff]
      %v3033 = vld [vmem:[%s3029 + $0x18] sm:$0xff]
      %v3034 = vld [vmem:[%s3029 + $0x20] sm:$0xff]
      %v3035 = vld [vmem:[%s3029 + $0x28] sm:$0xff]
      %v3036 = vld [vmem:[%s3029 + $0x30] sm:$0xff]
      %v3037 = vld [vmem:[%s3029 + $0x38] sm:$0xff]
      %v3038 = vld [vmem:[%s3029 + $0x40] sm:$0xff]
      %v3039 = vld [vmem:[%s3029 + $0x48] sm:$0xff]
      %v3040 = vld [vmem:[%s3029 + $0x50] sm:$0xff]
      %v3041 = vld [vmem:[%s3029 + $0x58] sm:$0xff]
      %v3042 = vld [vmem:[%s3029 + $0x60] sm:$0xff]
      %v3043 = vld [vmem:[%s3029 + $0x68] sm:$0xff]
      %v3044 = vld [vmem:[%s3029 + $0x70] sm:$0xff]
      %v3045 = vld [vmem:[%s3029 + $0x78] sm:$0xff]
      %3046 = vmatpush.msra.mxu0 %v3045
      %3047 = vmatpush.msra.mxu0 %v3044
      %3048 = vmatpush.msra.mxu0 %v3043
      %3049 = vmatpush.msra.mxu0 %v3042
      %3050 = vmatpush.msra.mxu0 %v3041
      %3051 = vmatpush.msra.mxu0 %v3040
      %3052 = vmatpush.msra.mxu0 %v3039
      %3053 = vmatpush.msra.mxu0 %v3038
      %3054 = vmatpush.msra.mxu0 %v3037
      %3055 = vmatpush.msra.mxu0 %v3036
      %3056 = vmatpush.msra.mxu0 %v3035
      %3057 = vmatpush.msra.mxu0 %v3034
      %3058 = vmatpush.msra.mxu0 %v3033
      %3059 = vmatpush.msra.mxu0 %v3032
      %3060 = vmatpush.msra.mxu0 %v3031
      %3061 = vmatpush.msra.mxu0 %v3030
      %3062 = vmatmul.f32.gmra.mxu0 %v2919
      %v3063 = vpop.f32.mrf.mxu0
      %v3064 = vadd.f32 0.0, %v3063
      %3065 = vmatmul.f32.gmra.mxu0 %v2921
      %v3066 = vpop.f32.mrf.mxu0
      %v3067 = vadd.f32 0.0, %v3066
      %3068 = vmatmul.f32.gmra.mxu0 %v2924
      %v3069 = vpop.f32.mrf.mxu0
      %v3070 = vadd.f32 0.0, %v3069
      %3071 = vmatmul.f32.gmra.mxu0 %v2926
      %v3072 = vpop.f32.mrf.mxu0
      %v3073 = vadd.f32 0.0, %v3072
      %3074 = vmatmul.f32.gmra.mxu0 %v2929
      %v3075 = vpop.f32.mrf.mxu0
      %v3076 = vadd.f32 0.0, %v3075
      %3077 = vmatmul.f32.gmra.mxu0 %v2931
      %v3078 = vpop.f32.mrf.mxu0
      %v3079 = vadd.f32 0.0, %v3078
      %3080 = vmatmul.f32.gmra.mxu0 %v2934
      %v3081 = vpop.f32.mrf.mxu0
      %v3082 = vadd.f32 0.0, %v3081
      %3083 = vmatmul.f32.gmra.mxu0 %v2936
      %v3084 = vpop.f32.mrf.mxu0
      %v3085 = vadd.f32 0.0, %v3084
      %3086 = vmatmul.f32.gmra.mxu0 %v2939
      %v3087 = vpop.f32.mrf.mxu0
      %v3088 = vadd.f32 0.0, %v3087
      %3089 = vmatmul.f32.gmra.mxu0 %v2941
      %v3090 = vpop.f32.mrf.mxu0
      %v3091 = vadd.f32 0.0, %v3090
      %3092 = vmatmul.f32.gmra.mxu0 %v2944
      %v3093 = vpop.f32.mrf.mxu0
      %v3094 = vadd.f32 0.0, %v3093
      %3095 = vmatmul.f32.gmra.mxu0 %v2946
      %v3096 = vpop.f32.mrf.mxu0
      %v3097 = vadd.f32 0.0, %v3096
      %3098 = vmatmul.f32.gmra.mxu0 %v2949
      %v3099 = vpop.f32.mrf.mxu0
      %v3100 = vadd.f32 0.0, %v3099
      %3101 = vmatmul.f32.gmra.mxu0 %v2951
      %v3102 = vpop.f32.mrf.mxu0
      %v3103 = vadd.f32 0.0, %v3102
      %3104 = vmatmul.f32.gmra.mxu0 %v2954
      %v3105 = vpop.f32.mrf.mxu0
      %v3106 = vadd.f32 0.0, %v3105
      %3107 = vmatmul.f32.gmra.mxu0 %v2956
      %v3108 = vpop.f32.mrf.mxu0
      %v3109 = vadd.f32 0.0, %v3108
      %3110 = vmatmul.f32.gmra.mxu0 %v2959
      %v3111 = vpop.f32.mrf.mxu0
      %v3112 = vadd.f32 0.0, %v3111
      %3113 = vmatmul.f32.gmra.mxu0 %v2961
      %v3114 = vpop.f32.mrf.mxu0
      %v3115 = vadd.f32 0.0, %v3114
      %3116 = vmatmul.f32.gmra.mxu0 %v2964
      %v3117 = vpop.f32.mrf.mxu0
      %v3118 = vadd.f32 0.0, %v3117
      %3119 = vmatmul.f32.gmra.mxu0 %v2966
      %v3120 = vpop.f32.mrf.mxu0
      %v3121 = vadd.f32 0.0, %v3120
      %3122 = vmatmul.f32.gmra.mxu0 %v2969
      %v3123 = vpop.f32.mrf.mxu0
      %v3124 = vadd.f32 0.0, %v3123
      %3125 = vmatmul.f32.gmra.mxu0 %v2971
      %v3126 = vpop.f32.mrf.mxu0
      %v3127 = vadd.f32 0.0, %v3126
      %3128 = vmatmul.f32.gmra.mxu0 %v2974
      %v3129 = vpop.f32.mrf.mxu0
      %v3130 = vadd.f32 0.0, %v3129
      %3131 = vmatmul.f32.gmra.mxu0 %v2976
      %v3132 = vpop.f32.mrf.mxu0
      %v3133 = vadd.f32 0.0, %v3132
      %3134 = vmatmul.f32.gmra.mxu0 %v2979
      %v3135 = vpop.f32.mrf.mxu0
      %v3136 = vadd.f32 0.0, %v3135
      %3137 = vmatmul.f32.gmra.mxu0 %v2981
      %v3138 = vpop.f32.mrf.mxu0
      %v3139 = vadd.f32 0.0, %v3138
      %3140 = vmatmul.f32.gmra.mxu0 %v2984
      %v3141 = vpop.f32.mrf.mxu0
      %v3142 = vadd.f32 0.0, %v3141
      %3143 = vmatmul.f32.gmra.mxu0 %v2986
      %v3144 = vpop.f32.mrf.mxu0
      %v3145 = vadd.f32 0.0, %v3144
      %3146 = vmatmul.f32.gmra.mxu0 %v2989
      %v3147 = vpop.f32.mrf.mxu0
      %v3148 = vadd.f32 0.0, %v3147
      %3149 = vmatmul.f32.gmra.mxu0 %v2991
      %v3150 = vpop.f32.mrf.mxu0
      %v3151 = vadd.f32 0.0, %v3150
      %3152 = vmatmul.f32.gmra.mxu0 %v2994
      %v3153 = vpop.f32.mrf.mxu0
      %v3154 = vadd.f32 0.0, %v3153
      %3155 = vmatmul.f32.gmra.mxu0 %v2996
      %v3156 = vpop.f32.mrf.mxu0
      %v3157 = vadd.f32 0.0, %v3156
      %3158 = vdwg.mxu0
      %v3159 = vadd.f32 %v2869, %v3064
      %v3160 = vadd.f32 %v2870, %v3067
      %v3161 = vadd.f32 %v2871, %v3070
      %v3162 = vadd.f32 %v2872, %v3073
      %v3163 = vadd.f32 %v2873, %v3076
      %v3164 = vadd.f32 %v2874, %v3079
      %v3165 = vadd.f32 %v2875, %v3082
      %v3166 = vadd.f32 %v2876, %v3085
      %v3167 = vadd.f32 %v2877, %v3088
      %v3168 = vadd.f32 %v2878, %v3091
      %v3169 = vadd.f32 %v2879, %v3094
      %v3170 = vadd.f32 %v2880, %v3097
      %v3171 = vadd.f32 %v2881, %v3100
      %v3172 = vadd.f32 %v2882, %v3103
      %v3173 = vadd.f32 %v2883, %v3106
      %v3174 = vadd.f32 %v2884, %v3109
      %v3175 = vadd.f32 %v2885, %v3112
      %v3176 = vadd.f32 %v2886, %v3115
      %v3177 = vadd.f32 %v2887, %v3118
      %v3178 = vadd.f32 %v2888, %v3121
      %v3179 = vadd.f32 %v2889, %v3124
      %v3180 = vadd.f32 %v2890, %v3127
      %v3181 = vadd.f32 %v2891, %v3130
      %v3182 = vadd.f32 %v2892, %v3133
      %v3183 = vadd.f32 %v2893, %v3136
      %v3184 = vadd.f32 %v2894, %v3139
      %v3185 = vadd.f32 %v2895, %v3142
      %v3186 = vadd.f32 %v2896, %v3145
      %v3187 = vadd.f32 %v2897, %v3148
      %v3188 = vadd.f32 %v2898, %v3151
      %v3189 = vadd.f32 %v2899, %v3154
      %v3190 = vadd.f32 %v2900, %v3157
      %v3191 = vld [vmem:[%s6] sm:$0x1]
      %v3193 = vperm.slane %v3191, 0
      %v3195 = vadd.f32 %v3159, %v3193
      %v3196 = vadd.f32 %v3160, %v3193
      %v3197 = vadd.f32 %v3161, %v3193
      %v3198 = vadd.f32 %v3162, %v3193
      %v3199 = vadd.f32 %v3163, %v3193
      %v3200 = vadd.f32 %v3164, %v3193
      %v3201 = vadd.f32 %v3165, %v3193
      %v3202 = vadd.f32 %v3166, %v3193
      %v3203 = vadd.f32 %v3167, %v3193
      %v3204 = vadd.f32 %v3168, %v3193
      %v3205 = vadd.f32 %v3169, %v3193
      %v3206 = vadd.f32 %v3170, %v3193
      %v3207 = vadd.f32 %v3171, %v3193
      %v3208 = vadd.f32 %v3172, %v3193
      %v3209 = vadd.f32 %v3173, %v3193
      %v3210 = vadd.f32 %v3174, %v3193
      %v3211 = vadd.f32 %v3175, %v3193
      %v3212 = vadd.f32 %v3176, %v3193
      %v3213 = vadd.f32 %v3177, %v3193
      %v3214 = vadd.f32 %v3178, %v3193
      %v3215 = vadd.f32 %v3179, %v3193
      %v3216 = vadd.f32 %v3180, %v3193
      %v3217 = vadd.f32 %v3181, %v3193
      %v3218 = vadd.f32 %v3182, %v3193
      %v3219 = vadd.f32 %v3183, %v3193
      %v3220 = vadd.f32 %v3184, %v3193
      %v3221 = vadd.f32 %v3185, %v3193
      %v3222 = vadd.f32 %v3186, %v3193
      %v3223 = vadd.f32 %v3187, %v3193
      %v3224 = vadd.f32 %v3188, %v3193
      %v3225 = vadd.f32 %v3189, %v3193
      %v3226 = vadd.f32 %v3190, %v3193
      %v3227 = vmax.f32 %v3195, 0.0
      %v3228 = vmax.f32 %v3196, 0.0
      %v3229 = vmax.f32 %v3197, 0.0
      %v3230 = vmax.f32 %v3198, 0.0
      %v3231 = vmax.f32 %v3199, 0.0
      %v3232 = vmax.f32 %v3200, 0.0
      %v3233 = vmax.f32 %v3201, 0.0
      %v3234 = vmax.f32 %v3202, 0.0
      %v3235 = vmax.f32 %v3203, 0.0
      %v3236 = vmax.f32 %v3204, 0.0
      %v3237 = vmax.f32 %v3205, 0.0
      %v3238 = vmax.f32 %v3206, 0.0
      %v3239 = vmax.f32 %v3207, 0.0
      %v3240 = vmax.f32 %v3208, 0.0
      %v3241 = vmax.f32 %v3209, 0.0
      %v3242 = vmax.f32 %v3210, 0.0
      %v3243 = vmax.f32 %v3211, 0.0
      %v3244 = vmax.f32 %v3212, 0.0
      %v3245 = vmax.f32 %v3213, 0.0
      %v3246 = vmax.f32 %v3214, 0.0
      %v3247 = vmax.f32 %v3215, 0.0
      %v3248 = vmax.f32 %v3216, 0.0
      %v3249 = vmax.f32 %v3217, 0.0
      %v3250 = vmax.f32 %v3218, 0.0
      %v3251 = vmax.f32 %v3219, 0.0
      %v3252 = vmax.f32 %v3220, 0.0
      %v3253 = vmax.f32 %v3221, 0.0
      %v3254 = vmax.f32 %v3222, 0.0
      %v3255 = vmax.f32 %v3223, 0.0
      %v3256 = vmax.f32 %v3224, 0.0
      %v3257 = vmax.f32 %v3225, 0.0
      %v3258 = vmax.f32 %v3226, 0.0
      %v3259 = vld [vmem:[%s7] sm:$0xff]
      %v3260 = vld [vmem:[%s7 + $0x8] sm:$0xff]
      %v3261 = vld [vmem:[%s7 + $0x10] sm:$0xff]
      %v3262 = vld [vmem:[%s7 + $0x18] sm:$0xff]
      %v3263 = vld [vmem:[%s7 + $0x20] sm:$0xff]
      %v3264 = vld [vmem:[%s7 + $0x28] sm:$0xff]
      %v3265 = vld [vmem:[%s7 + $0x30] sm:$0xff]
      %v3266 = vld [vmem:[%s7 + $0x38] sm:$0xff]
      %v3267 = vld [vmem:[%s7 + $0x40] sm:$0xff]
      %v3268 = vld [vmem:[%s7 + $0x48] sm:$0xff]
      %v3269 = vld [vmem:[%s7 + $0x50] sm:$0xff]
      %v3270 = vld [vmem:[%s7 + $0x58] sm:$0xff]
      %v3271 = vld [vmem:[%s7 + $0x60] sm:$0xff]
      %v3272 = vld [vmem:[%s7 + $0x68] sm:$0xff]
      %v3273 = vld [vmem:[%s7 + $0x70] sm:$0xff]
      %v3274 = vld [vmem:[%s7 + $0x78] sm:$0xff]
      %v3275 = vld [vmem:[%s8] sm:$0xff]
      %v3276 = vld [vmem:[%s8 + $0x8] sm:$0xff]
      %v3277 = vld [vmem:[%s8 + $0x10] sm:$0xff]
      %v3278 = vld [vmem:[%s8 + $0x18] sm:$0xff]
      %v3279 = vld [vmem:[%s8 + $0x20] sm:$0xff]
      %v3280 = vld [vmem:[%s8 + $0x28] sm:$0xff]
      %v3281 = vld [vmem:[%s8 + $0x30] sm:$0xff]
      %v3282 = vld [vmem:[%s8 + $0x38] sm:$0xff]
      %v3283 = vld [vmem:[%s8 + $0x40] sm:$0xff]
      %v3284 = vld [vmem:[%s8 + $0x48] sm:$0xff]
      %v3285 = vld [vmem:[%s8 + $0x50] sm:$0xff]
      %v3286 = vld [vmem:[%s8 + $0x58] sm:$0xff]
      %v3287 = vld [vmem:[%s8 + $0x60] sm:$0xff]
      %v3288 = vld [vmem:[%s8 + $0x68] sm:$0xff]
      %v3289 = vld [vmem:[%s8 + $0x70] sm:$0xff]
      %v3290 = vld [vmem:[%s8 + $0x78] sm:$0xff]
      %3291 = vmatpush.msra.mxu0 %v3290
      %3292 = vmatpush.msra.mxu0 %v3289
      %3293 = vmatpush.msra.mxu0 %v3288
      %3294 = vmatpush.msra.mxu0 %v3287
      %3295 = vmatpush.msra.mxu0 %v3286
      %3296 = vmatpush.msra.mxu0 %v3285
      %3297 = vmatpush.msra.mxu0 %v3284
      %3298 = vmatpush.msra.mxu0 %v3283
      %3299 = vmatpush.msra.mxu0 %v3282
      %3300 = vmatpush.msra.mxu0 %v3281
      %3301 = vmatpush.msra.mxu0 %v3280
      %3302 = vmatpush.msra.mxu0 %v3279
      %3303 = vmatpush.msra.mxu0 %v3278
      %3304 = vmatpush.msra.mxu0 %v3277
      %3305 = vmatpush.msra.mxu0 %v3276
      %3306 = vmatpush.msra.mxu0 %v3275
      %3307 = vmatmul.f32.gmra.mxu0 %v437
      %v3308 = vpop.f32.mrf.mxu0
      %v3309 = vadd.f32 0.0, %v3308
      %3310 = vmatmul.f32.gmra.mxu0 %v438
      %v3311 = vpop.f32.mrf.mxu0
      %v3312 = vadd.f32 0.0, %v3311
      %3313 = vmatmul.f32.gmra.mxu0 %v439
      %v3314 = vpop.f32.mrf.mxu0
      %v3315 = vadd.f32 0.0, %v3314
      %3316 = vmatmul.f32.gmra.mxu0 %v440
      %v3317 = vpop.f32.mrf.mxu0
      %v3318 = vadd.f32 0.0, %v3317
      %3319 = vmatmul.f32.gmra.mxu0 %v441
      %v3320 = vpop.f32.mrf.mxu0
      %v3321 = vadd.f32 0.0, %v3320
      %3322 = vmatmul.f32.gmra.mxu0 %v442
      %v3323 = vpop.f32.mrf.mxu0
      %v3324 = vadd.f32 0.0, %v3323
      %3325 = vmatmul.f32.gmra.mxu0 %v443
      %v3326 = vpop.f32.mrf.mxu0
      %v3327 = vadd.f32 0.0, %v3326
      %3328 = vmatmul.f32.gmra.mxu0 %v444
      %v3329 = vpop.f32.mrf.mxu0
      %v3330 = vadd.f32 0.0, %v3329
      %3331 = vmatmul.f32.gmra.mxu0 %v445
      %v3332 = vpop.f32.mrf.mxu0
      %v3333 = vadd.f32 0.0, %v3332
      %3334 = vmatmul.f32.gmra.mxu0 %v446
      %v3335 = vpop.f32.mrf.mxu0
      %v3336 = vadd.f32 0.0, %v3335
      %3337 = vmatmul.f32.gmra.mxu0 %v447
      %v3338 = vpop.f32.mrf.mxu0
      %v3339 = vadd.f32 0.0, %v3338
      %3340 = vmatmul.f32.gmra.mxu0 %v448
      %v3341 = vpop.f32.mrf.mxu0
      %v3342 = vadd.f32 0.0, %v3341
      %3343 = vmatmul.f32.gmra.mxu0 %v449
      %v3344 = vpop.f32.mrf.mxu0
      %v3345 = vadd.f32 0.0, %v3344
      %3346 = vmatmul.f32.gmra.mxu0 %v450
      %v3347 = vpop.f32.mrf.mxu0
      %v3348 = vadd.f32 0.0, %v3347
      %3349 = vmatmul.f32.gmra.mxu0 %v451
      %v3350 = vpop.f32.mrf.mxu0
      %v3351 = vadd.f32 0.0, %v3350
      %3352 = vmatmul.f32.gmra.mxu0 %v452
      %v3353 = vpop.f32.mrf.mxu0
      %v3354 = vadd.f32 0.0, %v3353
      %3355 = vmatmul.f32.gmra.mxu0 %v453
      %v3356 = vpop.f32.mrf.mxu0
      %v3357 = vadd.f32 0.0, %v3356
      %3358 = vmatmul.f32.gmra.mxu0 %v454
      %v3359 = vpop.f32.mrf.mxu0
      %v3360 = vadd.f32 0.0, %v3359
      %3361 = vmatmul.f32.gmra.mxu0 %v455
      %v3362 = vpop.f32.mrf.mxu0
      %v3363 = vadd.f32 0.0, %v3362
      %3364 = vmatmul.f32.gmra.mxu0 %v456
      %v3365 = vpop.f32.mrf.mxu0
      %v3366 = vadd.f32 0.0, %v3365
      %3367 = vmatmul.f32.gmra.mxu0 %v457
      %v3368 = vpop.f32.mrf.mxu0
      %v3369 = vadd.f32 0.0, %v3368
      %3370 = vmatmul.f32.gmra.mxu0 %v458
      %v3371 = vpop.f32.mrf.mxu0
      %v3372 = vadd.f32 0.0, %v3371
      %3373 = vmatmul.f32.gmra.mxu0 %v459
      %v3374 = vpop.f32.mrf.mxu0
      %v3375 = vadd.f32 0.0, %v3374
      %3376 = vmatmul.f32.gmra.mxu0 %v460
      %v3377 = vpop.f32.mrf.mxu0
      %v3378 = vadd.f32 0.0, %v3377
      %3379 = vmatmul.f32.gmra.mxu0 %v461
      %v3380 = vpop.f32.mrf.mxu0
      %v3381 = vadd.f32 0.0, %v3380
      %3382 = vmatmul.f32.gmra.mxu0 %v462
      %v3383 = vpop.f32.mrf.mxu0
      %v3384 = vadd.f32 0.0, %v3383
      %3385 = vmatmul.f32.gmra.mxu0 %v463
      %v3386 = vpop.f32.mrf.mxu0
      %v3387 = vadd.f32 0.0, %v3386
      %3388 = vmatmul.f32.gmra.mxu0 %v464
      %v3389 = vpop.f32.mrf.mxu0
      %v3390 = vadd.f32 0.0, %v3389
      %3391 = vmatmul.f32.gmra.mxu0 %v465
      %v3392 = vpop.f32.mrf.mxu0
      %v3393 = vadd.f32 0.0, %v3392
      %3394 = vmatmul.f32.gmra.mxu0 %v466
      %v3395 = vpop.f32.mrf.mxu0
      %v3396 = vadd.f32 0.0, %v3395
      %3397 = vmatmul.f32.gmra.mxu0 %v467
      %v3398 = vpop.f32.mrf.mxu0
      %v3399 = vadd.f32 0.0, %v3398
      %3400 = vmatmul.f32.gmra.mxu0 %v468
      %v3401 = vpop.f32.mrf.mxu0
      %v3402 = vadd.f32 0.0, %v3401
      %3403 = vdwg.mxu0
      %3404 = vmatpush.msra.mxu0 %v3274
      %3405 = vmatpush.msra.mxu0 %v3273
      %3406 = vmatpush.msra.mxu0 %v3272
      %3407 = vmatpush.msra.mxu0 %v3271
      %3408 = vmatpush.msra.mxu0 %v3270
      %3409 = vmatpush.msra.mxu0 %v3269
      %3410 = vmatpush.msra.mxu0 %v3268
      %3411 = vmatpush.msra.mxu0 %v3267
      %3412 = vmatpush.msra.mxu0 %v3266
      %3413 = vmatpush.msra.mxu0 %v3265
      %3414 = vmatpush.msra.mxu0 %v3264
      %3415 = vmatpush.msra.mxu0 %v3263
      %3416 = vmatpush.msra.mxu0 %v3262
      %3417 = vmatpush.msra.mxu0 %v3261
      %3418 = vmatpush.msra.mxu0 %v3260
      %3419 = vmatpush.msra.mxu0 %v3259
      %3420 = vmatmul.f32.gmra.mxu0 %v3227
      %v3421 = vpop.f32.mrf.mxu0
      %v3422 = vadd.f32 %v3309, %v3421
      %3423 = vmatmul.f32.gmra.mxu0 %v3228
      %v3424 = vpop.f32.mrf.mxu0
      %v3425 = vadd.f32 %v3312, %v3424
      %3426 = vmatmul.f32.gmra.mxu0 %v3229
      %v3427 = vpop.f32.mrf.mxu0
      %v3428 = vadd.f32 %v3315, %v3427
      %3429 = vmatmul.f32.gmra.mxu0 %v3230
      %v3430 = vpop.f32.mrf.mxu0
      %v3431 = vadd.f32 %v3318, %v3430
      %3432 = vmatmul.f32.gmra.mxu0 %v3231
      %v3433 = vpop.f32.mrf.mxu0
      %v3434 = vadd.f32 %v3321, %v3433
      %3435 = vmatmul.f32.gmra.mxu0 %v3232
      %v3436 = vpop.f32.mrf.mxu0
      %v3437 = vadd.f32 %v3324, %v3436
      %3438 = vmatmul.f32.gmra.mxu0 %v3233
      %v3439 = vpop.f32.mrf.mxu0
      %v3440 = vadd.f32 %v3327, %v3439
      %3441 = vmatmul.f32.gmra.mxu0 %v3234
      %v3442 = vpop.f32.mrf.mxu0
      %v3443 = vadd.f32 %v3330, %v3442
      %3444 = vmatmul.f32.gmra.mxu0 %v3235
      %v3445 = vpop.f32.mrf.mxu0
      %v3446 = vadd.f32 %v3333, %v3445
      %3447 = vmatmul.f32.gmra.mxu0 %v3236
      %v3448 = vpop.f32.mrf.mxu0
      %v3449 = vadd.f32 %v3336, %v3448
      %3450 = vmatmul.f32.gmra.mxu0 %v3237
      %v3451 = vpop.f32.mrf.mxu0
      %v3452 = vadd.f32 %v3339, %v3451
      %3453 = vmatmul.f32.gmra.mxu0 %v3238
      %v3454 = vpop.f32.mrf.mxu0
      %v3455 = vadd.f32 %v3342, %v3454
      %3456 = vmatmul.f32.gmra.mxu0 %v3239
      %v3457 = vpop.f32.mrf.mxu0
      %v3458 = vadd.f32 %v3345, %v3457
      %3459 = vmatmul.f32.gmra.mxu0 %v3240
      %v3460 = vpop.f32.mrf.mxu0
      %v3461 = vadd.f32 %v3348, %v3460
      %3462 = vmatmul.f32.gmra.mxu0 %v3241
      %v3463 = vpop.f32.mrf.mxu0
      %v3464 = vadd.f32 %v3351, %v3463
      %3465 = vmatmul.f32.gmra.mxu0 %v3242
      %v3466 = vpop.f32.mrf.mxu0
      %v3467 = vadd.f32 %v3354, %v3466
      %3468 = vmatmul.f32.gmra.mxu0 %v3243
      %v3469 = vpop.f32.mrf.mxu0
      %v3470 = vadd.f32 %v3357, %v3469
      %3471 = vmatmul.f32.gmra.mxu0 %v3244
      %v3472 = vpop.f32.mrf.mxu0
      %v3473 = vadd.f32 %v3360, %v3472
      %3474 = vmatmul.f32.gmra.mxu0 %v3245
      %v3475 = vpop.f32.mrf.mxu0
      %v3476 = vadd.f32 %v3363, %v3475
      %3477 = vmatmul.f32.gmra.mxu0 %v3246
      %v3478 = vpop.f32.mrf.mxu0
      %v3479 = vadd.f32 %v3366, %v3478
      %3480 = vmatmul.f32.gmra.mxu0 %v3247
      %v3481 = vpop.f32.mrf.mxu0
      %v3482 = vadd.f32 %v3369, %v3481
      %3483 = vmatmul.f32.gmra.mxu0 %v3248
      %v3484 = vpop.f32.mrf.mxu0
      %v3485 = vadd.f32 %v3372, %v3484
      %3486 = vmatmul.f32.gmra.mxu0 %v3249
      %v3487 = vpop.f32.mrf.mxu0
      %v3488 = vadd.f32 %v3375, %v3487
      %3489 = vmatmul.f32.gmra.mxu0 %v3250
      %v3490 = vpop.f32.mrf.mxu0
      %v3491 = vadd.f32 %v3378, %v3490
      %3492 = vmatmul.f32.gmra.mxu0 %v3251
      %v3493 = vpop.f32.mrf.mxu0
      %v3494 = vadd.f32 %v3381, %v3493
      %3495 = vmatmul.f32.gmra.mxu0 %v3252
      %v3496 = vpop.f32.mrf.mxu0
      %v3497 = vadd.f32 %v3384, %v3496
      %3498 = vmatmul.f32.gmra.mxu0 %v3253
      %v3499 = vpop.f32.mrf.mxu0
      %v3500 = vadd.f32 %v3387, %v3499
      %3501 = vmatmul.f32.gmra.mxu0 %v3254
      %v3502 = vpop.f32.mrf.mxu0
      %v3503 = vadd.f32 %v3390, %v3502
      %3504 = vmatmul.f32.gmra.mxu0 %v3255
      %v3505 = vpop.f32.mrf.mxu0
      %v3506 = vadd.f32 %v3393, %v3505
      %3507 = vmatmul.f32.gmra.mxu0 %v3256
      %v3508 = vpop.f32.mrf.mxu0
      %v3509 = vadd.f32 %v3396, %v3508
      %3510 = vmatmul.f32.gmra.mxu0 %v3257
      %v3511 = vpop.f32.mrf.mxu0
      %v3512 = vadd.f32 %v3399, %v3511
      %3513 = vmatmul.f32.gmra.mxu0 %v3258
      %v3514 = vpop.f32.mrf.mxu0
      %v3515 = vadd.f32 %v3402, %v3514
      %3516 = vdwg.mxu0
      %3517 = vst [vmem:[%s332] sm:$0xff] %v3422
      %3518 = vst [vmem:[%s332 + $0x8] sm:$0xff] %v3425
      %3519 = vst [vmem:[%s332 + $0x10] sm:$0xff] %v3428
      %3520 = vst [vmem:[%s332 + $0x18] sm:$0xff] %v3431
      %3521 = vst [vmem:[%s332 + $0x20] sm:$0xff] %v3434
      %3522 = vst [vmem:[%s332 + $0x28] sm:$0xff] %v3437
      %3523 = vst [vmem:[%s332 + $0x30] sm:$0xff] %v3440
      %3524 = vst [vmem:[%s332 + $0x38] sm:$0xff] %v3443
      %3525 = vst [vmem:[%s332 + $0x40] sm:$0xff] %v3446
      %3526 = vst [vmem:[%s332 + $0x48] sm:$0xff] %v3449
      %3527 = vst [vmem:[%s332 + $0x50] sm:$0xff] %v3452
      %3528 = vst [vmem:[%s332 + $0x58] sm:$0xff] %v3455
      %3529 = vst [vmem:[%s332 + $0x60] sm:$0xff] %v3458
      %3530 = vst [vmem:[%s332 + $0x68] sm:$0xff] %v3461
      %3531 = vst [vmem:[%s332 + $0x70] sm:$0xff] %v3464
      %3532 = vst [vmem:[%s332 + $0x78] sm:$0xff] %v3467
      %3533 = vst [vmem:[%s332 + $0x80] sm:$0xff] %v3470
      %3534 = vst [vmem:[%s332 + $0x88] sm:$0xff] %v3473
      %3535 = vst [vmem:[%s332 + $0x90] sm:$0xff] %v3476
      %3536 = vst [vmem:[%s332 + $0x98] sm:$0xff] %v3479
      %3537 = vst [vmem:[%s332 + $0xa0] sm:$0xff] %v3482
      %3538 = vst [vmem:[%s332 + $0xa8] sm:$0xff] %v3485
      %3539 = vst [vmem:[%s332 + $0xb0] sm:$0xff] %v3488
      %3540 = vst [vmem:[%s332 + $0xb8] sm:$0xff] %v3491
      %3541 = vst [vmem:[%s332 + $0xc0] sm:$0xff] %v3494
      %3542 = vst [vmem:[%s332 + $0xc8] sm:$0xff] %v3497
      %3543 = vst [vmem:[%s332 + $0xd0] sm:$0xff] %v3500
      %3544 = vst [vmem:[%s332 + $0xd8] sm:$0xff] %v3503
      %3545 = vst [vmem:[%s332 + $0xe0] sm:$0xff] %v3506
      %3546 = vst [vmem:[%s332 + $0xe8] sm:$0xff] %v3509
      %3547 = vst [vmem:[%s332 + $0xf0] sm:$0xff] %v3512
      %3548 = vst [vmem:[%s332 + $0xf8] sm:$0xff] %v3515
      %p3549 = scmp.lt.s32.totalorder %s20, 1
      %s3550 = scalar_select %p3549, %s20, 1
      %s3551 = smul.addr %s3550, 32
      %s3552 = smul.addr %s3551, 8
      %s3553 = scalar_lea.vmem %s9, %s3552
      // Predicated region
      $region57: #{residual_bottleneck_block_nhwc.1} parent=55 // pred_check
        %p3554 = pneg %p232
      $region58: #{residual_bottleneck_block_nhwc.1} parent=55 // pred_check_branch
        %3556 = sbr.rel (%p3554) target = $region60
      $region59: #{residual_bottleneck_block_nhwc.1} parent=55 // pred_region
        _
      $region60: #{residual_bottleneck_block_nhwc.1} parent=55 // pred_fallthru
        _
    $region56: #{residual_bottleneck_block_nhwc.1} parent=5 // pred_fallthru
      _
    %p3557 = scmp.le.s32.totalorder 2, %s15
    // Predicated region
    $region61: #{residual_bottleneck_block_nhwc.1} parent=5 // pred_check
      %p3558 = pneg %p3557
    $region62: #{residual_bottleneck_block_nhwc.1} parent=5 // pred_check_branch
      %3560 = sbr.rel (%p3558) target = $region64
    $region63: #{residual_bottleneck_block_nhwc.1} parent=5 // pred_region
      %s3561 = ssub.s32 %s15, 2
      // Predicated region
      $region65: #{residual_bottleneck_block_nhwc.1} parent=63 // pred_check
        %p3562 = pneg %p238
      $region66: #{residual_bottleneck_block_nhwc.1} parent=63 // pred_check_branch
        %3564 = sbr.rel (%p3562) target = $region68
      $region67: #{residual_bottleneck_block_nhwc.1} parent=63 // pred_region
        %p3565 = scmp.lt.s32.totalorder %s21, 1
        %s3566 = scalar_select %p3565, %s21, 1
        %s3567 = smul.addr %s3566, 32
        %s3568 = smul.addr %s3567, 8
        %s3569 = scalar_lea.vmem %s9, %s3568
      $region68: #{residual_bottleneck_block_nhwc.1} parent=63 // pred_fallthru
        _
    $region64: #{residual_bottleneck_block_nhwc.1} parent=5 // pred_fallthru
      _
  $region6: #{residual_bottleneck_block_nhwc.1} parent=0 // loop_footer
    %s19 = sadd.s32 1, %s15
  $region7: #{residual_bottleneck_block_nhwc.1} parent=0 // loop_footer_branch
    %14 = sbr.rel target = $region3
  $region8: #{residual_bottleneck_block_nhwc.1} parent=0 // loop_exit
    _

</llo_original>
